<compile_context>
chip_gen: v7x
topology: tpu7x:2x2x1
jax: 0.10.0
libtpu: 0.0.40
codegen_flags: <defaults>
</compile_context>

<pallas_src>
import math

import jax
import jax.numpy as jnp
from jax.experimental import pallas as pl
from jax.experimental.pallas import tpu as pltpu


# ---------------------------------------------------------------------------
# Kernels (lane-packed layouts)
# ---------------------------------------------------------------------------
def _linear_kernel(x_ref, w_ref, o_ref):
    # o = x_packed @ blockdiag(enc)
    o_ref[...] = jnp.dot(
        x_ref[...], w_ref[...],
        preferred_element_type=jnp.float32,
        precision=jax.lax.Precision.HIGHEST,
    ).astype(o_ref.dtype)


def _nonlinear_kernel(x_ref, w1_ref, w2_ref, o_ref):
    # o = tanh( tanh(x_packed @ blockdiag(enc*b1)) @ blockdiag(enc2*b2) )
    e = jnp.dot(x_ref[...], w1_ref[...],
                preferred_element_type=jnp.float32,
                precision=jax.lax.Precision.HIGHEST)
    e = jnp.dot(jnp.tanh(e), w2_ref[...],
                preferred_element_type=jnp.float32,
                precision=jax.lax.Precision.HIGHEST)
    o_ref[...] = jnp.tanh(e).astype(o_ref.dtype)


# ---------------------------------------------------------------------------
# Helpers
# ---------------------------------------------------------------------------
def _round_up(v, m):
    return -(-v // m) * m


def _block_diag(w, copies):
    """[a, b] -> [copies*a, copies*b] block-diagonal with `copies` copies of w."""
    if copies == 1:
        return w
    a, b = w.shape
    eye = jnp.eye(copies, dtype=w.dtype)
    t = eye[:, :, None, None] * w[None, None, :, :]          # [c, c, a, b]
    return t.transpose(0, 2, 1, 3).reshape(copies * a, copies * b)


def _vmem_block_bytes(rows, cols):
    # f32 block footprint in VMEM after (8, 128) tile padding.
    return _round_up(rows, 8) * _round_up(cols, 128) * 4


def _choose_row_tile(mg, out_cols, target_out_bytes=4 << 20):
    """Packed rows per grid step: large enough to amortize the ~0.35us per-step
    overhead, capped so the grid keeps >= 2 steps (v7x megacore) when possible,
    and a multiple of 8 sublanes."""
    if mg <= 8:
        return mg                                   # full-extent block
    tg = max(8, target_out_bytes // (out_cols * 4))
    half = _round_up(-(-mg // 2), 8)
    tg = min(tg, mg, half)
    return max(8, (tg // 8) * 8)


# ---------------------------------------------------------------------------
# Wrapper
# ---------------------------------------------------------------------------
def input_transform_pallas(x, params, *, nonlinear=False, force_pallas=False):
    """x: [B, S, input_size] f32 -> [B, S, embedding_size] f32."""
    B, S, K = x.shape
    enc = params["enc"]
    emb = enc.shape[1]
    M = B * S

    # Small-input fast path: pallas_call setup dominates below ~256 KB output.
    if not force_pallas and M * emb <= (1 << 16):
        return reference(x, params, nonlinear=nonlinear)

    # ---- fold biases into the weights, pick the lane-packing factor ---------
    if nonlinear:
        w1 = enc * params["bias1"][None, :]
        w2 = params["enc2"] * params["bias2"][None, :]
        # Pack by the output width so the second matmul stays a small 4-copy
        # block-diag (memory-bound on every TPU generation).
        pack = 128 // emb if 128 % emb == 0 else 1
    else:
        w1 = enc
        pack = 128 // K if 128 % K == 0 else 1

    in_cols = pack * K
    out_cols = pack * emb

    # ---- pack rows (free contiguous reshape; pad only if M % pack != 0) -----
    x2d = x.reshape(M, K)
    Mr = _round_up(M, pack)
    if Mr != M:
        # Rare ragged case: one extra HBM copy of x; aligned inputs skip this.
        x2d = jnp.pad(x2d, ((0, Mr - M), (0, 0)))
    mg = Mr // pack
    xp = x2d.reshape(mg, in_cols)

    w1p = _block_diag(w1, pack)
    w2p = _block_diag(w2, pack) if nonlinear else None

    # ---- grid / specs --------------------------------------------------------
    tg = _choose_row_tile(mg, out_cols)
    grid_m = pl.cdiv(mg, tg)

    x_spec = pl.BlockSpec((tg, in_cols), lambda i: (i, 0))
    out_spec = pl.BlockSpec((tg, out_cols), lambda i: (i, 0))
    w1_spec = pl.BlockSpec(w1p.shape, lambda i: (0, 0))
    out_shape = jax.ShapeDtypeStruct((mg, out_cols), jnp.float32)

    vmem_need = (2 * _vmem_block_bytes(tg, in_cols)
                 + 2 * _vmem_block_bytes(tg, out_cols)
                 + 2 * _vmem_block_bytes(*w1p.shape))
    if nonlinear:
        vmem_need += 2 * _vmem_block_bytes(*w2p.shape)
    vmem_limit = int(min(max(vmem_need + (8 << 20), 16 << 20), 40 << 20))

    compiler_params = pltpu.CompilerParams(
        dimension_semantics=("parallel",),
        vmem_limit_bytes=vmem_limit,
    )

    if not nonlinear:
        outp = pl.pallas_call(
            _linear_kernel,
            out_shape=out_shape,
            grid_spec=pl.GridSpec(
                grid=(grid_m,),
                in_specs=[x_spec, w1_spec],
                out_specs=out_spec,
            ),
            compiler_params=compiler_params,
        )(xp, w1p)
    else:
        w2_spec = pl.BlockSpec(w2p.shape, lambda i: (0, 0))
        outp = pl.pallas_call(
            _nonlinear_kernel,
            out_shape=out_shape,
            grid_spec=pl.GridSpec(
                grid=(grid_m,),
                in_specs=[x_spec, w1_spec, w2_spec],
                out_specs=out_spec,
            ),
            compiler_params=compiler_params,
        )(xp, w1p, w2p)

    out2d = outp.reshape(Mr, emb)   # contiguous (free) un-packing reshape
    if Mr != M:
        out2d = out2d[:M]
    return out2d.reshape(B, S, emb)


# ---------------------------------------------------------------------------
# Deterministic parameter init (mirrors the PyTorch __init__)
# ---------------------------------------------------------------------------
def init_params(key, input_size, embedding_size=32, nonlinear=False):
    var = math.sqrt(input_size + embedding_size)
    k1, k2, k3, k4 = jax.random.split(key, 4)
    params = {
        "enc": jax.random.uniform(
            k1, (input_size, embedding_size), jnp.float32,
            minval=-(1.0 / var), maxval=1.0 / var),
    }
    if nonlinear:
        params["enc2"] = jax.random.uniform(
            k2, (embedding_size, embedding_size), jnp.float32,
            minval=-(1.0 / var), maxval=1.0 / var)
        params["bias1"] = jax.random.uniform(
            k3, (embedding_size,), jnp.float32, minval=-0.001, maxval=0.001)
        params["bias2"] = jax.random.uniform(
            k4, (embedding_size,), jnp.float32, minval=-0.001, maxval=0.001)
    return params


# Pure-JAX reference mirroring the torch forward (also used as the small-input
# fast path).  precision='highest' to mimic f32 torch math on the TPU MXU.
def reference(x, params, nonlinear=False):
    e = jnp.einsum("ji,bsj->bsi", params["enc"], x, precision="highest")
    if nonlinear:
        e = e * params["bias1"][None, None, :]
        e = jnp.einsum("ji,bsj->bsi", params["enc2"], jnp.tanh(e),
                       precision="highest")
        e = jnp.tanh(e * params["bias2"][None, None, :])
    return e


if __name__ == "__main__":
    input_size, emb = 4, 32
    key = jax.random.PRNGKey(0)
    kx1, kx2, kx3, kx4, kp = jax.random.split(key, 5)

    cases = [
        ((2, 8, input_size), kx1),      # small shape from the module (fast path / forced pallas)
        ((3, 5, input_size), kx2),      # small ragged (fast path / forced pallas, pad path)
        ((8, 1024, input_size), kx3),   # pallas path, M aligned to the pack factor
        ((3, 701, input_size), kx4),    # pallas path, ragged M (exercises padding)
    ]

    ok = True
    for shape, kk in cases:
        x = jax.random.normal(kk, shape, dtype=jnp.float32)
        M = shape[0] * shape[1]
        for nonlinear in (False, True):
            params = init_params(kp, input_size, emb, nonlinear=nonlinear)
            ref = reference(x, params, nonlinear=nonlinear)
            force_opts = (False, True) if M <= 64 else (False,)
            for force in force_opts:
                out = input_transform_pallas(
                    x, params, nonlinear=nonlinear, force_pallas=force)
                out = jax.block_until_ready(out)
                ok = ok and (out.shape == ref.shape)
                ok = ok and bool(jnp.allclose(out, ref, atol=2e-5, rtol=2e-5))

    if ok:
        print("KERNEL_OK")
</pallas_src>

<mosaic_0001>
module attributes {stable_mosaic.version = 11 : i64} {
  func.func @_linear_kernel(%arg0: i32, %arg1: memref<1x128xf32, #tpu.memory_space<vmem>>, %arg2: memref<128x1024xf32, #tpu.memory_space<vmem>>, %arg3: memref<1x1024xf32, #tpu.memory_space<vmem>>) attributes {dimension_semantics = [#tpu.dimension_semantics<parallel>], iteration_bounds = array<i64: 1>, scalar_prefetch = 0 : i64, scratch_operands = 0 : i64, tpu.core_type = #tpu.core_type<tc>, window_params = [{transform_indices = @transform_0, window_bounds = array<i64: 1, 128>}, {pipeline_mode = #tpu.pipeline_mode<synchronous>, transform_indices = @transform_1, window_bounds = array<i64: 128, 1024>}, {transform_indices = @transform_2, window_bounds = array<i64: 1, 1024>}]} {
    %c0 = arith.constant 0 : index
    %c0_0 = arith.constant 0 : index
    %0 = vector.load %arg1[%c0, %c0_0] : memref<1x128xf32, #tpu.memory_space<vmem>>, vector<1x128xf32>
    %c0_1 = arith.constant 0 : index
    %c0_2 = arith.constant 0 : index
    %1 = vector.load %arg2[%c0_1, %c0_2] : memref<128x1024xf32, #tpu.memory_space<vmem>>, vector<128x1024xf32>
    %cst = arith.constant dense<0.000000e+00> : vector<1x1024xf32>
    %2 = tpu.matmul %0, %1, %cst {dimension_numbers = #tpu.dot_dimension_numbers<[1], [0], [0], [1], [0, 0, 1, 1], [], []>, precision = #tpu.contract_precision<fp32>} : vector<1x128xf32>, vector<128x1024xf32>, vector<1x1024xf32> -> vector<1x1024xf32>
    %c0_3 = arith.constant 0 : index
    %c0_4 = arith.constant 0 : index
    %3 = vector.load %arg3[%c0_3, %c0_4] : memref<1x1024xf32, #tpu.memory_space<vmem>>, vector<1x1024xf32>
    tpu.vector_store %arg3[%c0_3, %c0_4], %2 {strides = array<i32>} : memref<1x1024xf32, #tpu.memory_space<vmem>>, vector<1x1024xf32>,
    return
  }
  func.func @transform_0(%arg0: i32) -> (i32, i32) {
    %c0_i32 = arith.constant 0 : i32
    %c0_i32_0 = arith.constant 0 : i32
    return %arg0, %c0_i32 : i32, i32
  }
  func.func @transform_1(%arg0: i32) -> (i32, i32) {
    %c0_i32 = arith.constant 0 : i32
    %c0_i32_0 = arith.constant 0 : i32
    %c0_i32_1 = arith.constant 0 : i32
    return %c0_i32, %c0_i32_0 : i32, i32
  }
  func.func @transform_2(%arg0: i32) -> (i32, i32) {
    %c0_i32 = arith.constant 0 : i32
    %c0_i32_0 = arith.constant 0 : i32
    return %arg0, %c0_i32 : i32, i32
  }
}

</mosaic_0001>

<llo_original>
// kernel: tpu_custom_call.1
$region0: #{tpu_custom_call.1}
  #allocation0 [shape = 'u32[]', space=smem, size = 0x4, offset = 0x4, fixed_abs, tag = 'smem constant byte address 0x4 - core index']
  #allocation1 [shape = 'u32[144,128]{1,0:T(1,128)}', space=vmem, size = 0x12000, scoped, tag = 'internal scratch']
  %s0 = inlined_call_operand.hbm [shape: f32[1,128], index: 0, kind: input, shape index: {}]
  %s1 = inlined_call_operand.hbm [shape: f32[128,1024], index: 1, kind: input, shape index: {}]
  %s2 = inlined_call_operand.hbm [shape: f32[1,1024], index: 2, kind: output, shape index: {}]
  %s3 = sld [smem:[#allocation0]]
  $region26: #{tpu_custom_call.1} parent=0
    _
  %s5 = ssub.s32 1, %s3
  %s6 = scalar_select 0, %s5, %s3
  $region1: #{tpu_custom_call.1} parent=0
    #allocation2 [shape = 'u8[512]{0}', space=vmem, size = 0x400, scoped, tag = 'input window, operand 0, single buffered']
    #allocation3 [shape = 's32[1]{0}', space=sflag, size = 0x4, scoped, tag = 'scoped memory for tpu_custom_call.1']
    #allocation4 [shape = 's32[1]{0}', space=sflag, size = 0x4, scoped, tag = 'scoped memory for tpu_custom_call.1']
    #allocation5 [shape = 'u8[524288]{0}', space=vmem, size = 0x80000, scoped, tag = 'input window, operand 1, single buffered']
    #allocation6 [shape = 's32[1]{0}', space=sflag, size = 0x4, scoped, tag = 'scoped memory for tpu_custom_call.1']
    #allocation7 [shape = 'u8[4096]{0}', space=vmem, size = 0x1000, scoped, tag = 'output window, operand 0, single buffered']
    %7 = vsyncpa [#allocation3], 0
    %8 = vsyncpa [#allocation6], 0
    %9 = vsyncpa [#allocation4], 0
    // Predicated region
    $region2: #{tpu_custom_call.1} parent=1 // pred_check
      _
    $region3: #{tpu_custom_call.1} parent=1 // pred_check_branch
      %11 = sbr.rel (0) target = $region5
    $region4: #{tpu_custom_call.1} parent=1 // pred_region
      %s13 = ssub.s32 16, 16
      %14 = vsyncadd [#allocation3], %s13
      %s16 = sshll.u32 [#allocation2], 4
      %s17 = int_to_ptr.vmem [resolvable:$true] %s16
      %19 = dma.hbm_to_vmem [thread:$0]  %s0, 16, %s17, [#allocation3]
    $region5: #{tpu_custom_call.1} parent=1 // pred_fallthru
      _
    // Predicated region
    $region6: #{tpu_custom_call.1} parent=1 // pred_check
      _
    $region7: #{tpu_custom_call.1} parent=1 // pred_check_branch
      %21 = sbr.rel (0) target = $region9
    $region8: #{tpu_custom_call.1} parent=1 // pred_region
      %s23 = ssub.s32 16384, 16384
      %24 = vsyncadd [#allocation6], %s23
      %s25 = sshll.u32 [#allocation5], 4
      %s26 = int_to_ptr.vmem [resolvable:$true] %s25
      %31 = dma.hbm_to_vmem [thread:$0]  %s1, 16384, %s26, [#allocation6], 1024, 1024, 64
    $region9: #{tpu_custom_call.1} parent=1 // pred_fallthru
      _
    // Predicated region
    $region10: #{tpu_custom_call.1} parent=1 // pred_check
      _
    $region11: #{tpu_custom_call.1} parent=1 // pred_check_branch
      %33 = sbr.rel (0) target = $region13
    $region12: #{tpu_custom_call.1} parent=1 // pred_region
      %34 = dma.done [#allocation3], 16
    $region13: #{tpu_custom_call.1} parent=1 // pred_fallthru
      _
    // Predicated region
    $region14: #{tpu_custom_call.1} parent=1 // pred_check
      _
    $region15: #{tpu_custom_call.1} parent=1 // pred_check_branch
      %36 = sbr.rel (0) target = $region17
    $region16: #{tpu_custom_call.1} parent=1 // pred_region
      %37 = dma.done [#allocation6], 16384
    $region17: #{tpu_custom_call.1} parent=1 // pred_fallthru
      _
    %v38 = vld [vmem:[#allocation2] sm:$0x1]
    %v39 = vld [vmem:[#allocation5] sm:$0xff]
    %v40 = vld [vmem:[#allocation5 + $0x8] sm:$0xff]
    %v41 = vld [vmem:[#allocation5 + $0x10] sm:$0xff]
    %v42 = vld [vmem:[#allocation5 + $0x18] sm:$0xff]
    %v43 = vld [vmem:[#allocation5 + $0x20] sm:$0xff]
    %v44 = vld [vmem:[#allocation5 + $0x28] sm:$0xff]
    %v45 = vld [vmem:[#allocation5 + $0x30] sm:$0xff]
    %v46 = vld [vmem:[#allocation5 + $0x38] sm:$0xff]
    %v47 = vld [vmem:[#allocation5 + $0x40] sm:$0xff]
    %v48 = vld [vmem:[#allocation5 + $0x48] sm:$0xff]
    %v49 = vld [vmem:[#allocation5 + $0x50] sm:$0xff]
    %v50 = vld [vmem:[#allocation5 + $0x58] sm:$0xff]
    %v51 = vld [vmem:[#allocation5 + $0x60] sm:$0xff]
    %v52 = vld [vmem:[#allocation5 + $0x68] sm:$0xff]
    %v53 = vld [vmem:[#allocation5 + $0x70] sm:$0xff]
    %v54 = vld [vmem:[#allocation5 + $0x78] sm:$0xff]
    %v55 = vld [vmem:[#allocation5 + $0x80] sm:$0xff]
    %v56 = vld [vmem:[#allocation5 + $0x88] sm:$0xff]
    %v57 = vld [vmem:[#allocation5 + $0x90] sm:$0xff]
    %v58 = vld [vmem:[#allocation5 + $0x98] sm:$0xff]
    %v59 = vld [vmem:[#allocation5 + $0xa0] sm:$0xff]
    %v60 = vld [vmem:[#allocation5 + $0xa8] sm:$0xff]
    %v61 = vld [vmem:[#allocation5 + $0xb0] sm:$0xff]
    %v62 = vld [vmem:[#allocation5 + $0xb8] sm:$0xff]
    %v63 = vld [vmem:[#allocation5 + $0xc0] sm:$0xff]
    %v64 = vld [vmem:[#allocation5 + $0xc8] sm:$0xff]
    %v65 = vld [vmem:[#allocation5 + $0xd0] sm:$0xff]
    %v66 = vld [vmem:[#allocation5 + $0xd8] sm:$0xff]
    %v67 = vld [vmem:[#allocation5 + $0xe0] sm:$0xff]
    %v68 = vld [vmem:[#allocation5 + $0xe8] sm:$0xff]
    %v69 = vld [vmem:[#allocation5 + $0xf0] sm:$0xff]
    %v70 = vld [vmem:[#allocation5 + $0xf8] sm:$0xff]
    %v71 = vld [vmem:[#allocation5 + $0x100] sm:$0xff]
    %v72 = vld [vmem:[#allocation5 + $0x108] sm:$0xff]
    %v73 = vld [vmem:[#allocation5 + $0x110] sm:$0xff]
    %v74 = vld [vmem:[#allocation5 + $0x118] sm:$0xff]
    %v75 = vld [vmem:[#allocation5 + $0x120] sm:$0xff]
    %v76 = vld [vmem:[#allocation5 + $0x128] sm:$0xff]
    %v77 = vld [vmem:[#allocation5 + $0x130] sm:$0xff]
    %v78 = vld [vmem:[#allocation5 + $0x138] sm:$0xff]
    %v79 = vld [vmem:[#allocation5 + $0x140] sm:$0xff]
    %v80 = vld [vmem:[#allocation5 + $0x148] sm:$0xff]
    %v81 = vld [vmem:[#allocation5 + $0x150] sm:$0xff]
    %v82 = vld [vmem:[#allocation5 + $0x158] sm:$0xff]
    %v83 = vld [vmem:[#allocation5 + $0x160] sm:$0xff]
    %v84 = vld [vmem:[#allocation5 + $0x168] sm:$0xff]
    %v85 = vld [vmem:[#allocation5 + $0x170] sm:$0xff]
    %v86 = vld [vmem:[#allocation5 + $0x178] sm:$0xff]
    %v87 = vld [vmem:[#allocation5 + $0x180] sm:$0xff]
    %v88 = vld [vmem:[#allocation5 + $0x188] sm:$0xff]
    %v89 = vld [vmem:[#allocation5 + $0x190] sm:$0xff]
    %v90 = vld [vmem:[#allocation5 + $0x198] sm:$0xff]
    %v91 = vld [vmem:[#allocation5 + $0x1a0] sm:$0xff]
    %v92 = vld [vmem:[#allocation5 + $0x1a8] sm:$0xff]
    %v93 = vld [vmem:[#allocation5 + $0x1b0] sm:$0xff]
    %v94 = vld [vmem:[#allocation5 + $0x1b8] sm:$0xff]
    %v95 = vld [vmem:[#allocation5 + $0x1c0] sm:$0xff]
    %v96 = vld [vmem:[#allocation5 + $0x1c8] sm:$0xff]
    %v97 = vld [vmem:[#allocation5 + $0x1d0] sm:$0xff]
    %v98 = vld [vmem:[#allocation5 + $0x1d8] sm:$0xff]
    %v99 = vld [vmem:[#allocation5 + $0x1e0] sm:$0xff]
    %v100 = vld [vmem:[#allocation5 + $0x1e8] sm:$0xff]
    %v101 = vld [vmem:[#allocation5 + $0x1f0] sm:$0xff]
    %v102 = vld [vmem:[#allocation5 + $0x1f8] sm:$0xff]
    %v103 = vld [vmem:[#allocation5 + $0x200] sm:$0xff]
    %v104 = vld [vmem:[#allocation5 + $0x208] sm:$0xff]
    %v105 = vld [vmem:[#allocation5 + $0x210] sm:$0xff]
    %v106 = vld [vmem:[#allocation5 + $0x218] sm:$0xff]
    %v107 = vld [vmem:[#allocation5 + $0x220] sm:$0xff]
    %v108 = vld [vmem:[#allocation5 + $0x228] sm:$0xff]
    %v109 = vld [vmem:[#allocation5 + $0x230] sm:$0xff]
    %v110 = vld [vmem:[#allocation5 + $0x238] sm:$0xff]
    %v111 = vld [vmem:[#allocation5 + $0x240] sm:$0xff]
    %v112 = vld [vmem:[#allocation5 + $0x248] sm:$0xff]
    %v113 = vld [vmem:[#allocation5 + $0x250] sm:$0xff]
    %v114 = vld [vmem:[#allocation5 + $0x258] sm:$0xff]
    %v115 = vld [vmem:[#allocation5 + $0x260] sm:$0xff]
    %v116 = vld [vmem:[#allocation5 + $0x268] sm:$0xff]
    %v117 = vld [vmem:[#allocation5 + $0x270] sm:$0xff]
    %v118 = vld [vmem:[#allocation5 + $0x278] sm:$0xff]
    %v119 = vld [vmem:[#allocation5 + $0x280] sm:$0xff]
    %v120 = vld [vmem:[#allocation5 + $0x288] sm:$0xff]
    %v121 = vld [vmem:[#allocation5 + $0x290] sm:$0xff]
    %v122 = vld [vmem:[#allocation5 + $0x298] sm:$0xff]
    %v123 = vld [vmem:[#allocation5 + $0x2a0] sm:$0xff]
    %v124 = vld [vmem:[#allocation5 + $0x2a8] sm:$0xff]
    %v125 = vld [vmem:[#allocation5 + $0x2b0] sm:$0xff]
    %v126 = vld [vmem:[#allocation5 + $0x2b8] sm:$0xff]
    %v127 = vld [vmem:[#allocation5 + $0x2c0] sm:$0xff]
    %v128 = vld [vmem:[#allocation5 + $0x2c8] sm:$0xff]
    %v129 = vld [vmem:[#allocation5 + $0x2d0] sm:$0xff]
    %v130 = vld [vmem:[#allocation5 + $0x2d8] sm:$0xff]
    %v131 = vld [vmem:[#allocation5 + $0x2e0] sm:$0xff]
    %v132 = vld [vmem:[#allocation5 + $0x2e8] sm:$0xff]
    %v133 = vld [vmem:[#allocation5 + $0x2f0] sm:$0xff]
    %v134 = vld [vmem:[#allocation5 + $0x2f8] sm:$0xff]
    %v135 = vld [vmem:[#allocation5 + $0x300] sm:$0xff]
    %v136 = vld [vmem:[#allocation5 + $0x308] sm:$0xff]
    %v137 = vld [vmem:[#allocation5 + $0x310] sm:$0xff]
    %v138 = vld [vmem:[#allocation5 + $0x318] sm:$0xff]
    %v139 = vld [vmem:[#allocation5 + $0x320] sm:$0xff]
    %v140 = vld [vmem:[#allocation5 + $0x328] sm:$0xff]
    %v141 = vld [vmem:[#allocation5 + $0x330] sm:$0xff]
    %v142 = vld [vmem:[#allocation5 + $0x338] sm:$0xff]
    %v143 = vld [vmem:[#allocation5 + $0x340] sm:$0xff]
    %v144 = vld [vmem:[#allocation5 + $0x348] sm:$0xff]
    %v145 = vld [vmem:[#allocation5 + $0x350] sm:$0xff]
    %v146 = vld [vmem:[#allocation5 + $0x358] sm:$0xff]
    %v147 = vld [vmem:[#allocation5 + $0x360] sm:$0xff]
    %v148 = vld [vmem:[#allocation5 + $0x368] sm:$0xff]
    %v149 = vld [vmem:[#allocation5 + $0x370] sm:$0xff]
    %v150 = vld [vmem:[#allocation5 + $0x378] sm:$0xff]
    %v151 = vld [vmem:[#allocation5 + $0x380] sm:$0xff]
    %v152 = vld [vmem:[#allocation5 + $0x388] sm:$0xff]
    %v153 = vld [vmem:[#allocation5 + $0x390] sm:$0xff]
    %v154 = vld [vmem:[#allocation5 + $0x398] sm:$0xff]
    %v155 = vld [vmem:[#allocation5 + $0x3a0] sm:$0xff]
    %v156 = vld [vmem:[#allocation5 + $0x3a8] sm:$0xff]
    %v157 = vld [vmem:[#allocation5 + $0x3b0] sm:$0xff]
    %v158 = vld [vmem:[#allocation5 + $0x3b8] sm:$0xff]
    %v159 = vld [vmem:[#allocation5 + $0x3c0] sm:$0xff]
    %v160 = vld [vmem:[#allocation5 + $0x3c8] sm:$0xff]
    %v161 = vld [vmem:[#allocation5 + $0x3d0] sm:$0xff]
    %v162 = vld [vmem:[#allocation5 + $0x3d8] sm:$0xff]
    %v163 = vld [vmem:[#allocation5 + $0x3e0] sm:$0xff]
    %v164 = vld [vmem:[#allocation5 + $0x3e8] sm:$0xff]
    %v165 = vld [vmem:[#allocation5 + $0x3f0] sm:$0xff]
    %v166 = vld [vmem:[#allocation5 + $0x3f8] sm:$0xff]
    %v167 = vand.u32 %v40, 4294901760
    %168 = vmatprep.subr.mxu0 %v167
    %v169 = vand.u32 %v39, 4294901760
    %170 = vmatpush1.msra.mxu0 %v169
    %v171 = vand.u32 %v48, 4294901760
    %172 = vmatprep.subr.mxu0 %v171
    %v173 = vand.u32 %v47, 4294901760
    %174 = vmatpush1.msra.mxu0 %v173
    %v175 = vand.u32 %v56, 4294901760
    %176 = vmatprep.subr.mxu0 %v175
    %v177 = vand.u32 %v55, 4294901760
    %178 = vmatpush1.msra.mxu0 %v177
    %v179 = vand.u32 %v64, 4294901760
    %180 = vmatprep.subr.mxu0 %v179
    %v181 = vand.u32 %v63, 4294901760
    %182 = vmatpush1.msra.mxu0 %v181
    %v183 = vand.u32 %v72, 4294901760
    %184 = vmatprep.subr.mxu0 %v183
    %v185 = vand.u32 %v71, 4294901760
    %186 = vmatpush1.msra.mxu0 %v185
    %v187 = vand.u32 %v80, 4294901760
    %188 = vmatprep.subr.mxu0 %v187
    %v189 = vand.u32 %v79, 4294901760
    %190 = vmatpush1.msra.mxu0 %v189
    %v191 = vand.u32 %v88, 4294901760
    %192 = vmatprep.subr.mxu0 %v191
    %v193 = vand.u32 %v87, 4294901760
    %194 = vmatpush1.msra.mxu0 %v193
    %v195 = vand.u32 %v96, 4294901760
    %196 = vmatprep.subr.mxu0 %v195
    %v197 = vand.u32 %v95, 4294901760
    %198 = vmatpush1.msra.mxu0 %v197
    %v199 = vand.u32 %v104, 4294901760
    %200 = vmatprep.subr.mxu0 %v199
    %v201 = vand.u32 %v103, 4294901760
    %202 = vmatpush1.msra.mxu0 %v201
    %v203 = vand.u32 %v112, 4294901760
    %204 = vmatprep.subr.mxu0 %v203
    %v205 = vand.u32 %v111, 4294901760
    %206 = vmatpush1.msra.mxu0 %v205
    %v207 = vand.u32 %v120, 4294901760
    %208 = vmatprep.subr.mxu0 %v207
    %v209 = vand.u32 %v119, 4294901760
    %210 = vmatpush1.msra.mxu0 %v209
    %v211 = vand.u32 %v128, 4294901760
    %212 = vmatprep.subr.mxu0 %v211
    %v213 = vand.u32 %v127, 4294901760
    %214 = vmatpush1.msra.mxu0 %v213
    %v215 = vand.u32 %v136, 4294901760
    %216 = vmatprep.subr.mxu0 %v215
    %v217 = vand.u32 %v135, 4294901760
    %218 = vmatpush1.msra.mxu0 %v217
    %v219 = vand.u32 %v144, 4294901760
    %220 = vmatprep.subr.mxu0 %v219
    %v221 = vand.u32 %v143, 4294901760
    %222 = vmatpush1.msra.mxu0 %v221
    %v223 = vand.u32 %v152, 4294901760
    %224 = vmatprep.subr.mxu0 %v223
    %v225 = vand.u32 %v151, 4294901760
    %226 = vmatpush1.msra.mxu0 %v225
    %v227 = vand.u32 %v160, 4294901760
    %228 = vmatprep.subr.mxu0 %v227
    %v229 = vand.u32 %v159, 4294901760
    %230 = vmatpush1.msra.mxu0 %v229
    %231 = vmatprep.subr.mxu0 0.0
    %232 = vmatpush1.msra.mxu0 0.0
    %233 = vmatprep.subr.mxu0 0.0
    %234 = vmatpush1.msra.mxu0 0.0
    %235 = vmatprep.subr.mxu0 0.0
    %236 = vmatpush1.msra.mxu0 0.0
    %237 = vmatprep.subr.mxu0 0.0
    %238 = vmatpush1.msra.mxu0 0.0
    %239 = vmatprep.subr.mxu0 0.0
    %240 = vmatpush1.msra.mxu0 0.0
    %241 = vmatprep.subr.mxu0 0.0
    %242 = vmatpush1.msra.mxu0 0.0
    %243 = vmatprep.subr.mxu0 0.0
    %244 = vmatpush1.msra.mxu0 0.0
    %245 = vmatprep.subr.mxu0 0.0
    %246 = vmatpush1.msra.mxu0 0.0
    %247 = vmatprep.subr.mxu0 0.0
    %248 = vmatpush1.msra.mxu0 0.0
    %249 = vmatprep.subr.mxu0 0.0
    %250 = vmatpush1.msra.mxu0 0.0
    %251 = vmatprep.subr.mxu0 0.0
    %252 = vmatpush1.msra.mxu0 0.0
    %253 = vmatprep.subr.mxu0 0.0
    %254 = vmatpush1.msra.mxu0 0.0
    %255 = vmatprep.subr.mxu0 0.0
    %256 = vmatpush1.msra.mxu0 0.0
    %257 = vmatprep.subr.mxu0 0.0
    %258 = vmatpush1.msra.mxu0 0.0
    %259 = vmatprep.subr.mxu0 0.0
    %260 = vmatpush1.msra.mxu0 0.0
    %261 = vmatprep.subr.mxu0 0.0
    %262 = vmatpush1.msra.mxu0 0.0
    %263 = vmatprep.mubr.f32.mxu0 0.0
    %v264 = vand.u32 %v38, 4294901760
    %v265 = vsub.f32 %v38, %v264
    %v266 = vand.u32 %v265, 4294901760
    %v267 = vsub.f32 %v265, %v266
    %v268 = vand.u32 %v267, 4294901760
    %269 = vmatmul.mubr.f32.gmra.mrb[0].mxu0 %v268
    %v270 = vpop.f32.mrb[0].mxu0
    %v271 = vadd.f32 0.0, %v270
    %v272 = vpop.f32.mrb[0].mxu0
    %v273 = vadd.f32 0.0, %v272
    %274 = vdwg.mxu0
    %v275 = vand.u32 %v40, 4294901760
    %v276 = vsub.f32 %v40, %v275
    %v277 = vand.u32 %v276, 4294901760
    %v278 = vsub.f32 %v276, %v277
    %v279 = vand.u32 %v278, 4294901760
    %280 = vmatprep.subr.mxu0 %v279
    %v281 = vand.u32 %v39, 4294901760
    %v282 = vsub.f32 %v39, %v281
    %v283 = vand.u32 %v282, 4294901760
    %v284 = vsub.f32 %v282, %v283
    %v285 = vand.u32 %v284, 4294901760
    %286 = vmatpush1.msra.mxu0 %v285
    %v287 = vand.u32 %v48, 4294901760
    %v288 = vsub.f32 %v48, %v287
    %v289 = vand.u32 %v288, 4294901760
    %v290 = vsub.f32 %v288, %v289
    %v291 = vand.u32 %v290, 4294901760
    %292 = vmatprep.subr.mxu0 %v291
    %v293 = vand.u32 %v47, 4294901760
    %v294 = vsub.f32 %v47, %v293
    %v295 = vand.u32 %v294, 4294901760
    %v296 = vsub.f32 %v294, %v295
    %v297 = vand.u32 %v296, 4294901760
    %298 = vmatpush1.msra.mxu0 %v297
    %v299 = vand.u32 %v56, 4294901760
    %v300 = vsub.f32 %v56, %v299
    %v301 = vand.u32 %v300, 4294901760
    %v302 = vsub.f32 %v300, %v301
    %v303 = vand.u32 %v302, 4294901760
    %304 = vmatprep.subr.mxu0 %v303
    %v305 = vand.u32 %v55, 4294901760
    %v306 = vsub.f32 %v55, %v305
    %v307 = vand.u32 %v306, 4294901760
    %v308 = vsub.f32 %v306, %v307
    %v309 = vand.u32 %v308, 4294901760
    %310 = vmatpush1.msra.mxu0 %v309
    %v311 = vand.u32 %v64, 4294901760
    %v312 = vsub.f32 %v64, %v311
    %v313 = vand.u32 %v312, 4294901760
    %v314 = vsub.f32 %v312, %v313
    %v315 = vand.u32 %v314, 4294901760
    %316 = vmatprep.subr.mxu0 %v315
    %v317 = vand.u32 %v63, 4294901760
    %v318 = vsub.f32 %v63, %v317
    %v319 = vand.u32 %v318, 4294901760
    %v320 = vsub.f32 %v318, %v319
    %v321 = vand.u32 %v320, 4294901760
    %322 = vmatpush1.msra.mxu0 %v321
    %v323 = vand.u32 %v72, 4294901760
    %v324 = vsub.f32 %v72, %v323
    %v325 = vand.u32 %v324, 4294901760
    %v326 = vsub.f32 %v324, %v325
    %v327 = vand.u32 %v326, 4294901760
    %328 = vmatprep.subr.mxu0 %v327
    %v329 = vand.u32 %v71, 4294901760
    %v330 = vsub.f32 %v71, %v329
    %v331 = vand.u32 %v330, 4294901760
    %v332 = vsub.f32 %v330, %v331
    %v333 = vand.u32 %v332, 4294901760
    %334 = vmatpush1.msra.mxu0 %v333
    %v335 = vand.u32 %v80, 4294901760
    %v336 = vsub.f32 %v80, %v335
    %v337 = vand.u32 %v336, 4294901760
    %v338 = vsub.f32 %v336, %v337
    %v339 = vand.u32 %v338, 4294901760
    %340 = vmatprep.subr.mxu0 %v339
    %v341 = vand.u32 %v79, 4294901760
    %v342 = vsub.f32 %v79, %v341
    %v343 = vand.u32 %v342, 4294901760
    %v344 = vsub.f32 %v342, %v343
    %v345 = vand.u32 %v344, 4294901760
    %346 = vmatpush1.msra.mxu0 %v345
    %v347 = vand.u32 %v88, 4294901760
    %v348 = vsub.f32 %v88, %v347
    %v349 = vand.u32 %v348, 4294901760
    %v350 = vsub.f32 %v348, %v349
    %v351 = vand.u32 %v350, 4294901760
    %352 = vmatprep.subr.mxu0 %v351
    %v353 = vand.u32 %v87, 4294901760
    %v354 = vsub.f32 %v87, %v353
    %v355 = vand.u32 %v354, 4294901760
    %v356 = vsub.f32 %v354, %v355
    %v357 = vand.u32 %v356, 4294901760
    %358 = vmatpush1.msra.mxu0 %v357
    %v359 = vand.u32 %v96, 4294901760
    %v360 = vsub.f32 %v96, %v359
    %v361 = vand.u32 %v360, 4294901760
    %v362 = vsub.f32 %v360, %v361
    %v363 = vand.u32 %v362, 4294901760
    %364 = vmatprep.subr.mxu0 %v363
    %v365 = vand.u32 %v95, 4294901760
    %v366 = vsub.f32 %v95, %v365
    %v367 = vand.u32 %v366, 4294901760
    %v368 = vsub.f32 %v366, %v367
    %v369 = vand.u32 %v368, 4294901760
    %370 = vmatpush1.msra.mxu0 %v369
    %v371 = vand.u32 %v104, 4294901760
    %v372 = vsub.f32 %v104, %v371
    %v373 = vand.u32 %v372, 4294901760
    %v374 = vsub.f32 %v372, %v373
    %v375 = vand.u32 %v374, 4294901760
    %376 = vmatprep.subr.mxu0 %v375
    %v377 = vand.u32 %v103, 4294901760
    %v378 = vsub.f32 %v103, %v377
    %v379 = vand.u32 %v378, 4294901760
    %v380 = vsub.f32 %v378, %v379
    %v381 = vand.u32 %v380, 4294901760
    %382 = vmatpush1.msra.mxu0 %v381
    %v383 = vand.u32 %v112, 4294901760
    %v384 = vsub.f32 %v112, %v383
    %v385 = vand.u32 %v384, 4294901760
    %v386 = vsub.f32 %v384, %v385
    %v387 = vand.u32 %v386, 4294901760
    %388 = vmatprep.subr.mxu0 %v387
    %v389 = vand.u32 %v111, 4294901760
    %v390 = vsub.f32 %v111, %v389
    %v391 = vand.u32 %v390, 4294901760
    %v392 = vsub.f32 %v390, %v391
    %v393 = vand.u32 %v392, 4294901760
    %394 = vmatpush1.msra.mxu0 %v393
    %v395 = vand.u32 %v120, 4294901760
    %v396 = vsub.f32 %v120, %v395
    %v397 = vand.u32 %v396, 4294901760
    %v398 = vsub.f32 %v396, %v397
    %v399 = vand.u32 %v398, 4294901760
    %400 = vmatprep.subr.mxu0 %v399
    %v401 = vand.u32 %v119, 4294901760
    %v402 = vsub.f32 %v119, %v401
    %v403 = vand.u32 %v402, 4294901760
    %v404 = vsub.f32 %v402, %v403
    %v405 = vand.u32 %v404, 4294901760
    %406 = vmatpush1.msra.mxu0 %v405
    %v407 = vand.u32 %v128, 4294901760
    %v408 = vsub.f32 %v128, %v407
    %v409 = vand.u32 %v408, 4294901760
    %v410 = vsub.f32 %v408, %v409
    %v411 = vand.u32 %v410, 4294901760
    %412 = vmatprep.subr.mxu0 %v411
    %v413 = vand.u32 %v127, 4294901760
    %v414 = vsub.f32 %v127, %v413
    %v415 = vand.u32 %v414, 4294901760
    %v416 = vsub.f32 %v414, %v415
    %v417 = vand.u32 %v416, 4294901760
    %418 = vmatpush1.msra.mxu0 %v417
    %v419 = vand.u32 %v136, 4294901760
    %v420 = vsub.f32 %v136, %v419
    %v421 = vand.u32 %v420, 4294901760
    %v422 = vsub.f32 %v420, %v421
    %v423 = vand.u32 %v422, 4294901760
    %424 = vmatprep.subr.mxu0 %v423
    %v425 = vand.u32 %v135, 4294901760
    %v426 = vsub.f32 %v135, %v425
    %v427 = vand.u32 %v426, 4294901760
    %v428 = vsub.f32 %v426, %v427
    %v429 = vand.u32 %v428, 4294901760
    %430 = vmatpush1.msra.mxu0 %v429
    %v431 = vand.u32 %v144, 4294901760
    %v432 = vsub.f32 %v144, %v431
    %v433 = vand.u32 %v432, 4294901760
    %v434 = vsub.f32 %v432, %v433
    %v435 = vand.u32 %v434, 4294901760
    %436 = vmatprep.subr.mxu0 %v435
    %v437 = vand.u32 %v143, 4294901760
    %v438 = vsub.f32 %v143, %v437
    %v439 = vand.u32 %v438, 4294901760
    %v440 = vsub.f32 %v438, %v439
    %v441 = vand.u32 %v440, 4294901760
    %442 = vmatpush1.msra.mxu0 %v441
    %v443 = vand.u32 %v152, 4294901760
    %v444 = vsub.f32 %v152, %v443
    %v445 = vand.u32 %v444, 4294901760
    %v446 = vsub.f32 %v444, %v445
    %v447 = vand.u32 %v446, 4294901760
    %448 = vmatprep.subr.mxu0 %v447
    %v449 = vand.u32 %v151, 4294901760
    %v450 = vsub.f32 %v151, %v449
    %v451 = vand.u32 %v450, 4294901760
    %v452 = vsub.f32 %v450, %v451
    %v453 = vand.u32 %v452, 4294901760
    %454 = vmatpush1.msra.mxu0 %v453
    %v455 = vand.u32 %v160, 4294901760
    %v456 = vsub.f32 %v160, %v455
    %v457 = vand.u32 %v456, 4294901760
    %v458 = vsub.f32 %v456, %v457
    %v459 = vand.u32 %v458, 4294901760
    %460 = vmatprep.subr.mxu0 %v459
    %v461 = vand.u32 %v159, 4294901760
    %v462 = vsub.f32 %v159, %v461
    %v463 = vand.u32 %v462, 4294901760
    %v464 = vsub.f32 %v462, %v463
    %v465 = vand.u32 %v464, 4294901760
    %466 = vmatpush1.msra.mxu0 %v465
    %467 = vmatprep.subr.mxu0 0.0
    %468 = vmatpush1.msra.mxu0 0.0
    %469 = vmatprep.subr.mxu0 0.0
    %470 = vmatpush1.msra.mxu0 0.0
    %471 = vmatprep.subr.mxu0 0.0
    %472 = vmatpush1.msra.mxu0 0.0
    %473 = vmatprep.subr.mxu0 0.0
    %474 = vmatpush1.msra.mxu0 0.0
    %475 = vmatprep.subr.mxu0 0.0
    %476 = vmatpush1.msra.mxu0 0.0
    %477 = vmatprep.subr.mxu0 0.0
    %478 = vmatpush1.msra.mxu0 0.0
    %479 = vmatprep.subr.mxu0 0.0
    %480 = vmatpush1.msra.mxu0 0.0
    %481 = vmatprep.subr.mxu0 0.0
    %482 = vmatpush1.msra.mxu0 0.0
    %483 = vmatprep.subr.mxu0 0.0
    %484 = vmatpush1.msra.mxu0 0.0
    %485 = vmatprep.subr.mxu0 0.0
    %486 = vmatpush1.msra.mxu0 0.0
    %487 = vmatprep.subr.mxu0 0.0
    %488 = vmatpush1.msra.mxu0 0.0
    %489 = vmatprep.subr.mxu0 0.0
    %490 = vmatpush1.msra.mxu0 0.0
    %491 = vmatprep.subr.mxu0 0.0
    %492 = vmatpush1.msra.mxu0 0.0
    %493 = vmatprep.subr.mxu0 0.0
    %494 = vmatpush1.msra.mxu0 0.0
    %495 = vmatprep.subr.mxu0 0.0
    %496 = vmatpush1.msra.mxu0 0.0
    %497 = vmatprep.subr.mxu0 0.0
    %498 = vmatpush1.msra.mxu0 0.0
    %499 = vmatprep.mubr.f32.mxu0 0.0
    %v500 = vand.u32 %v38, 4294901760
    %501 = vmatmul.mubr.f32.gmra.mrb[0].mxu0 %v500
    %v502 = vpop.f32.mrb[0].mxu0
    %v503 = vadd.f32 %v271, %v502
    %v504 = vpop.f32.mrb[0].mxu0
    %v505 = vadd.f32 %v273, %v504
    %506 = vdwg.mxu0
    %v507 = vand.u32 %v40, 4294901760
    %v508 = vsub.f32 %v40, %v507
    %509 = vmatprep.subr.mxu0 %v508
    %v510 = vand.u32 %v39, 4294901760
    %v511 = vsub.f32 %v39, %v510
    %512 = vmatpush1.msra.mxu0 %v511
    %v513 = vand.u32 %v48, 4294901760
    %v514 = vsub.f32 %v48, %v513
    %515 = vmatprep.subr.mxu0 %v514
    %v516 = vand.u32 %v47, 4294901760
    %v517 = vsub.f32 %v47, %v516
    %518 = vmatpush1.msra.mxu0 %v517
    %v519 = vand.u32 %v56, 4294901760
    %v520 = vsub.f32 %v56, %v519
    %521 = vmatprep.subr.mxu0 %v520
    %v522 = vand.u32 %v55, 4294901760
    %v523 = vsub.f32 %v55, %v522
    %524 = vmatpush1.msra.mxu0 %v523
    %v525 = vand.u32 %v64, 4294901760
    %v526 = vsub.f32 %v64, %v525
    %527 = vmatprep.subr.mxu0 %v526
    %v528 = vand.u32 %v63, 4294901760
    %v529 = vsub.f32 %v63, %v528
    %530 = vmatpush1.msra.mxu0 %v529
    %v531 = vand.u32 %v72, 4294901760
    %v532 = vsub.f32 %v72, %v531
    %533 = vmatprep.subr.mxu0 %v532
    %v534 = vand.u32 %v71, 4294901760
    %v535 = vsub.f32 %v71, %v534
    %536 = vmatpush1.msra.mxu0 %v535
    %v537 = vand.u32 %v80, 4294901760
    %v538 = vsub.f32 %v80, %v537
    %539 = vmatprep.subr.mxu0 %v538
    %v540 = vand.u32 %v79, 4294901760
    %v541 = vsub.f32 %v79, %v540
    %542 = vmatpush1.msra.mxu0 %v541
    %v543 = vand.u32 %v88, 4294901760
    %v544 = vsub.f32 %v88, %v543
    %545 = vmatprep.subr.mxu0 %v544
    %v546 = vand.u32 %v87, 4294901760
    %v547 = vsub.f32 %v87, %v546
    %548 = vmatpush1.msra.mxu0 %v547
    %v549 = vand.u32 %v96, 4294901760
    %v550 = vsub.f32 %v96, %v549
    %551 = vmatprep.subr.mxu0 %v550
    %v552 = vand.u32 %v95, 4294901760
    %v553 = vsub.f32 %v95, %v552
    %554 = vmatpush1.msra.mxu0 %v553
    %v555 = vand.u32 %v104, 4294901760
    %v556 = vsub.f32 %v104, %v555
    %557 = vmatprep.subr.mxu0 %v556
    %v558 = vand.u32 %v103, 4294901760
    %v559 = vsub.f32 %v103, %v558
    %560 = vmatpush1.msra.mxu0 %v559
    %v561 = vand.u32 %v112, 4294901760
    %v562 = vsub.f32 %v112, %v561
    %563 = vmatprep.subr.mxu0 %v562
    %v564 = vand.u32 %v111, 4294901760
    %v565 = vsub.f32 %v111, %v564
    %566 = vmatpush1.msra.mxu0 %v565
    %v567 = vand.u32 %v120, 4294901760
    %v568 = vsub.f32 %v120, %v567
    %569 = vmatprep.subr.mxu0 %v568
    %v570 = vand.u32 %v119, 4294901760
    %v571 = vsub.f32 %v119, %v570
    %572 = vmatpush1.msra.mxu0 %v571
    %v573 = vand.u32 %v128, 4294901760
    %v574 = vsub.f32 %v128, %v573
    %575 = vmatprep.subr.mxu0 %v574
    %v576 = vand.u32 %v127, 4294901760
    %v577 = vsub.f32 %v127, %v576
    %578 = vmatpush1.msra.mxu0 %v577
    %v579 = vand.u32 %v136, 4294901760
    %v580 = vsub.f32 %v136, %v579
    %581 = vmatprep.subr.mxu0 %v580
    %v582 = vand.u32 %v135, 4294901760
    %v583 = vsub.f32 %v135, %v582
    %584 = vmatpush1.msra.mxu0 %v583
    %v585 = vand.u32 %v144, 4294901760
    %v586 = vsub.f32 %v144, %v585
    %587 = vmatprep.subr.mxu0 %v586
    %v588 = vand.u32 %v143, 4294901760
    %v589 = vsub.f32 %v143, %v588
    %590 = vmatpush1.msra.mxu0 %v589
    %v591 = vand.u32 %v152, 4294901760
    %v592 = vsub.f32 %v152, %v591
    %593 = vmatprep.subr.mxu0 %v592
    %v594 = vand.u32 %v151, 4294901760
    %v595 = vsub.f32 %v151, %v594
    %596 = vmatpush1.msra.mxu0 %v595
    %v597 = vand.u32 %v160, 4294901760
    %v598 = vsub.f32 %v160, %v597
    %599 = vmatprep.subr.mxu0 %v598
    %v600 = vand.u32 %v159, 4294901760
    %v601 = vsub.f32 %v159, %v600
    %602 = vmatpush1.msra.mxu0 %v601
    %603 = vmatprep.subr.mxu0 0.0
    %604 = vmatpush1.msra.mxu0 0.0
    %605 = vmatprep.subr.mxu0 0.0
    %606 = vmatpush1.msra.mxu0 0.0
    %607 = vmatprep.subr.mxu0 0.0
    %608 = vmatpush1.msra.mxu0 0.0
    %609 = vmatprep.subr.mxu0 0.0
    %610 = vmatpush1.msra.mxu0 0.0
    %611 = vmatprep.subr.mxu0 0.0
    %612 = vmatpush1.msra.mxu0 0.0
    %613 = vmatprep.subr.mxu0 0.0
    %614 = vmatpush1.msra.mxu0 0.0
    %615 = vmatprep.subr.mxu0 0.0
    %616 = vmatpush1.msra.mxu0 0.0
    %617 = vmatprep.subr.mxu0 0.0
    %618 = vmatpush1.msra.mxu0 0.0
    %619 = vmatprep.subr.mxu0 0.0
    %620 = vmatpush1.msra.mxu0 0.0
    %621 = vmatprep.subr.mxu0 0.0
    %622 = vmatpush1.msra.mxu0 0.0
    %623 = vmatprep.subr.mxu0 0.0
    %624 = vmatpush1.msra.mxu0 0.0
    %625 = vmatprep.subr.mxu0 0.0
    %626 = vmatpush1.msra.mxu0 0.0
    %627 = vmatprep.subr.mxu0 0.0
    %628 = vmatpush1.msra.mxu0 0.0
    %629 = vmatprep.subr.mxu0 0.0
    %630 = vmatpush1.msra.mxu0 0.0
    %631 = vmatprep.subr.mxu0 0.0
    %632 = vmatpush1.msra.mxu0 0.0
    %633 = vmatprep.subr.mxu0 0.0
    %634 = vmatpush1.msra.mxu0 0.0
    %635 = vmatprep.mubr.f32.mxu0 0.0
    %v636 = vand.u32 %v38, 4294901760
    %v637 = vsub.f32 %v38, %v636
    %638 = vmatmul.mubr.f32.gmra.mrb[0].mxu0 %v637
    %v639 = vpop.f32.mrb[0].mxu0
    %v640 = vadd.f32 %v503, %v639
    %v641 = vpop.f32.mrb[0].mxu0
    %v642 = vadd.f32 %v505, %v641
    %643 = vdwg.mxu0
    %v644 = vand.u32 %v40, 4294901760
    %645 = vmatprep.subr.mxu0 %v644
    %v646 = vand.u32 %v39, 4294901760
    %647 = vmatpush1.msra.mxu0 %v646
    %v648 = vand.u32 %v48, 4294901760
    %649 = vmatprep.subr.mxu0 %v648
    %v650 = vand.u32 %v47, 4294901760
    %651 = vmatpush1.msra.mxu0 %v650
    %v652 = vand.u32 %v56, 4294901760
    %653 = vmatprep.subr.mxu0 %v652
    %v654 = vand.u32 %v55, 4294901760
    %655 = vmatpush1.msra.mxu0 %v654
    %v656 = vand.u32 %v64, 4294901760
    %657 = vmatprep.subr.mxu0 %v656
    %v658 = vand.u32 %v63, 4294901760
    %659 = vmatpush1.msra.mxu0 %v658
    %v660 = vand.u32 %v72, 4294901760
    %661 = vmatprep.subr.mxu0 %v660
    %v662 = vand.u32 %v71, 4294901760
    %663 = vmatpush1.msra.mxu0 %v662
    %v664 = vand.u32 %v80, 4294901760
    %665 = vmatprep.subr.mxu0 %v664
    %v666 = vand.u32 %v79, 4294901760
    %667 = vmatpush1.msra.mxu0 %v666
    %v668 = vand.u32 %v88, 4294901760
    %669 = vmatprep.subr.mxu0 %v668
    %v670 = vand.u32 %v87, 4294901760
    %671 = vmatpush1.msra.mxu0 %v670
    %v672 = vand.u32 %v96, 4294901760
    %673 = vmatprep.subr.mxu0 %v672
    %v674 = vand.u32 %v95, 4294901760
    %675 = vmatpush1.msra.mxu0 %v674
    %v676 = vand.u32 %v104, 4294901760
    %677 = vmatprep.subr.mxu0 %v676
    %v678 = vand.u32 %v103, 4294901760
    %679 = vmatpush1.msra.mxu0 %v678
    %v680 = vand.u32 %v112, 4294901760
    %681 = vmatprep.subr.mxu0 %v680
    %v682 = vand.u32 %v111, 4294901760
    %683 = vmatpush1.msra.mxu0 %v682
    %v684 = vand.u32 %v120, 4294901760
    %685 = vmatprep.subr.mxu0 %v684
    %v686 = vand.u32 %v119, 4294901760
    %687 = vmatpush1.msra.mxu0 %v686
    %v688 = vand.u32 %v128, 4294901760
    %689 = vmatprep.subr.mxu0 %v688
    %v690 = vand.u32 %v127, 4294901760
    %691 = vmatpush1.msra.mxu0 %v690
    %v692 = vand.u32 %v136, 4294901760
    %693 = vmatprep.subr.mxu0 %v692
    %v694 = vand.u32 %v135, 4294901760
    %695 = vmatpush1.msra.mxu0 %v694
    %v696 = vand.u32 %v144, 4294901760
    %697 = vmatprep.subr.mxu0 %v696
    %v698 = vand.u32 %v143, 4294901760
    %699 = vmatpush1.msra.mxu0 %v698
    %v700 = vand.u32 %v152, 4294901760
    %701 = vmatprep.subr.mxu0 %v700
    %v702 = vand.u32 %v151, 4294901760
    %703 = vmatpush1.msra.mxu0 %v702
    %v704 = vand.u32 %v160, 4294901760
    %705 = vmatprep.subr.mxu0 %v704
    %v706 = vand.u32 %v159, 4294901760
    %707 = vmatpush1.msra.mxu0 %v706
    %708 = vmatprep.subr.mxu0 0.0
    %709 = vmatpush1.msra.mxu0 0.0
    %710 = vmatprep.subr.mxu0 0.0
    %711 = vmatpush1.msra.mxu0 0.0
    %712 = vmatprep.subr.mxu0 0.0
    %713 = vmatpush1.msra.mxu0 0.0
    %714 = vmatprep.subr.mxu0 0.0
    %715 = vmatpush1.msra.mxu0 0.0
    %716 = vmatprep.subr.mxu0 0.0
    %717 = vmatpush1.msra.mxu0 0.0
    %718 = vmatprep.subr.mxu0 0.0
    %719 = vmatpush1.msra.mxu0 0.0
    %720 = vmatprep.subr.mxu0 0.0
    %721 = vmatpush1.msra.mxu0 0.0
    %722 = vmatprep.subr.mxu0 0.0
    %723 = vmatpush1.msra.mxu0 0.0
    %724 = vmatprep.subr.mxu0 0.0
    %725 = vmatpush1.msra.mxu0 0.0
    %726 = vmatprep.subr.mxu0 0.0
    %727 = vmatpush1.msra.mxu0 0.0
    %728 = vmatprep.subr.mxu0 0.0
    %729 = vmatpush1.msra.mxu0 0.0
    %730 = vmatprep.subr.mxu0 0.0
    %731 = vmatpush1.msra.mxu0 0.0
    %732 = vmatprep.subr.mxu0 0.0
    %733 = vmatpush1.msra.mxu0 0.0
    %734 = vmatprep.subr.mxu0 0.0
    %735 = vmatpush1.msra.mxu0 0.0
    %736 = vmatprep.subr.mxu0 0.0
    %737 = vmatpush1.msra.mxu0 0.0
    %738 = vmatprep.subr.mxu0 0.0
    %739 = vmatpush1.msra.mxu0 0.0
    %740 = vmatprep.mubr.f32.mxu0 0.0
    %v741 = vand.u32 %v38, 4294901760
    %v742 = vsub.f32 %v38, %v741
    %v743 = vand.u32 %v742, 4294901760
    %744 = vmatmul.mubr.f32.gmra.mrb[0].mxu0 %v743
    %v745 = vpop.f32.mrb[0].mxu0
    %v746 = vadd.f32 %v640, %v745
    %v747 = vpop.f32.mrb[0].mxu0
    %v748 = vadd.f32 %v642, %v747
    %749 = vdwg.mxu0
    %v750 = vand.u32 %v40, 4294901760
    %v751 = vsub.f32 %v40, %v750
    %v752 = vand.u32 %v751, 4294901760
    %753 = vmatprep.subr.mxu0 %v752
    %v754 = vand.u32 %v39, 4294901760
    %v755 = vsub.f32 %v39, %v754
    %v756 = vand.u32 %v755, 4294901760
    %757 = vmatpush1.msra.mxu0 %v756
    %v758 = vand.u32 %v48, 4294901760
    %v759 = vsub.f32 %v48, %v758
    %v760 = vand.u32 %v759, 4294901760
    %761 = vmatprep.subr.mxu0 %v760
    %v762 = vand.u32 %v47, 4294901760
    %v763 = vsub.f32 %v47, %v762
    %v764 = vand.u32 %v763, 4294901760
    %765 = vmatpush1.msra.mxu0 %v764
    %v766 = vand.u32 %v56, 4294901760
    %v767 = vsub.f32 %v56, %v766
    %v768 = vand.u32 %v767, 4294901760
    %769 = vmatprep.subr.mxu0 %v768
    %v770 = vand.u32 %v55, 4294901760
    %v771 = vsub.f32 %v55, %v770
    %v772 = vand.u32 %v771, 4294901760
    %773 = vmatpush1.msra.mxu0 %v772
    %v774 = vand.u32 %v64, 4294901760
    %v775 = vsub.f32 %v64, %v774
    %v776 = vand.u32 %v775, 4294901760
    %777 = vmatprep.subr.mxu0 %v776
    %v778 = vand.u32 %v63, 4294901760
    %v779 = vsub.f32 %v63, %v778
    %v780 = vand.u32 %v779, 4294901760
    %781 = vmatpush1.msra.mxu0 %v780
    %v782 = vand.u32 %v72, 4294901760
    %v783 = vsub.f32 %v72, %v782
    %v784 = vand.u32 %v783, 4294901760
    %785 = vmatprep.subr.mxu0 %v784
    %v786 = vand.u32 %v71, 4294901760
    %v787 = vsub.f32 %v71, %v786
    %v788 = vand.u32 %v787, 4294901760
    %789 = vmatpush1.msra.mxu0 %v788
    %v790 = vand.u32 %v80, 4294901760
    %v791 = vsub.f32 %v80, %v790
    %v792 = vand.u32 %v791, 4294901760
    %793 = vmatprep.subr.mxu0 %v792
    %v794 = vand.u32 %v79, 4294901760
    %v795 = vsub.f32 %v79, %v794
    %v796 = vand.u32 %v795, 4294901760
    %797 = vmatpush1.msra.mxu0 %v796
    %v798 = vand.u32 %v88, 4294901760
    %v799 = vsub.f32 %v88, %v798
    %v800 = vand.u32 %v799, 4294901760
    %801 = vmatprep.subr.mxu0 %v800
    %v802 = vand.u32 %v87, 4294901760
    %v803 = vsub.f32 %v87, %v802
    %v804 = vand.u32 %v803, 4294901760
    %805 = vmatpush1.msra.mxu0 %v804
    %v806 = vand.u32 %v96, 4294901760
    %v807 = vsub.f32 %v96, %v806
    %v808 = vand.u32 %v807, 4294901760
    %809 = vmatprep.subr.mxu0 %v808
    %v810 = vand.u32 %v95, 4294901760
    %v811 = vsub.f32 %v95, %v810
    %v812 = vand.u32 %v811, 4294901760
    %813 = vmatpush1.msra.mxu0 %v812
    %v814 = vand.u32 %v104, 4294901760
    %v815 = vsub.f32 %v104, %v814
    %v816 = vand.u32 %v815, 4294901760
    %817 = vmatprep.subr.mxu0 %v816
    %v818 = vand.u32 %v103, 4294901760
    %v819 = vsub.f32 %v103, %v818
    %v820 = vand.u32 %v819, 4294901760
    %821 = vmatpush1.msra.mxu0 %v820
    %v822 = vand.u32 %v112, 4294901760
    %v823 = vsub.f32 %v112, %v822
    %v824 = vand.u32 %v823, 4294901760
    %825 = vmatprep.subr.mxu0 %v824
    %v826 = vand.u32 %v111, 4294901760
    %v827 = vsub.f32 %v111, %v826
    %v828 = vand.u32 %v827, 4294901760
    %829 = vmatpush1.msra.mxu0 %v828
    %v830 = vand.u32 %v120, 4294901760
    %v831 = vsub.f32 %v120, %v830
    %v832 = vand.u32 %v831, 4294901760
    %833 = vmatprep.subr.mxu0 %v832
    %v834 = vand.u32 %v119, 4294901760
    %v835 = vsub.f32 %v119, %v834
    %v836 = vand.u32 %v835, 4294901760
    %837 = vmatpush1.msra.mxu0 %v836
    %v838 = vand.u32 %v128, 4294901760
    %v839 = vsub.f32 %v128, %v838
    %v840 = vand.u32 %v839, 4294901760
    %841 = vmatprep.subr.mxu0 %v840
    %v842 = vand.u32 %v127, 4294901760
    %v843 = vsub.f32 %v127, %v842
    %v844 = vand.u32 %v843, 4294901760
    %845 = vmatpush1.msra.mxu0 %v844
    %v846 = vand.u32 %v136, 4294901760
    %v847 = vsub.f32 %v136, %v846
    %v848 = vand.u32 %v847, 4294901760
    %849 = vmatprep.subr.mxu0 %v848
    %v850 = vand.u32 %v135, 4294901760
    %v851 = vsub.f32 %v135, %v850
    %v852 = vand.u32 %v851, 4294901760
    %853 = vmatpush1.msra.mxu0 %v852
    %v854 = vand.u32 %v144, 4294901760
    %v855 = vsub.f32 %v144, %v854
    %v856 = vand.u32 %v855, 4294901760
    %857 = vmatprep.subr.mxu0 %v856
    %v858 = vand.u32 %v143, 4294901760
    %v859 = vsub.f32 %v143, %v858
    %v860 = vand.u32 %v859, 4294901760
    %861 = vmatpush1.msra.mxu0 %v860
    %v862 = vand.u32 %v152, 4294901760
    %v863 = vsub.f32 %v152, %v862
    %v864 = vand.u32 %v863, 4294901760
    %865 = vmatprep.subr.mxu0 %v864
    %v866 = vand.u32 %v151, 4294901760
    %v867 = vsub.f32 %v151, %v866
    %v868 = vand.u32 %v867, 4294901760
    %869 = vmatpush1.msra.mxu0 %v868
    %v870 = vand.u32 %v160, 4294901760
    %v871 = vsub.f32 %v160, %v870
    %v872 = vand.u32 %v871, 4294901760
    %873 = vmatprep.subr.mxu0 %v872
    %v874 = vand.u32 %v159, 4294901760
    %v875 = vsub.f32 %v159, %v874
    %v876 = vand.u32 %v875, 4294901760
    %877 = vmatpush1.msra.mxu0 %v876
    %878 = vmatprep.subr.mxu0 0.0
    %879 = vmatpush1.msra.mxu0 0.0
    %880 = vmatprep.subr.mxu0 0.0
    %881 = vmatpush1.msra.mxu0 0.0
    %882 = vmatprep.subr.mxu0 0.0
    %883 = vmatpush1.msra.mxu0 0.0
    %884 = vmatprep.subr.mxu0 0.0
    %885 = vmatpush1.msra.mxu0 0.0
    %886 = vmatprep.subr.mxu0 0.0
    %887 = vmatpush1.msra.mxu0 0.0
    %888 = vmatprep.subr.mxu0 0.0
    %889 = vmatpush1.msra.mxu0 0.0
    %890 = vmatprep.subr.mxu0 0.0
    %891 = vmatpush1.msra.mxu0 0.0
    %892 = vmatprep.subr.mxu0 0.0
    %893 = vmatpush1.msra.mxu0 0.0
    %894 = vmatprep.subr.mxu0 0.0
    %895 = vmatpush1.msra.mxu0 0.0
    %896 = vmatprep.subr.mxu0 0.0
    %897 = vmatpush1.msra.mxu0 0.0
    %898 = vmatprep.subr.mxu0 0.0
    %899 = vmatpush1.msra.mxu0 0.0
    %900 = vmatprep.subr.mxu0 0.0
    %901 = vmatpush1.msra.mxu0 0.0
    %902 = vmatprep.subr.mxu0 0.0
    %903 = vmatpush1.msra.mxu0 0.0
    %904 = vmatprep.subr.mxu0 0.0
    %905 = vmatpush1.msra.mxu0 0.0
    %906 = vmatprep.subr.mxu0 0.0
    %907 = vmatpush1.msra.mxu0 0.0
    %908 = vmatprep.subr.mxu0 0.0
    %909 = vmatpush1.msra.mxu0 0.0
    %910 = vmatprep.mubr.f32.mxu0 0.0
    %v911 = vand.u32 %v38, 4294901760
    %912 = vmatmul.mubr.f32.gmra.mrb[0].mxu0 %v911
    %v913 = vpop.f32.mrb[0].mxu0
    %v914 = vadd.f32 %v746, %v913
    %v915 = vpop.f32.mrb[0].mxu0
    %v916 = vadd.f32 %v748, %v915
    %917 = vdwg.mxu0
    %v918 = vand.u32 %v40, 4294901760
    %919 = vmatprep.subr.mxu0 %v918
    %v920 = vand.u32 %v39, 4294901760
    %921 = vmatpush1.msra.mxu0 %v920
    %v922 = vand.u32 %v48, 4294901760
    %923 = vmatprep.subr.mxu0 %v922
    %v924 = vand.u32 %v47, 4294901760
    %925 = vmatpush1.msra.mxu0 %v924
    %v926 = vand.u32 %v56, 4294901760
    %927 = vmatprep.subr.mxu0 %v926
    %v928 = vand.u32 %v55, 4294901760
    %929 = vmatpush1.msra.mxu0 %v928
    %v930 = vand.u32 %v64, 4294901760
    %931 = vmatprep.subr.mxu0 %v930
    %v932 = vand.u32 %v63, 4294901760
    %933 = vmatpush1.msra.mxu0 %v932
    %v934 = vand.u32 %v72, 4294901760
    %935 = vmatprep.subr.mxu0 %v934
    %v936 = vand.u32 %v71, 4294901760
    %937 = vmatpush1.msra.mxu0 %v936
    %v938 = vand.u32 %v80, 4294901760
    %939 = vmatprep.subr.mxu0 %v938
    %v940 = vand.u32 %v79, 4294901760
    %941 = vmatpush1.msra.mxu0 %v940
    %v942 = vand.u32 %v88, 4294901760
    %943 = vmatprep.subr.mxu0 %v942
    %v944 = vand.u32 %v87, 4294901760
    %945 = vmatpush1.msra.mxu0 %v944
    %v946 = vand.u32 %v96, 4294901760
    %947 = vmatprep.subr.mxu0 %v946
    %v948 = vand.u32 %v95, 4294901760
    %949 = vmatpush1.msra.mxu0 %v948
    %v950 = vand.u32 %v104, 4294901760
    %951 = vmatprep.subr.mxu0 %v950
    %v952 = vand.u32 %v103, 4294901760
    %953 = vmatpush1.msra.mxu0 %v952
    %v954 = vand.u32 %v112, 4294901760
    %955 = vmatprep.subr.mxu0 %v954
    %v956 = vand.u32 %v111, 4294901760
    %957 = vmatpush1.msra.mxu0 %v956
    %v958 = vand.u32 %v120, 4294901760
    %959 = vmatprep.subr.mxu0 %v958
    %v960 = vand.u32 %v119, 4294901760
    %961 = vmatpush1.msra.mxu0 %v960
    %v962 = vand.u32 %v128, 4294901760
    %963 = vmatprep.subr.mxu0 %v962
    %v964 = vand.u32 %v127, 4294901760
    %965 = vmatpush1.msra.mxu0 %v964
    %v966 = vand.u32 %v136, 4294901760
    %967 = vmatprep.subr.mxu0 %v966
    %v968 = vand.u32 %v135, 4294901760
    %969 = vmatpush1.msra.mxu0 %v968
    %v970 = vand.u32 %v144, 4294901760
    %971 = vmatprep.subr.mxu0 %v970
    %v972 = vand.u32 %v143, 4294901760
    %973 = vmatpush1.msra.mxu0 %v972
    %v974 = vand.u32 %v152, 4294901760
    %975 = vmatprep.subr.mxu0 %v974
    %v976 = vand.u32 %v151, 4294901760
    %977 = vmatpush1.msra.mxu0 %v976
    %v978 = vand.u32 %v160, 4294901760
    %979 = vmatprep.subr.mxu0 %v978
    %v980 = vand.u32 %v159, 4294901760
    %981 = vmatpush1.msra.mxu0 %v980
    %982 = vmatprep.subr.mxu0 0.0
    %983 = vmatpush1.msra.mxu0 0.0
    %984 = vmatprep.subr.mxu0 0.0
    %985 = vmatpush1.msra.mxu0 0.0
    %986 = vmatprep.subr.mxu0 0.0
    %987 = vmatpush1.msra.mxu0 0.0
    %988 = vmatprep.subr.mxu0 0.0
    %989 = vmatpush1.msra.mxu0 0.0
    %990 = vmatprep.subr.mxu0 0.0
    %991 = vmatpush1.msra.mxu0 0.0
    %992 = vmatprep.subr.mxu0 0.0
    %993 = vmatpush1.msra.mxu0 0.0
    %994 = vmatprep.subr.mxu0 0.0
    %995 = vmatpush1.msra.mxu0 0.0
    %996 = vmatprep.subr.mxu0 0.0
    %997 = vmatpush1.msra.mxu0 0.0
    %998 = vmatprep.subr.mxu0 0.0
    %999 = vmatpush1.msra.mxu0 0.0
    %1000 = vmatprep.subr.mxu0 0.0
    %1001 = vmatpush1.msra.mxu0 0.0
    %1002 = vmatprep.subr.mxu0 0.0
    %1003 = vmatpush1.msra.mxu0 0.0
    %1004 = vmatprep.subr.mxu0 0.0
    %1005 = vmatpush1.msra.mxu0 0.0
    %1006 = vmatprep.subr.mxu0 0.0
    %1007 = vmatpush1.msra.mxu0 0.0
    %1008 = vmatprep.subr.mxu0 0.0
    %1009 = vmatpush1.msra.mxu0 0.0
    %1010 = vmatprep.subr.mxu0 0.0
    %1011 = vmatpush1.msra.mxu0 0.0
    %1012 = vmatprep.subr.mxu0 0.0
    %1013 = vmatpush1.msra.mxu0 0.0
    %1014 = vmatprep.mubr.f32.mxu0 0.0
    %v1015 = vand.u32 %v38, 4294901760
    %1016 = vmatmul.mubr.f32.gmra.mrb[0].mxu0 %v1015
    %v1017 = vpop.f32.mrb[0].mxu0
    %v1018 = vadd.f32 %v914, %v1017
    %v1019 = vpop.f32.mrb[0].mxu0
    %v1020 = vadd.f32 %v916, %v1019
    %1021 = vdwg.mxu0
    %v1022 = vand.u32 %v42, 4294901760
    %1023 = vmatprep.subr.mxu0 %v1022
    %v1024 = vand.u32 %v41, 4294901760
    %1025 = vmatpush1.msra.mxu0 %v1024
    %v1026 = vand.u32 %v50, 4294901760
    %1027 = vmatprep.subr.mxu0 %v1026
    %v1028 = vand.u32 %v49, 4294901760
    %1029 = vmatpush1.msra.mxu0 %v1028
    %v1030 = vand.u32 %v58, 4294901760
    %1031 = vmatprep.subr.mxu0 %v1030
    %v1032 = vand.u32 %v57, 4294901760
    %1033 = vmatpush1.msra.mxu0 %v1032
    %v1034 = vand.u32 %v66, 4294901760
    %1035 = vmatprep.subr.mxu0 %v1034
    %v1036 = vand.u32 %v65, 4294901760
    %1037 = vmatpush1.msra.mxu0 %v1036
    %v1038 = vand.u32 %v74, 4294901760
    %1039 = vmatprep.subr.mxu0 %v1038
    %v1040 = vand.u32 %v73, 4294901760
    %1041 = vmatpush1.msra.mxu0 %v1040
    %v1042 = vand.u32 %v82, 4294901760
    %1043 = vmatprep.subr.mxu0 %v1042
    %v1044 = vand.u32 %v81, 4294901760
    %1045 = vmatpush1.msra.mxu0 %v1044
    %v1046 = vand.u32 %v90, 4294901760
    %1047 = vmatprep.subr.mxu0 %v1046
    %v1048 = vand.u32 %v89, 4294901760
    %1049 = vmatpush1.msra.mxu0 %v1048
    %v1050 = vand.u32 %v98, 4294901760
    %1051 = vmatprep.subr.mxu0 %v1050
    %v1052 = vand.u32 %v97, 4294901760
    %1053 = vmatpush1.msra.mxu0 %v1052
    %v1054 = vand.u32 %v106, 4294901760
    %1055 = vmatprep.subr.mxu0 %v1054
    %v1056 = vand.u32 %v105, 4294901760
    %1057 = vmatpush1.msra.mxu0 %v1056
    %v1058 = vand.u32 %v114, 4294901760
    %1059 = vmatprep.subr.mxu0 %v1058
    %v1060 = vand.u32 %v113, 4294901760
    %1061 = vmatpush1.msra.mxu0 %v1060
    %v1062 = vand.u32 %v122, 4294901760
    %1063 = vmatprep.subr.mxu0 %v1062
    %v1064 = vand.u32 %v121, 4294901760
    %1065 = vmatpush1.msra.mxu0 %v1064
    %v1066 = vand.u32 %v130, 4294901760
    %1067 = vmatprep.subr.mxu0 %v1066
    %v1068 = vand.u32 %v129, 4294901760
    %1069 = vmatpush1.msra.mxu0 %v1068
    %v1070 = vand.u32 %v138, 4294901760
    %1071 = vmatprep.subr.mxu0 %v1070
    %v1072 = vand.u32 %v137, 4294901760
    %1073 = vmatpush1.msra.mxu0 %v1072
    %v1074 = vand.u32 %v146, 4294901760
    %1075 = vmatprep.subr.mxu0 %v1074
    %v1076 = vand.u32 %v145, 4294901760
    %1077 = vmatpush1.msra.mxu0 %v1076
    %v1078 = vand.u32 %v154, 4294901760
    %1079 = vmatprep.subr.mxu0 %v1078
    %v1080 = vand.u32 %v153, 4294901760
    %1081 = vmatpush1.msra.mxu0 %v1080
    %v1082 = vand.u32 %v162, 4294901760
    %1083 = vmatprep.subr.mxu0 %v1082
    %v1084 = vand.u32 %v161, 4294901760
    %1085 = vmatpush1.msra.mxu0 %v1084
    %1086 = vmatprep.subr.mxu0 0.0
    %1087 = vmatpush1.msra.mxu0 0.0
    %1088 = vmatprep.subr.mxu0 0.0
    %1089 = vmatpush1.msra.mxu0 0.0
    %1090 = vmatprep.subr.mxu0 0.0
    %1091 = vmatpush1.msra.mxu0 0.0
    %1092 = vmatprep.subr.mxu0 0.0
    %1093 = vmatpush1.msra.mxu0 0.0
    %1094 = vmatprep.subr.mxu0 0.0
    %1095 = vmatpush1.msra.mxu0 0.0
    %1096 = vmatprep.subr.mxu0 0.0
    %1097 = vmatpush1.msra.mxu0 0.0
    %1098 = vmatprep.subr.mxu0 0.0
    %1099 = vmatpush1.msra.mxu0 0.0
    %1100 = vmatprep.subr.mxu0 0.0
    %1101 = vmatpush1.msra.mxu0 0.0
    %1102 = vmatprep.subr.mxu0 0.0
    %1103 = vmatpush1.msra.mxu0 0.0
    %1104 = vmatprep.subr.mxu0 0.0
    %1105 = vmatpush1.msra.mxu0 0.0
    %1106 = vmatprep.subr.mxu0 0.0
    %1107 = vmatpush1.msra.mxu0 0.0
    %1108 = vmatprep.subr.mxu0 0.0
    %1109 = vmatpush1.msra.mxu0 0.0
    %1110 = vmatprep.subr.mxu0 0.0
    %1111 = vmatpush1.msra.mxu0 0.0
    %1112 = vmatprep.subr.mxu0 0.0
    %1113 = vmatpush1.msra.mxu0 0.0
    %1114 = vmatprep.subr.mxu0 0.0
    %1115 = vmatpush1.msra.mxu0 0.0
    %1116 = vmatprep.subr.mxu0 0.0
    %1117 = vmatpush1.msra.mxu0 0.0
    %1118 = vmatprep.mubr.f32.mxu0 0.0
    %v1119 = vand.u32 %v38, 4294901760
    %v1120 = vsub.f32 %v38, %v1119
    %v1121 = vand.u32 %v1120, 4294901760
    %v1122 = vsub.f32 %v1120, %v1121
    %v1123 = vand.u32 %v1122, 4294901760
    %1124 = vmatmul.mubr.f32.gmra.mrb[0].mxu0 %v1123
    %v1125 = vpop.f32.mrb[0].mxu0
    %v1126 = vadd.f32 0.0, %v1125
    %v1127 = vpop.f32.mrb[0].mxu0
    %v1128 = vadd.f32 0.0, %v1127
    %1129 = vdwg.mxu0
    %v1130 = vand.u32 %v42, 4294901760
    %v1131 = vsub.f32 %v42, %v1130
    %v1132 = vand.u32 %v1131, 4294901760
    %v1133 = vsub.f32 %v1131, %v1132
    %v1134 = vand.u32 %v1133, 4294901760
    %1135 = vmatprep.subr.mxu0 %v1134
    %v1136 = vand.u32 %v41, 4294901760
    %v1137 = vsub.f32 %v41, %v1136
    %v1138 = vand.u32 %v1137, 4294901760
    %v1139 = vsub.f32 %v1137, %v1138
    %v1140 = vand.u32 %v1139, 4294901760
    %1141 = vmatpush1.msra.mxu0 %v1140
    %v1142 = vand.u32 %v50, 4294901760
    %v1143 = vsub.f32 %v50, %v1142
    %v1144 = vand.u32 %v1143, 4294901760
    %v1145 = vsub.f32 %v1143, %v1144
    %v1146 = vand.u32 %v1145, 4294901760
    %1147 = vmatprep.subr.mxu0 %v1146
    %v1148 = vand.u32 %v49, 4294901760
    %v1149 = vsub.f32 %v49, %v1148
    %v1150 = vand.u32 %v1149, 4294901760
    %v1151 = vsub.f32 %v1149, %v1150
    %v1152 = vand.u32 %v1151, 4294901760
    %1153 = vmatpush1.msra.mxu0 %v1152
    %v1154 = vand.u32 %v58, 4294901760
    %v1155 = vsub.f32 %v58, %v1154
    %v1156 = vand.u32 %v1155, 4294901760
    %v1157 = vsub.f32 %v1155, %v1156
    %v1158 = vand.u32 %v1157, 4294901760
    %1159 = vmatprep.subr.mxu0 %v1158
    %v1160 = vand.u32 %v57, 4294901760
    %v1161 = vsub.f32 %v57, %v1160
    %v1162 = vand.u32 %v1161, 4294901760
    %v1163 = vsub.f32 %v1161, %v1162
    %v1164 = vand.u32 %v1163, 4294901760
    %1165 = vmatpush1.msra.mxu0 %v1164
    %v1166 = vand.u32 %v66, 4294901760
    %v1167 = vsub.f32 %v66, %v1166
    %v1168 = vand.u32 %v1167, 4294901760
    %v1169 = vsub.f32 %v1167, %v1168
    %v1170 = vand.u32 %v1169, 4294901760
    %1171 = vmatprep.subr.mxu0 %v1170
    %v1172 = vand.u32 %v65, 4294901760
    %v1173 = vsub.f32 %v65, %v1172
    %v1174 = vand.u32 %v1173, 4294901760
    %v1175 = vsub.f32 %v1173, %v1174
    %v1176 = vand.u32 %v1175, 4294901760
    %1177 = vmatpush1.msra.mxu0 %v1176
    %v1178 = vand.u32 %v74, 4294901760
    %v1179 = vsub.f32 %v74, %v1178
    %v1180 = vand.u32 %v1179, 4294901760
    %v1181 = vsub.f32 %v1179, %v1180
    %v1182 = vand.u32 %v1181, 4294901760
    %1183 = vmatprep.subr.mxu0 %v1182
    %v1184 = vand.u32 %v73, 4294901760
    %v1185 = vsub.f32 %v73, %v1184
    %v1186 = vand.u32 %v1185, 4294901760
    %v1187 = vsub.f32 %v1185, %v1186
    %v1188 = vand.u32 %v1187, 4294901760
    %1189 = vmatpush1.msra.mxu0 %v1188
    %v1190 = vand.u32 %v82, 4294901760
    %v1191 = vsub.f32 %v82, %v1190
    %v1192 = vand.u32 %v1191, 4294901760
    %v1193 = vsub.f32 %v1191, %v1192
    %v1194 = vand.u32 %v1193, 4294901760
    %1195 = vmatprep.subr.mxu0 %v1194
    %v1196 = vand.u32 %v81, 4294901760
    %v1197 = vsub.f32 %v81, %v1196
    %v1198 = vand.u32 %v1197, 4294901760
    %v1199 = vsub.f32 %v1197, %v1198
    %v1200 = vand.u32 %v1199, 4294901760
    %1201 = vmatpush1.msra.mxu0 %v1200
    %v1202 = vand.u32 %v90, 4294901760
    %v1203 = vsub.f32 %v90, %v1202
    %v1204 = vand.u32 %v1203, 4294901760
    %v1205 = vsub.f32 %v1203, %v1204
    %v1206 = vand.u32 %v1205, 4294901760
    %1207 = vmatprep.subr.mxu0 %v1206
    %v1208 = vand.u32 %v89, 4294901760
    %v1209 = vsub.f32 %v89, %v1208
    %v1210 = vand.u32 %v1209, 4294901760
    %v1211 = vsub.f32 %v1209, %v1210
    %v1212 = vand.u32 %v1211, 4294901760
    %1213 = vmatpush1.msra.mxu0 %v1212
    %v1214 = vand.u32 %v98, 4294901760
    %v1215 = vsub.f32 %v98, %v1214
    %v1216 = vand.u32 %v1215, 4294901760
    %v1217 = vsub.f32 %v1215, %v1216
    %v1218 = vand.u32 %v1217, 4294901760
    %1219 = vmatprep.subr.mxu0 %v1218
    %v1220 = vand.u32 %v97, 4294901760
    %v1221 = vsub.f32 %v97, %v1220
    %v1222 = vand.u32 %v1221, 4294901760
    %v1223 = vsub.f32 %v1221, %v1222
    %v1224 = vand.u32 %v1223, 4294901760
    %1225 = vmatpush1.msra.mxu0 %v1224
    %v1226 = vand.u32 %v106, 4294901760
    %v1227 = vsub.f32 %v106, %v1226
    %v1228 = vand.u32 %v1227, 4294901760
    %v1229 = vsub.f32 %v1227, %v1228
    %v1230 = vand.u32 %v1229, 4294901760
    %1231 = vmatprep.subr.mxu0 %v1230
    %v1232 = vand.u32 %v105, 4294901760
    %v1233 = vsub.f32 %v105, %v1232
    %v1234 = vand.u32 %v1233, 4294901760
    %v1235 = vsub.f32 %v1233, %v1234
    %v1236 = vand.u32 %v1235, 4294901760
    %1237 = vmatpush1.msra.mxu0 %v1236
    %v1238 = vand.u32 %v114, 4294901760
    %v1239 = vsub.f32 %v114, %v1238
    %v1240 = vand.u32 %v1239, 4294901760
    %v1241 = vsub.f32 %v1239, %v1240
    %v1242 = vand.u32 %v1241, 4294901760
    %1243 = vmatprep.subr.mxu0 %v1242
    %v1244 = vand.u32 %v113, 4294901760
    %v1245 = vsub.f32 %v113, %v1244
    %v1246 = vand.u32 %v1245, 4294901760
    %v1247 = vsub.f32 %v1245, %v1246
    %v1248 = vand.u32 %v1247, 4294901760
    %1249 = vmatpush1.msra.mxu0 %v1248
    %v1250 = vand.u32 %v122, 4294901760
    %v1251 = vsub.f32 %v122, %v1250
    %v1252 = vand.u32 %v1251, 4294901760
    %v1253 = vsub.f32 %v1251, %v1252
    %v1254 = vand.u32 %v1253, 4294901760
    %1255 = vmatprep.subr.mxu0 %v1254
    %v1256 = vand.u32 %v121, 4294901760
    %v1257 = vsub.f32 %v121, %v1256
    %v1258 = vand.u32 %v1257, 4294901760
    %v1259 = vsub.f32 %v1257, %v1258
    %v1260 = vand.u32 %v1259, 4294901760
    %1261 = vmatpush1.msra.mxu0 %v1260
    %v1262 = vand.u32 %v130, 4294901760
    %v1263 = vsub.f32 %v130, %v1262
    %v1264 = vand.u32 %v1263, 4294901760
    %v1265 = vsub.f32 %v1263, %v1264
    %v1266 = vand.u32 %v1265, 4294901760
    %1267 = vmatprep.subr.mxu0 %v1266
    %v1268 = vand.u32 %v129, 4294901760
    %v1269 = vsub.f32 %v129, %v1268
    %v1270 = vand.u32 %v1269, 4294901760
    %v1271 = vsub.f32 %v1269, %v1270
    %v1272 = vand.u32 %v1271, 4294901760
    %1273 = vmatpush1.msra.mxu0 %v1272
    %v1274 = vand.u32 %v138, 4294901760
    %v1275 = vsub.f32 %v138, %v1274
    %v1276 = vand.u32 %v1275, 4294901760
    %v1277 = vsub.f32 %v1275, %v1276
    %v1278 = vand.u32 %v1277, 4294901760
    %1279 = vmatprep.subr.mxu0 %v1278
    %v1280 = vand.u32 %v137, 4294901760
    %v1281 = vsub.f32 %v137, %v1280
    %v1282 = vand.u32 %v1281, 4294901760
    %v1283 = vsub.f32 %v1281, %v1282
    %v1284 = vand.u32 %v1283, 4294901760
    %1285 = vmatpush1.msra.mxu0 %v1284
    %v1286 = vand.u32 %v146, 4294901760
    %v1287 = vsub.f32 %v146, %v1286
    %v1288 = vand.u32 %v1287, 4294901760
    %v1289 = vsub.f32 %v1287, %v1288
    %v1290 = vand.u32 %v1289, 4294901760
    %1291 = vmatprep.subr.mxu0 %v1290
    %v1292 = vand.u32 %v145, 4294901760
    %v1293 = vsub.f32 %v145, %v1292
    %v1294 = vand.u32 %v1293, 4294901760
    %v1295 = vsub.f32 %v1293, %v1294
    %v1296 = vand.u32 %v1295, 4294901760
    %1297 = vmatpush1.msra.mxu0 %v1296
    %v1298 = vand.u32 %v154, 4294901760
    %v1299 = vsub.f32 %v154, %v1298
    %v1300 = vand.u32 %v1299, 4294901760
    %v1301 = vsub.f32 %v1299, %v1300
    %v1302 = vand.u32 %v1301, 4294901760
    %1303 = vmatprep.subr.mxu0 %v1302
    %v1304 = vand.u32 %v153, 4294901760
    %v1305 = vsub.f32 %v153, %v1304
    %v1306 = vand.u32 %v1305, 4294901760
    %v1307 = vsub.f32 %v1305, %v1306
    %v1308 = vand.u32 %v1307, 4294901760
    %1309 = vmatpush1.msra.mxu0 %v1308
    %v1310 = vand.u32 %v162, 4294901760
    %v1311 = vsub.f32 %v162, %v1310
    %v1312 = vand.u32 %v1311, 4294901760
    %v1313 = vsub.f32 %v1311, %v1312
    %v1314 = vand.u32 %v1313, 4294901760
    %1315 = vmatprep.subr.mxu0 %v1314
    %v1316 = vand.u32 %v161, 4294901760
    %v1317 = vsub.f32 %v161, %v1316
    %v1318 = vand.u32 %v1317, 4294901760
    %v1319 = vsub.f32 %v1317, %v1318
    %v1320 = vand.u32 %v1319, 4294901760
    %1321 = vmatpush1.msra.mxu0 %v1320
    %1322 = vmatprep.subr.mxu0 0.0
    %1323 = vmatpush1.msra.mxu0 0.0
    %1324 = vmatprep.subr.mxu0 0.0
    %1325 = vmatpush1.msra.mxu0 0.0
    %1326 = vmatprep.subr.mxu0 0.0
    %1327 = vmatpush1.msra.mxu0 0.0
    %1328 = vmatprep.subr.mxu0 0.0
    %1329 = vmatpush1.msra.mxu0 0.0
    %1330 = vmatprep.subr.mxu0 0.0
    %1331 = vmatpush1.msra.mxu0 0.0
    %1332 = vmatprep.subr.mxu0 0.0
    %1333 = vmatpush1.msra.mxu0 0.0
    %1334 = vmatprep.subr.mxu0 0.0
    %1335 = vmatpush1.msra.mxu0 0.0
    %1336 = vmatprep.subr.mxu0 0.0
    %1337 = vmatpush1.msra.mxu0 0.0
    %1338 = vmatprep.subr.mxu0 0.0
    %1339 = vmatpush1.msra.mxu0 0.0
    %1340 = vmatprep.subr.mxu0 0.0
    %1341 = vmatpush1.msra.mxu0 0.0
    %1342 = vmatprep.subr.mxu0 0.0
    %1343 = vmatpush1.msra.mxu0 0.0
    %1344 = vmatprep.subr.mxu0 0.0
    %1345 = vmatpush1.msra.mxu0 0.0
    %1346 = vmatprep.subr.mxu0 0.0
    %1347 = vmatpush1.msra.mxu0 0.0
    %1348 = vmatprep.subr.mxu0 0.0
    %1349 = vmatpush1.msra.mxu0 0.0
    %1350 = vmatprep.subr.mxu0 0.0
    %1351 = vmatpush1.msra.mxu0 0.0
    %1352 = vmatprep.subr.mxu0 0.0
    %1353 = vmatpush1.msra.mxu0 0.0
    %1354 = vmatprep.mubr.f32.mxu0 0.0
    %v1355 = vand.u32 %v38, 4294901760
    %1356 = vmatmul.mubr.f32.gmra.mrb[0].mxu0 %v1355
    %v1357 = vpop.f32.mrb[0].mxu0
    %v1358 = vadd.f32 %v1126, %v1357
    %v1359 = vpop.f32.mrb[0].mxu0
    %v1360 = vadd.f32 %v1128, %v1359
    %1361 = vdwg.mxu0
    %v1362 = vand.u32 %v42, 4294901760
    %v1363 = vsub.f32 %v42, %v1362
    %1364 = vmatprep.subr.mxu0 %v1363
    %v1365 = vand.u32 %v41, 4294901760
    %v1366 = vsub.f32 %v41, %v1365
    %1367 = vmatpush1.msra.mxu0 %v1366
    %v1368 = vand.u32 %v50, 4294901760
    %v1369 = vsub.f32 %v50, %v1368
    %1370 = vmatprep.subr.mxu0 %v1369
    %v1371 = vand.u32 %v49, 4294901760
    %v1372 = vsub.f32 %v49, %v1371
    %1373 = vmatpush1.msra.mxu0 %v1372
    %v1374 = vand.u32 %v58, 4294901760
    %v1375 = vsub.f32 %v58, %v1374
    %1376 = vmatprep.subr.mxu0 %v1375
    %v1377 = vand.u32 %v57, 4294901760
    %v1378 = vsub.f32 %v57, %v1377
    %1379 = vmatpush1.msra.mxu0 %v1378
    %v1380 = vand.u32 %v66, 4294901760
    %v1381 = vsub.f32 %v66, %v1380
    %1382 = vmatprep.subr.mxu0 %v1381
    %v1383 = vand.u32 %v65, 4294901760
    %v1384 = vsub.f32 %v65, %v1383
    %1385 = vmatpush1.msra.mxu0 %v1384
    %v1386 = vand.u32 %v74, 4294901760
    %v1387 = vsub.f32 %v74, %v1386
    %1388 = vmatprep.subr.mxu0 %v1387
    %v1389 = vand.u32 %v73, 4294901760
    %v1390 = vsub.f32 %v73, %v1389
    %1391 = vmatpush1.msra.mxu0 %v1390
    %v1392 = vand.u32 %v82, 4294901760
    %v1393 = vsub.f32 %v82, %v1392
    %1394 = vmatprep.subr.mxu0 %v1393
    %v1395 = vand.u32 %v81, 4294901760
    %v1396 = vsub.f32 %v81, %v1395
    %1397 = vmatpush1.msra.mxu0 %v1396
    %v1398 = vand.u32 %v90, 4294901760
    %v1399 = vsub.f32 %v90, %v1398
    %1400 = vmatprep.subr.mxu0 %v1399
    %v1401 = vand.u32 %v89, 4294901760
    %v1402 = vsub.f32 %v89, %v1401
    %1403 = vmatpush1.msra.mxu0 %v1402
    %v1404 = vand.u32 %v98, 4294901760
    %v1405 = vsub.f32 %v98, %v1404
    %1406 = vmatprep.subr.mxu0 %v1405
    %v1407 = vand.u32 %v97, 4294901760
    %v1408 = vsub.f32 %v97, %v1407
    %1409 = vmatpush1.msra.mxu0 %v1408
    %v1410 = vand.u32 %v106, 4294901760
    %v1411 = vsub.f32 %v106, %v1410
    %1412 = vmatprep.subr.mxu0 %v1411
    %v1413 = vand.u32 %v105, 4294901760
    %v1414 = vsub.f32 %v105, %v1413
    %1415 = vmatpush1.msra.mxu0 %v1414
    %v1416 = vand.u32 %v114, 4294901760
    %v1417 = vsub.f32 %v114, %v1416
    %1418 = vmatprep.subr.mxu0 %v1417
    %v1419 = vand.u32 %v113, 4294901760
    %v1420 = vsub.f32 %v113, %v1419
    %1421 = vmatpush1.msra.mxu0 %v1420
    %v1422 = vand.u32 %v122, 4294901760
    %v1423 = vsub.f32 %v122, %v1422
    %1424 = vmatprep.subr.mxu0 %v1423
    %v1425 = vand.u32 %v121, 4294901760
    %v1426 = vsub.f32 %v121, %v1425
    %1427 = vmatpush1.msra.mxu0 %v1426
    %v1428 = vand.u32 %v130, 4294901760
    %v1429 = vsub.f32 %v130, %v1428
    %1430 = vmatprep.subr.mxu0 %v1429
    %v1431 = vand.u32 %v129, 4294901760
    %v1432 = vsub.f32 %v129, %v1431
    %1433 = vmatpush1.msra.mxu0 %v1432
    %v1434 = vand.u32 %v138, 4294901760
    %v1435 = vsub.f32 %v138, %v1434
    %1436 = vmatprep.subr.mxu0 %v1435
    %v1437 = vand.u32 %v137, 4294901760
    %v1438 = vsub.f32 %v137, %v1437
    %1439 = vmatpush1.msra.mxu0 %v1438
    %v1440 = vand.u32 %v146, 4294901760
    %v1441 = vsub.f32 %v146, %v1440
    %1442 = vmatprep.subr.mxu0 %v1441
    %v1443 = vand.u32 %v145, 4294901760
    %v1444 = vsub.f32 %v145, %v1443
    %1445 = vmatpush1.msra.mxu0 %v1444
    %v1446 = vand.u32 %v154, 4294901760
    %v1447 = vsub.f32 %v154, %v1446
    %1448 = vmatprep.subr.mxu0 %v1447
    %v1449 = vand.u32 %v153, 4294901760
    %v1450 = vsub.f32 %v153, %v1449
    %1451 = vmatpush1.msra.mxu0 %v1450
    %v1452 = vand.u32 %v162, 4294901760
    %v1453 = vsub.f32 %v162, %v1452
    %1454 = vmatprep.subr.mxu0 %v1453
    %v1455 = vand.u32 %v161, 4294901760
    %v1456 = vsub.f32 %v161, %v1455
    %1457 = vmatpush1.msra.mxu0 %v1456
    %1458 = vmatprep.subr.mxu0 0.0
    %1459 = vmatpush1.msra.mxu0 0.0
    %1460 = vmatprep.subr.mxu0 0.0
    %1461 = vmatpush1.msra.mxu0 0.0
    %1462 = vmatprep.subr.mxu0 0.0
    %1463 = vmatpush1.msra.mxu0 0.0
    %1464 = vmatprep.subr.mxu0 0.0
    %1465 = vmatpush1.msra.mxu0 0.0
    %1466 = vmatprep.subr.mxu0 0.0
    %1467 = vmatpush1.msra.mxu0 0.0
    %1468 = vmatprep.subr.mxu0 0.0
    %1469 = vmatpush1.msra.mxu0 0.0
    %1470 = vmatprep.subr.mxu0 0.0
    %1471 = vmatpush1.msra.mxu0 0.0
    %1472 = vmatprep.subr.mxu0 0.0
    %1473 = vmatpush1.msra.mxu0 0.0
    %1474 = vmatprep.subr.mxu0 0.0
    %1475 = vmatpush1.msra.mxu0 0.0
    %1476 = vmatprep.subr.mxu0 0.0
    %1477 = vmatpush1.msra.mxu0 0.0
    %1478 = vmatprep.subr.mxu0 0.0
    %1479 = vmatpush1.msra.mxu0 0.0
    %1480 = vmatprep.subr.mxu0 0.0
    %1481 = vmatpush1.msra.mxu0 0.0
    %1482 = vmatprep.subr.mxu0 0.0
    %1483 = vmatpush1.msra.mxu0 0.0
    %1484 = vmatprep.subr.mxu0 0.0
    %1485 = vmatpush1.msra.mxu0 0.0
    %1486 = vmatprep.subr.mxu0 0.0
    %1487 = vmatpush1.msra.mxu0 0.0
    %1488 = vmatprep.subr.mxu0 0.0
    %1489 = vmatpush1.msra.mxu0 0.0
    %1490 = vmatprep.mubr.f32.mxu0 0.0
    %v1491 = vand.u32 %v38, 4294901760
    %v1492 = vsub.f32 %v38, %v1491
    %1493 = vmatmul.mubr.f32.gmra.mrb[0].mxu0 %v1492
    %v1494 = vpop.f32.mrb[0].mxu0
    %v1495 = vadd.f32 %v1358, %v1494
    %v1496 = vpop.f32.mrb[0].mxu0
    %v1497 = vadd.f32 %v1360, %v1496
    %1498 = vdwg.mxu0
    %v1499 = vand.u32 %v42, 4294901760
    %1500 = vmatprep.subr.mxu0 %v1499
    %v1501 = vand.u32 %v41, 4294901760
    %1502 = vmatpush1.msra.mxu0 %v1501
    %v1503 = vand.u32 %v50, 4294901760
    %1504 = vmatprep.subr.mxu0 %v1503
    %v1505 = vand.u32 %v49, 4294901760
    %1506 = vmatpush1.msra.mxu0 %v1505
    %v1507 = vand.u32 %v58, 4294901760
    %1508 = vmatprep.subr.mxu0 %v1507
    %v1509 = vand.u32 %v57, 4294901760
    %1510 = vmatpush1.msra.mxu0 %v1509
    %v1511 = vand.u32 %v66, 4294901760
    %1512 = vmatprep.subr.mxu0 %v1511
    %v1513 = vand.u32 %v65, 4294901760
    %1514 = vmatpush1.msra.mxu0 %v1513
    %v1515 = vand.u32 %v74, 4294901760
    %1516 = vmatprep.subr.mxu0 %v1515
    %v1517 = vand.u32 %v73, 4294901760
    %1518 = vmatpush1.msra.mxu0 %v1517
    %v1519 = vand.u32 %v82, 4294901760
    %1520 = vmatprep.subr.mxu0 %v1519
    %v1521 = vand.u32 %v81, 4294901760
    %1522 = vmatpush1.msra.mxu0 %v1521
    %v1523 = vand.u32 %v90, 4294901760
    %1524 = vmatprep.subr.mxu0 %v1523
    %v1525 = vand.u32 %v89, 4294901760
    %1526 = vmatpush1.msra.mxu0 %v1525
    %v1527 = vand.u32 %v98, 4294901760
    %1528 = vmatprep.subr.mxu0 %v1527
    %v1529 = vand.u32 %v97, 4294901760
    %1530 = vmatpush1.msra.mxu0 %v1529
    %v1531 = vand.u32 %v106, 4294901760
    %1532 = vmatprep.subr.mxu0 %v1531
    %v1533 = vand.u32 %v105, 4294901760
    %1534 = vmatpush1.msra.mxu0 %v1533
    %v1535 = vand.u32 %v114, 4294901760
    %1536 = vmatprep.subr.mxu0 %v1535
    %v1537 = vand.u32 %v113, 4294901760
    %1538 = vmatpush1.msra.mxu0 %v1537
    %v1539 = vand.u32 %v122, 4294901760
    %1540 = vmatprep.subr.mxu0 %v1539
    %v1541 = vand.u32 %v121, 4294901760
    %1542 = vmatpush1.msra.mxu0 %v1541
    %v1543 = vand.u32 %v130, 4294901760
    %1544 = vmatprep.subr.mxu0 %v1543
    %v1545 = vand.u32 %v129, 4294901760
    %1546 = vmatpush1.msra.mxu0 %v1545
    %v1547 = vand.u32 %v138, 4294901760
    %1548 = vmatprep.subr.mxu0 %v1547
    %v1549 = vand.u32 %v137, 4294901760
    %1550 = vmatpush1.msra.mxu0 %v1549
    %v1551 = vand.u32 %v146, 4294901760
    %1552 = vmatprep.subr.mxu0 %v1551
    %v1553 = vand.u32 %v145, 4294901760
    %1554 = vmatpush1.msra.mxu0 %v1553
    %v1555 = vand.u32 %v154, 4294901760
    %1556 = vmatprep.subr.mxu0 %v1555
    %v1557 = vand.u32 %v153, 4294901760
    %1558 = vmatpush1.msra.mxu0 %v1557
    %v1559 = vand.u32 %v162, 4294901760
    %1560 = vmatprep.subr.mxu0 %v1559
    %v1561 = vand.u32 %v161, 4294901760
    %1562 = vmatpush1.msra.mxu0 %v1561
    %1563 = vmatprep.subr.mxu0 0.0
    %1564 = vmatpush1.msra.mxu0 0.0
    %1565 = vmatprep.subr.mxu0 0.0
    %1566 = vmatpush1.msra.mxu0 0.0
    %1567 = vmatprep.subr.mxu0 0.0
    %1568 = vmatpush1.msra.mxu0 0.0
    %1569 = vmatprep.subr.mxu0 0.0
    %1570 = vmatpush1.msra.mxu0 0.0
    %1571 = vmatprep.subr.mxu0 0.0
    %1572 = vmatpush1.msra.mxu0 0.0
    %1573 = vmatprep.subr.mxu0 0.0
    %1574 = vmatpush1.msra.mxu0 0.0
    %1575 = vmatprep.subr.mxu0 0.0
    %1576 = vmatpush1.msra.mxu0 0.0
    %1577 = vmatprep.subr.mxu0 0.0
    %1578 = vmatpush1.msra.mxu0 0.0
    %1579 = vmatprep.subr.mxu0 0.0
    %1580 = vmatpush1.msra.mxu0 0.0
    %1581 = vmatprep.subr.mxu0 0.0
    %1582 = vmatpush1.msra.mxu0 0.0
    %1583 = vmatprep.subr.mxu0 0.0
    %1584 = vmatpush1.msra.mxu0 0.0
    %1585 = vmatprep.subr.mxu0 0.0
    %1586 = vmatpush1.msra.mxu0 0.0
    %1587 = vmatprep.subr.mxu0 0.0
    %1588 = vmatpush1.msra.mxu0 0.0
    %1589 = vmatprep.subr.mxu0 0.0
    %1590 = vmatpush1.msra.mxu0 0.0
    %1591 = vmatprep.subr.mxu0 0.0
    %1592 = vmatpush1.msra.mxu0 0.0
    %1593 = vmatprep.subr.mxu0 0.0
    %1594 = vmatpush1.msra.mxu0 0.0
    %1595 = vmatprep.mubr.f32.mxu0 0.0
    %v1596 = vand.u32 %v38, 4294901760
    %v1597 = vsub.f32 %v38, %v1596
    %v1598 = vand.u32 %v1597, 4294901760
    %1599 = vmatmul.mubr.f32.gmra.mrb[0].mxu0 %v1598
    %v1600 = vpop.f32.mrb[0].mxu0
    %v1601 = vadd.f32 %v1495, %v1600
    %v1602 = vpop.f32.mrb[0].mxu0
    %v1603 = vadd.f32 %v1497, %v1602
    %1604 = vdwg.mxu0
    %v1605 = vand.u32 %v42, 4294901760
    %v1606 = vsub.f32 %v42, %v1605
    %v1607 = vand.u32 %v1606, 4294901760
    %1608 = vmatprep.subr.mxu0 %v1607
    %v1609 = vand.u32 %v41, 4294901760
    %v1610 = vsub.f32 %v41, %v1609
    %v1611 = vand.u32 %v1610, 4294901760
    %1612 = vmatpush1.msra.mxu0 %v1611
    %v1613 = vand.u32 %v50, 4294901760
    %v1614 = vsub.f32 %v50, %v1613
    %v1615 = vand.u32 %v1614, 4294901760
    %1616 = vmatprep.subr.mxu0 %v1615
    %v1617 = vand.u32 %v49, 4294901760
    %v1618 = vsub.f32 %v49, %v1617
    %v1619 = vand.u32 %v1618, 4294901760
    %1620 = vmatpush1.msra.mxu0 %v1619
    %v1621 = vand.u32 %v58, 4294901760
    %v1622 = vsub.f32 %v58, %v1621
    %v1623 = vand.u32 %v1622, 4294901760
    %1624 = vmatprep.subr.mxu0 %v1623
    %v1625 = vand.u32 %v57, 4294901760
    %v1626 = vsub.f32 %v57, %v1625
    %v1627 = vand.u32 %v1626, 4294901760
    %1628 = vmatpush1.msra.mxu0 %v1627
    %v1629 = vand.u32 %v66, 4294901760
    %v1630 = vsub.f32 %v66, %v1629
    %v1631 = vand.u32 %v1630, 4294901760
    %1632 = vmatprep.subr.mxu0 %v1631
    %v1633 = vand.u32 %v65, 4294901760
    %v1634 = vsub.f32 %v65, %v1633
    %v1635 = vand.u32 %v1634, 4294901760
    %1636 = vmatpush1.msra.mxu0 %v1635
    %v1637 = vand.u32 %v74, 4294901760
    %v1638 = vsub.f32 %v74, %v1637
    %v1639 = vand.u32 %v1638, 4294901760
    %1640 = vmatprep.subr.mxu0 %v1639
    %v1641 = vand.u32 %v73, 4294901760
    %v1642 = vsub.f32 %v73, %v1641
    %v1643 = vand.u32 %v1642, 4294901760
    %1644 = vmatpush1.msra.mxu0 %v1643
    %v1645 = vand.u32 %v82, 4294901760
    %v1646 = vsub.f32 %v82, %v1645
    %v1647 = vand.u32 %v1646, 4294901760
    %1648 = vmatprep.subr.mxu0 %v1647
    %v1649 = vand.u32 %v81, 4294901760
    %v1650 = vsub.f32 %v81, %v1649
    %v1651 = vand.u32 %v1650, 4294901760
    %1652 = vmatpush1.msra.mxu0 %v1651
    %v1653 = vand.u32 %v90, 4294901760
    %v1654 = vsub.f32 %v90, %v1653
    %v1655 = vand.u32 %v1654, 4294901760
    %1656 = vmatprep.subr.mxu0 %v1655
    %v1657 = vand.u32 %v89, 4294901760
    %v1658 = vsub.f32 %v89, %v1657
    %v1659 = vand.u32 %v1658, 4294901760
    %1660 = vmatpush1.msra.mxu0 %v1659
    %v1661 = vand.u32 %v98, 4294901760
    %v1662 = vsub.f32 %v98, %v1661
    %v1663 = vand.u32 %v1662, 4294901760
    %1664 = vmatprep.subr.mxu0 %v1663
    %v1665 = vand.u32 %v97, 4294901760
    %v1666 = vsub.f32 %v97, %v1665
    %v1667 = vand.u32 %v1666, 4294901760
    %1668 = vmatpush1.msra.mxu0 %v1667
    %v1669 = vand.u32 %v106, 4294901760
    %v1670 = vsub.f32 %v106, %v1669
    %v1671 = vand.u32 %v1670, 4294901760
    %1672 = vmatprep.subr.mxu0 %v1671
    %v1673 = vand.u32 %v105, 4294901760
    %v1674 = vsub.f32 %v105, %v1673
    %v1675 = vand.u32 %v1674, 4294901760
    %1676 = vmatpush1.msra.mxu0 %v1675
    %v1677 = vand.u32 %v114, 4294901760
    %v1678 = vsub.f32 %v114, %v1677
    %v1679 = vand.u32 %v1678, 4294901760
    %1680 = vmatprep.subr.mxu0 %v1679
    %v1681 = vand.u32 %v113, 4294901760
    %v1682 = vsub.f32 %v113, %v1681
    %v1683 = vand.u32 %v1682, 4294901760
    %1684 = vmatpush1.msra.mxu0 %v1683
    %v1685 = vand.u32 %v122, 4294901760
    %v1686 = vsub.f32 %v122, %v1685
    %v1687 = vand.u32 %v1686, 4294901760
    %1688 = vmatprep.subr.mxu0 %v1687
    %v1689 = vand.u32 %v121, 4294901760
    %v1690 = vsub.f32 %v121, %v1689
    %v1691 = vand.u32 %v1690, 4294901760
    %1692 = vmatpush1.msra.mxu0 %v1691
    %v1693 = vand.u32 %v130, 4294901760
    %v1694 = vsub.f32 %v130, %v1693
    %v1695 = vand.u32 %v1694, 4294901760
    %1696 = vmatprep.subr.mxu0 %v1695
    %v1697 = vand.u32 %v129, 4294901760
    %v1698 = vsub.f32 %v129, %v1697
    %v1699 = vand.u32 %v1698, 4294901760
    %1700 = vmatpush1.msra.mxu0 %v1699
    %v1701 = vand.u32 %v138, 4294901760
    %v1702 = vsub.f32 %v138, %v1701
    %v1703 = vand.u32 %v1702, 4294901760
    %1704 = vmatprep.subr.mxu0 %v1703
    %v1705 = vand.u32 %v137, 4294901760
    %v1706 = vsub.f32 %v137, %v1705
    %v1707 = vand.u32 %v1706, 4294901760
    %1708 = vmatpush1.msra.mxu0 %v1707
    %v1709 = vand.u32 %v146, 4294901760
    %v1710 = vsub.f32 %v146, %v1709
    %v1711 = vand.u32 %v1710, 4294901760
    %1712 = vmatprep.subr.mxu0 %v1711
    %v1713 = vand.u32 %v145, 4294901760
    %v1714 = vsub.f32 %v145, %v1713
    %v1715 = vand.u32 %v1714, 4294901760
    %1716 = vmatpush1.msra.mxu0 %v1715
    %v1717 = vand.u32 %v154, 4294901760
    %v1718 = vsub.f32 %v154, %v1717
    %v1719 = vand.u32 %v1718, 4294901760
    %1720 = vmatprep.subr.mxu0 %v1719
    %v1721 = vand.u32 %v153, 4294901760
    %v1722 = vsub.f32 %v153, %v1721
    %v1723 = vand.u32 %v1722, 4294901760
    %1724 = vmatpush1.msra.mxu0 %v1723
    %v1725 = vand.u32 %v162, 4294901760
    %v1726 = vsub.f32 %v162, %v1725
    %v1727 = vand.u32 %v1726, 4294901760
    %1728 = vmatprep.subr.mxu0 %v1727
    %v1729 = vand.u32 %v161, 4294901760
    %v1730 = vsub.f32 %v161, %v1729
    %v1731 = vand.u32 %v1730, 4294901760
    %1732 = vmatpush1.msra.mxu0 %v1731
    %1733 = vmatprep.subr.mxu0 0.0
    %1734 = vmatpush1.msra.mxu0 0.0
    %1735 = vmatprep.subr.mxu0 0.0
    %1736 = vmatpush1.msra.mxu0 0.0
    %1737 = vmatprep.subr.mxu0 0.0
    %1738 = vmatpush1.msra.mxu0 0.0
    %1739 = vmatprep.subr.mxu0 0.0
    %1740 = vmatpush1.msra.mxu0 0.0
    %1741 = vmatprep.subr.mxu0 0.0
    %1742 = vmatpush1.msra.mxu0 0.0
    %1743 = vmatprep.subr.mxu0 0.0
    %1744 = vmatpush1.msra.mxu0 0.0
    %1745 = vmatprep.subr.mxu0 0.0
    %1746 = vmatpush1.msra.mxu0 0.0
    %1747 = vmatprep.subr.mxu0 0.0
    %1748 = vmatpush1.msra.mxu0 0.0
    %1749 = vmatprep.subr.mxu0 0.0
    %1750 = vmatpush1.msra.mxu0 0.0
    %1751 = vmatprep.subr.mxu0 0.0
    %1752 = vmatpush1.msra.mxu0 0.0
    %1753 = vmatprep.subr.mxu0 0.0
    %1754 = vmatpush1.msra.mxu0 0.0
    %1755 = vmatprep.subr.mxu0 0.0
    %1756 = vmatpush1.msra.mxu0 0.0
    %1757 = vmatprep.subr.mxu0 0.0
    %1758 = vmatpush1.msra.mxu0 0.0
    %1759 = vmatprep.subr.mxu0 0.0
    %1760 = vmatpush1.msra.mxu0 0.0
    %1761 = vmatprep.subr.mxu0 0.0
    %1762 = vmatpush1.msra.mxu0 0.0
    %1763 = vmatprep.subr.mxu0 0.0
    %1764 = vmatpush1.msra.mxu0 0.0
    %1765 = vmatprep.mubr.f32.mxu0 0.0
    %v1766 = vand.u32 %v38, 4294901760
    %1767 = vmatmul.mubr.f32.gmra.mrb[0].mxu0 %v1766
    %v1768 = vpop.f32.mrb[0].mxu0
    %v1769 = vadd.f32 %v1601, %v1768
    %v1770 = vpop.f32.mrb[0].mxu0
    %v1771 = vadd.f32 %v1603, %v1770
    %1772 = vdwg.mxu0
    %v1773 = vand.u32 %v42, 4294901760
    %1774 = vmatprep.subr.mxu0 %v1773
    %v1775 = vand.u32 %v41, 4294901760
    %1776 = vmatpush1.msra.mxu0 %v1775
    %v1777 = vand.u32 %v50, 4294901760
    %1778 = vmatprep.subr.mxu0 %v1777
    %v1779 = vand.u32 %v49, 4294901760
    %1780 = vmatpush1.msra.mxu0 %v1779
    %v1781 = vand.u32 %v58, 4294901760
    %1782 = vmatprep.subr.mxu0 %v1781
    %v1783 = vand.u32 %v57, 4294901760
    %1784 = vmatpush1.msra.mxu0 %v1783
    %v1785 = vand.u32 %v66, 4294901760
    %1786 = vmatprep.subr.mxu0 %v1785
    %v1787 = vand.u32 %v65, 4294901760
    %1788 = vmatpush1.msra.mxu0 %v1787
    %v1789 = vand.u32 %v74, 4294901760
    %1790 = vmatprep.subr.mxu0 %v1789
    %v1791 = vand.u32 %v73, 4294901760
    %1792 = vmatpush1.msra.mxu0 %v1791
    %v1793 = vand.u32 %v82, 4294901760
    %1794 = vmatprep.subr.mxu0 %v1793
    %v1795 = vand.u32 %v81, 4294901760
    %1796 = vmatpush1.msra.mxu0 %v1795
    %v1797 = vand.u32 %v90, 4294901760
    %1798 = vmatprep.subr.mxu0 %v1797
    %v1799 = vand.u32 %v89, 4294901760
    %1800 = vmatpush1.msra.mxu0 %v1799
    %v1801 = vand.u32 %v98, 4294901760
    %1802 = vmatprep.subr.mxu0 %v1801
    %v1803 = vand.u32 %v97, 4294901760
    %1804 = vmatpush1.msra.mxu0 %v1803
    %v1805 = vand.u32 %v106, 4294901760
    %1806 = vmatprep.subr.mxu0 %v1805
    %v1807 = vand.u32 %v105, 4294901760
    %1808 = vmatpush1.msra.mxu0 %v1807
    %v1809 = vand.u32 %v114, 4294901760
    %1810 = vmatprep.subr.mxu0 %v1809
    %v1811 = vand.u32 %v113, 4294901760
    %1812 = vmatpush1.msra.mxu0 %v1811
    %v1813 = vand.u32 %v122, 4294901760
    %1814 = vmatprep.subr.mxu0 %v1813
    %v1815 = vand.u32 %v121, 4294901760
    %1816 = vmatpush1.msra.mxu0 %v1815
    %v1817 = vand.u32 %v130, 4294901760
    %1818 = vmatprep.subr.mxu0 %v1817
    %v1819 = vand.u32 %v129, 4294901760
    %1820 = vmatpush1.msra.mxu0 %v1819
    %v1821 = vand.u32 %v138, 4294901760
    %1822 = vmatprep.subr.mxu0 %v1821
    %v1823 = vand.u32 %v137, 4294901760
    %1824 = vmatpush1.msra.mxu0 %v1823
    %v1825 = vand.u32 %v146, 4294901760
    %1826 = vmatprep.subr.mxu0 %v1825
    %v1827 = vand.u32 %v145, 4294901760
    %1828 = vmatpush1.msra.mxu0 %v1827
    %v1829 = vand.u32 %v154, 4294901760
    %1830 = vmatprep.subr.mxu0 %v1829
    %v1831 = vand.u32 %v153, 4294901760
    %1832 = vmatpush1.msra.mxu0 %v1831
    %v1833 = vand.u32 %v162, 4294901760
    %1834 = vmatprep.subr.mxu0 %v1833
    %v1835 = vand.u32 %v161, 4294901760
    %1836 = vmatpush1.msra.mxu0 %v1835
    %1837 = vmatprep.subr.mxu0 0.0
    %1838 = vmatpush1.msra.mxu0 0.0
    %1839 = vmatprep.subr.mxu0 0.0
    %1840 = vmatpush1.msra.mxu0 0.0
    %1841 = vmatprep.subr.mxu0 0.0
    %1842 = vmatpush1.msra.mxu0 0.0
    %1843 = vmatprep.subr.mxu0 0.0
    %1844 = vmatpush1.msra.mxu0 0.0
    %1845 = vmatprep.subr.mxu0 0.0
    %1846 = vmatpush1.msra.mxu0 0.0
    %1847 = vmatprep.subr.mxu0 0.0
    %1848 = vmatpush1.msra.mxu0 0.0
    %1849 = vmatprep.subr.mxu0 0.0
    %1850 = vmatpush1.msra.mxu0 0.0
    %1851 = vmatprep.subr.mxu0 0.0
    %1852 = vmatpush1.msra.mxu0 0.0
    %1853 = vmatprep.subr.mxu0 0.0
    %1854 = vmatpush1.msra.mxu0 0.0
    %1855 = vmatprep.subr.mxu0 0.0
    %1856 = vmatpush1.msra.mxu0 0.0
    %1857 = vmatprep.subr.mxu0 0.0
    %1858 = vmatpush1.msra.mxu0 0.0
    %1859 = vmatprep.subr.mxu0 0.0
    %1860 = vmatpush1.msra.mxu0 0.0
    %1861 = vmatprep.subr.mxu0 0.0
    %1862 = vmatpush1.msra.mxu0 0.0
    %1863 = vmatprep.subr.mxu0 0.0
    %1864 = vmatpush1.msra.mxu0 0.0
    %1865 = vmatprep.subr.mxu0 0.0
    %1866 = vmatpush1.msra.mxu0 0.0
    %1867 = vmatprep.subr.mxu0 0.0
    %1868 = vmatpush1.msra.mxu0 0.0
    %1869 = vmatprep.mubr.f32.mxu0 0.0
    %v1870 = vand.u32 %v38, 4294901760
    %1871 = vmatmul.mubr.f32.gmra.mrb[0].mxu0 %v1870
    %v1872 = vpop.f32.mrb[0].mxu0
    %v1873 = vadd.f32 %v1769, %v1872
    %v1874 = vpop.f32.mrb[0].mxu0
    %v1875 = vadd.f32 %v1771, %v1874
    %1876 = vdwg.mxu0
    %v1877 = vand.u32 %v44, 4294901760
    %1878 = vmatprep.subr.mxu0 %v1877
    %v1879 = vand.u32 %v43, 4294901760
    %1880 = vmatpush1.msra.mxu0 %v1879
    %v1881 = vand.u32 %v52, 4294901760
    %1882 = vmatprep.subr.mxu0 %v1881
    %v1883 = vand.u32 %v51, 4294901760
    %1884 = vmatpush1.msra.mxu0 %v1883
    %v1885 = vand.u32 %v60, 4294901760
    %1886 = vmatprep.subr.mxu0 %v1885
    %v1887 = vand.u32 %v59, 4294901760
    %1888 = vmatpush1.msra.mxu0 %v1887
    %v1889 = vand.u32 %v68, 4294901760
    %1890 = vmatprep.subr.mxu0 %v1889
    %v1891 = vand.u32 %v67, 4294901760
    %1892 = vmatpush1.msra.mxu0 %v1891
    %v1893 = vand.u32 %v76, 4294901760
    %1894 = vmatprep.subr.mxu0 %v1893
    %v1895 = vand.u32 %v75, 4294901760
    %1896 = vmatpush1.msra.mxu0 %v1895
    %v1897 = vand.u32 %v84, 4294901760
    %1898 = vmatprep.subr.mxu0 %v1897
    %v1899 = vand.u32 %v83, 4294901760
    %1900 = vmatpush1.msra.mxu0 %v1899
    %v1901 = vand.u32 %v92, 4294901760
    %1902 = vmatprep.subr.mxu0 %v1901
    %v1903 = vand.u32 %v91, 4294901760
    %1904 = vmatpush1.msra.mxu0 %v1903
    %v1905 = vand.u32 %v100, 4294901760
    %1906 = vmatprep.subr.mxu0 %v1905
    %v1907 = vand.u32 %v99, 4294901760
    %1908 = vmatpush1.msra.mxu0 %v1907
    %v1909 = vand.u32 %v108, 4294901760
    %1910 = vmatprep.subr.mxu0 %v1909
    %v1911 = vand.u32 %v107, 4294901760
    %1912 = vmatpush1.msra.mxu0 %v1911
    %v1913 = vand.u32 %v116, 4294901760
    %1914 = vmatprep.subr.mxu0 %v1913
    %v1915 = vand.u32 %v115, 4294901760
    %1916 = vmatpush1.msra.mxu0 %v1915
    %v1917 = vand.u32 %v124, 4294901760
    %1918 = vmatprep.subr.mxu0 %v1917
    %v1919 = vand.u32 %v123, 4294901760
    %1920 = vmatpush1.msra.mxu0 %v1919
    %v1921 = vand.u32 %v132, 4294901760
    %1922 = vmatprep.subr.mxu0 %v1921
    %v1923 = vand.u32 %v131, 4294901760
    %1924 = vmatpush1.msra.mxu0 %v1923
    %v1925 = vand.u32 %v140, 4294901760
    %1926 = vmatprep.subr.mxu0 %v1925
    %v1927 = vand.u32 %v139, 4294901760
    %1928 = vmatpush1.msra.mxu0 %v1927
    %v1929 = vand.u32 %v148, 4294901760
    %1930 = vmatprep.subr.mxu0 %v1929
    %v1931 = vand.u32 %v147, 4294901760
    %1932 = vmatpush1.msra.mxu0 %v1931
    %v1933 = vand.u32 %v156, 4294901760
    %1934 = vmatprep.subr.mxu0 %v1933
    %v1935 = vand.u32 %v155, 4294901760
    %1936 = vmatpush1.msra.mxu0 %v1935
    %v1937 = vand.u32 %v164, 4294901760
    %1938 = vmatprep.subr.mxu0 %v1937
    %v1939 = vand.u32 %v163, 4294901760
    %1940 = vmatpush1.msra.mxu0 %v1939
    %1941 = vmatprep.subr.mxu0 0.0
    %1942 = vmatpush1.msra.mxu0 0.0
    %1943 = vmatprep.subr.mxu0 0.0
    %1944 = vmatpush1.msra.mxu0 0.0
    %1945 = vmatprep.subr.mxu0 0.0
    %1946 = vmatpush1.msra.mxu0 0.0
    %1947 = vmatprep.subr.mxu0 0.0
    %1948 = vmatpush1.msra.mxu0 0.0
    %1949 = vmatprep.subr.mxu0 0.0
    %1950 = vmatpush1.msra.mxu0 0.0
    %1951 = vmatprep.subr.mxu0 0.0
    %1952 = vmatpush1.msra.mxu0 0.0
    %1953 = vmatprep.subr.mxu0 0.0
    %1954 = vmatpush1.msra.mxu0 0.0
    %1955 = vmatprep.subr.mxu0 0.0
    %1956 = vmatpush1.msra.mxu0 0.0
    %1957 = vmatprep.subr.mxu0 0.0
    %1958 = vmatpush1.msra.mxu0 0.0
    %1959 = vmatprep.subr.mxu0 0.0
    %1960 = vmatpush1.msra.mxu0 0.0
    %1961 = vmatprep.subr.mxu0 0.0
    %1962 = vmatpush1.msra.mxu0 0.0
    %1963 = vmatprep.subr.mxu0 0.0
    %1964 = vmatpush1.msra.mxu0 0.0
    %1965 = vmatprep.subr.mxu0 0.0
    %1966 = vmatpush1.msra.mxu0 0.0
    %1967 = vmatprep.subr.mxu0 0.0
    %1968 = vmatpush1.msra.mxu0 0.0
    %1969 = vmatprep.subr.mxu0 0.0
    %1970 = vmatpush1.msra.mxu0 0.0
    %1971 = vmatprep.subr.mxu0 0.0
    %1972 = vmatpush1.msra.mxu0 0.0
    %1973 = vmatprep.mubr.f32.mxu0 0.0
    %v1974 = vand.u32 %v38, 4294901760
    %v1975 = vsub.f32 %v38, %v1974
    %v1976 = vand.u32 %v1975, 4294901760
    %v1977 = vsub.f32 %v1975, %v1976
    %v1978 = vand.u32 %v1977, 4294901760
    %1979 = vmatmul.mubr.f32.gmra.mrb[0].mxu0 %v1978
    %v1980 = vpop.f32.mrb[0].mxu0
    %v1981 = vadd.f32 0.0, %v1980
    %v1982 = vpop.f32.mrb[0].mxu0
    %v1983 = vadd.f32 0.0, %v1982
    %1984 = vdwg.mxu0
    %v1985 = vand.u32 %v44, 4294901760
    %v1986 = vsub.f32 %v44, %v1985
    %v1987 = vand.u32 %v1986, 4294901760
    %v1988 = vsub.f32 %v1986, %v1987
    %v1989 = vand.u32 %v1988, 4294901760
    %1990 = vmatprep.subr.mxu0 %v1989
    %v1991 = vand.u32 %v43, 4294901760
    %v1992 = vsub.f32 %v43, %v1991
    %v1993 = vand.u32 %v1992, 4294901760
    %v1994 = vsub.f32 %v1992, %v1993
    %v1995 = vand.u32 %v1994, 4294901760
    %1996 = vmatpush1.msra.mxu0 %v1995
    %v1997 = vand.u32 %v52, 4294901760
    %v1998 = vsub.f32 %v52, %v1997
    %v1999 = vand.u32 %v1998, 4294901760
    %v2000 = vsub.f32 %v1998, %v1999
    %v2001 = vand.u32 %v2000, 4294901760
    %2002 = vmatprep.subr.mxu0 %v2001
    %v2003 = vand.u32 %v51, 4294901760
    %v2004 = vsub.f32 %v51, %v2003
    %v2005 = vand.u32 %v2004, 4294901760
    %v2006 = vsub.f32 %v2004, %v2005
    %v2007 = vand.u32 %v2006, 4294901760
    %2008 = vmatpush1.msra.mxu0 %v2007
    %v2009 = vand.u32 %v60, 4294901760
    %v2010 = vsub.f32 %v60, %v2009
    %v2011 = vand.u32 %v2010, 4294901760
    %v2012 = vsub.f32 %v2010, %v2011
    %v2013 = vand.u32 %v2012, 4294901760
    %2014 = vmatprep.subr.mxu0 %v2013
    %v2015 = vand.u32 %v59, 4294901760
    %v2016 = vsub.f32 %v59, %v2015
    %v2017 = vand.u32 %v2016, 4294901760
    %v2018 = vsub.f32 %v2016, %v2017
    %v2019 = vand.u32 %v2018, 4294901760
    %2020 = vmatpush1.msra.mxu0 %v2019
    %v2021 = vand.u32 %v68, 4294901760
    %v2022 = vsub.f32 %v68, %v2021
    %v2023 = vand.u32 %v2022, 4294901760
    %v2024 = vsub.f32 %v2022, %v2023
    %v2025 = vand.u32 %v2024, 4294901760
    %2026 = vmatprep.subr.mxu0 %v2025
    %v2027 = vand.u32 %v67, 4294901760
    %v2028 = vsub.f32 %v67, %v2027
    %v2029 = vand.u32 %v2028, 4294901760
    %v2030 = vsub.f32 %v2028, %v2029
    %v2031 = vand.u32 %v2030, 4294901760
    %2032 = vmatpush1.msra.mxu0 %v2031
    %v2033 = vand.u32 %v76, 4294901760
    %v2034 = vsub.f32 %v76, %v2033
    %v2035 = vand.u32 %v2034, 4294901760
    %v2036 = vsub.f32 %v2034, %v2035
    %v2037 = vand.u32 %v2036, 4294901760
    %2038 = vmatprep.subr.mxu0 %v2037
    %v2039 = vand.u32 %v75, 4294901760
    %v2040 = vsub.f32 %v75, %v2039
    %v2041 = vand.u32 %v2040, 4294901760
    %v2042 = vsub.f32 %v2040, %v2041
    %v2043 = vand.u32 %v2042, 4294901760
    %2044 = vmatpush1.msra.mxu0 %v2043
    %v2045 = vand.u32 %v84, 4294901760
    %v2046 = vsub.f32 %v84, %v2045
    %v2047 = vand.u32 %v2046, 4294901760
    %v2048 = vsub.f32 %v2046, %v2047
    %v2049 = vand.u32 %v2048, 4294901760
    %2050 = vmatprep.subr.mxu0 %v2049
    %v2051 = vand.u32 %v83, 4294901760
    %v2052 = vsub.f32 %v83, %v2051
    %v2053 = vand.u32 %v2052, 4294901760
    %v2054 = vsub.f32 %v2052, %v2053
    %v2055 = vand.u32 %v2054, 4294901760
    %2056 = vmatpush1.msra.mxu0 %v2055
    %v2057 = vand.u32 %v92, 4294901760
    %v2058 = vsub.f32 %v92, %v2057
    %v2059 = vand.u32 %v2058, 4294901760
    %v2060 = vsub.f32 %v2058, %v2059
    %v2061 = vand.u32 %v2060, 4294901760
    %2062 = vmatprep.subr.mxu0 %v2061
    %v2063 = vand.u32 %v91, 4294901760
    %v2064 = vsub.f32 %v91, %v2063
    %v2065 = vand.u32 %v2064, 4294901760
    %v2066 = vsub.f32 %v2064, %v2065
    %v2067 = vand.u32 %v2066, 4294901760
    %2068 = vmatpush1.msra.mxu0 %v2067
    %v2069 = vand.u32 %v100, 4294901760
    %v2070 = vsub.f32 %v100, %v2069
    %v2071 = vand.u32 %v2070, 4294901760
    %v2072 = vsub.f32 %v2070, %v2071
    %v2073 = vand.u32 %v2072, 4294901760
    %2074 = vmatprep.subr.mxu0 %v2073
    %v2075 = vand.u32 %v99, 4294901760
    %v2076 = vsub.f32 %v99, %v2075
    %v2077 = vand.u32 %v2076, 4294901760
    %v2078 = vsub.f32 %v2076, %v2077
    %v2079 = vand.u32 %v2078, 4294901760
    %2080 = vmatpush1.msra.mxu0 %v2079
    %v2081 = vand.u32 %v108, 4294901760
    %v2082 = vsub.f32 %v108, %v2081
    %v2083 = vand.u32 %v2082, 4294901760
    %v2084 = vsub.f32 %v2082, %v2083
    %v2085 = vand.u32 %v2084, 4294901760
    %2086 = vmatprep.subr.mxu0 %v2085
    %v2087 = vand.u32 %v107, 4294901760
    %v2088 = vsub.f32 %v107, %v2087
    %v2089 = vand.u32 %v2088, 4294901760
    %v2090 = vsub.f32 %v2088, %v2089
    %v2091 = vand.u32 %v2090, 4294901760
    %2092 = vmatpush1.msra.mxu0 %v2091
    %v2093 = vand.u32 %v116, 4294901760
    %v2094 = vsub.f32 %v116, %v2093
    %v2095 = vand.u32 %v2094, 4294901760
    %v2096 = vsub.f32 %v2094, %v2095
    %v2097 = vand.u32 %v2096, 4294901760
    %2098 = vmatprep.subr.mxu0 %v2097
    %v2099 = vand.u32 %v115, 4294901760
    %v2100 = vsub.f32 %v115, %v2099
    %v2101 = vand.u32 %v2100, 4294901760
    %v2102 = vsub.f32 %v2100, %v2101
    %v2103 = vand.u32 %v2102, 4294901760
    %2104 = vmatpush1.msra.mxu0 %v2103
    %v2105 = vand.u32 %v124, 4294901760
    %v2106 = vsub.f32 %v124, %v2105
    %v2107 = vand.u32 %v2106, 4294901760
    %v2108 = vsub.f32 %v2106, %v2107
    %v2109 = vand.u32 %v2108, 4294901760
    %2110 = vmatprep.subr.mxu0 %v2109
    %v2111 = vand.u32 %v123, 4294901760
    %v2112 = vsub.f32 %v123, %v2111
    %v2113 = vand.u32 %v2112, 4294901760
    %v2114 = vsub.f32 %v2112, %v2113
    %v2115 = vand.u32 %v2114, 4294901760
    %2116 = vmatpush1.msra.mxu0 %v2115
    %v2117 = vand.u32 %v132, 4294901760
    %v2118 = vsub.f32 %v132, %v2117
    %v2119 = vand.u32 %v2118, 4294901760
    %v2120 = vsub.f32 %v2118, %v2119
    %v2121 = vand.u32 %v2120, 4294901760
    %2122 = vmatprep.subr.mxu0 %v2121
    %v2123 = vand.u32 %v131, 4294901760
    %v2124 = vsub.f32 %v131, %v2123
    %v2125 = vand.u32 %v2124, 4294901760
    %v2126 = vsub.f32 %v2124, %v2125
    %v2127 = vand.u32 %v2126, 4294901760
    %2128 = vmatpush1.msra.mxu0 %v2127
    %v2129 = vand.u32 %v140, 4294901760
    %v2130 = vsub.f32 %v140, %v2129
    %v2131 = vand.u32 %v2130, 4294901760
    %v2132 = vsub.f32 %v2130, %v2131
    %v2133 = vand.u32 %v2132, 4294901760
    %2134 = vmatprep.subr.mxu0 %v2133
    %v2135 = vand.u32 %v139, 4294901760
    %v2136 = vsub.f32 %v139, %v2135
    %v2137 = vand.u32 %v2136, 4294901760
    %v2138 = vsub.f32 %v2136, %v2137
    %v2139 = vand.u32 %v2138, 4294901760
    %2140 = vmatpush1.msra.mxu0 %v2139
    %v2141 = vand.u32 %v148, 4294901760
    %v2142 = vsub.f32 %v148, %v2141
    %v2143 = vand.u32 %v2142, 4294901760
    %v2144 = vsub.f32 %v2142, %v2143
    %v2145 = vand.u32 %v2144, 4294901760
    %2146 = vmatprep.subr.mxu0 %v2145
    %v2147 = vand.u32 %v147, 4294901760
    %v2148 = vsub.f32 %v147, %v2147
    %v2149 = vand.u32 %v2148, 4294901760
    %v2150 = vsub.f32 %v2148, %v2149
    %v2151 = vand.u32 %v2150, 4294901760
    %2152 = vmatpush1.msra.mxu0 %v2151
    %v2153 = vand.u32 %v156, 4294901760
    %v2154 = vsub.f32 %v156, %v2153
    %v2155 = vand.u32 %v2154, 4294901760
    %v2156 = vsub.f32 %v2154, %v2155
    %v2157 = vand.u32 %v2156, 4294901760
    %2158 = vmatprep.subr.mxu0 %v2157
    %v2159 = vand.u32 %v155, 4294901760
    %v2160 = vsub.f32 %v155, %v2159
    %v2161 = vand.u32 %v2160, 4294901760
    %v2162 = vsub.f32 %v2160, %v2161
    %v2163 = vand.u32 %v2162, 4294901760
    %2164 = vmatpush1.msra.mxu0 %v2163
    %v2165 = vand.u32 %v164, 4294901760
    %v2166 = vsub.f32 %v164, %v2165
    %v2167 = vand.u32 %v2166, 4294901760
    %v2168 = vsub.f32 %v2166, %v2167
    %v2169 = vand.u32 %v2168, 4294901760
    %2170 = vmatprep.subr.mxu0 %v2169
    %v2171 = vand.u32 %v163, 4294901760
    %v2172 = vsub.f32 %v163, %v2171
    %v2173 = vand.u32 %v2172, 4294901760
    %v2174 = vsub.f32 %v2172, %v2173
    %v2175 = vand.u32 %v2174, 4294901760
    %2176 = vmatpush1.msra.mxu0 %v2175
    %2177 = vmatprep.subr.mxu0 0.0
    %2178 = vmatpush1.msra.mxu0 0.0
    %2179 = vmatprep.subr.mxu0 0.0
    %2180 = vmatpush1.msra.mxu0 0.0
    %2181 = vmatprep.subr.mxu0 0.0
    %2182 = vmatpush1.msra.mxu0 0.0
    %2183 = vmatprep.subr.mxu0 0.0
    %2184 = vmatpush1.msra.mxu0 0.0
    %2185 = vmatprep.subr.mxu0 0.0
    %2186 = vmatpush1.msra.mxu0 0.0
    %2187 = vmatprep.subr.mxu0 0.0
    %2188 = vmatpush1.msra.mxu0 0.0
    %2189 = vmatprep.subr.mxu0 0.0
    %2190 = vmatpush1.msra.mxu0 0.0
    %2191 = vmatprep.subr.mxu0 0.0
    %2192 = vmatpush1.msra.mxu0 0.0
    %2193 = vmatprep.subr.mxu0 0.0
    %2194 = vmatpush1.msra.mxu0 0.0
    %2195 = vmatprep.subr.mxu0 0.0
    %2196 = vmatpush1.msra.mxu0 0.0
    %2197 = vmatprep.subr.mxu0 0.0
    %2198 = vmatpush1.msra.mxu0 0.0
    %2199 = vmatprep.subr.mxu0 0.0
    %2200 = vmatpush1.msra.mxu0 0.0
    %2201 = vmatprep.subr.mxu0 0.0
    %2202 = vmatpush1.msra.mxu0 0.0
    %2203 = vmatprep.subr.mxu0 0.0
    %2204 = vmatpush1.msra.mxu0 0.0
    %2205 = vmatprep.subr.mxu0 0.0
    %2206 = vmatpush1.msra.mxu0 0.0
    %2207 = vmatprep.subr.mxu0 0.0
    %2208 = vmatpush1.msra.mxu0 0.0
    %2209 = vmatprep.mubr.f32.mxu0 0.0
    %v2210 = vand.u32 %v38, 4294901760
    %2211 = vmatmul.mubr.f32.gmra.mrb[0].mxu0 %v2210
    %v2212 = vpop.f32.mrb[0].mxu0
    %v2213 = vadd.f32 %v1981, %v2212
    %v2214 = vpop.f32.mrb[0].mxu0
    %v2215 = vadd.f32 %v1983, %v2214
    %2216 = vdwg.mxu0
    %v2217 = vand.u32 %v44, 4294901760
    %v2218 = vsub.f32 %v44, %v2217
    %2219 = vmatprep.subr.mxu0 %v2218
    %v2220 = vand.u32 %v43, 4294901760
    %v2221 = vsub.f32 %v43, %v2220
    %2222 = vmatpush1.msra.mxu0 %v2221
    %v2223 = vand.u32 %v52, 4294901760
    %v2224 = vsub.f32 %v52, %v2223
    %2225 = vmatprep.subr.mxu0 %v2224
    %v2226 = vand.u32 %v51, 4294901760
    %v2227 = vsub.f32 %v51, %v2226
    %2228 = vmatpush1.msra.mxu0 %v2227
    %v2229 = vand.u32 %v60, 4294901760
    %v2230 = vsub.f32 %v60, %v2229
    %2231 = vmatprep.subr.mxu0 %v2230
    %v2232 = vand.u32 %v59, 4294901760
    %v2233 = vsub.f32 %v59, %v2232
    %2234 = vmatpush1.msra.mxu0 %v2233
    %v2235 = vand.u32 %v68, 4294901760
    %v2236 = vsub.f32 %v68, %v2235
    %2237 = vmatprep.subr.mxu0 %v2236
    %v2238 = vand.u32 %v67, 4294901760
    %v2239 = vsub.f32 %v67, %v2238
    %2240 = vmatpush1.msra.mxu0 %v2239
    %v2241 = vand.u32 %v76, 4294901760
    %v2242 = vsub.f32 %v76, %v2241
    %2243 = vmatprep.subr.mxu0 %v2242
    %v2244 = vand.u32 %v75, 4294901760
    %v2245 = vsub.f32 %v75, %v2244
    %2246 = vmatpush1.msra.mxu0 %v2245
    %v2247 = vand.u32 %v84, 4294901760
    %v2248 = vsub.f32 %v84, %v2247
    %2249 = vmatprep.subr.mxu0 %v2248
    %v2250 = vand.u32 %v83, 4294901760
    %v2251 = vsub.f32 %v83, %v2250
    %2252 = vmatpush1.msra.mxu0 %v2251
    %v2253 = vand.u32 %v92, 4294901760
    %v2254 = vsub.f32 %v92, %v2253
    %2255 = vmatprep.subr.mxu0 %v2254
    %v2256 = vand.u32 %v91, 4294901760
    %v2257 = vsub.f32 %v91, %v2256
    %2258 = vmatpush1.msra.mxu0 %v2257
    %v2259 = vand.u32 %v100, 4294901760
    %v2260 = vsub.f32 %v100, %v2259
    %2261 = vmatprep.subr.mxu0 %v2260
    %v2262 = vand.u32 %v99, 4294901760
    %v2263 = vsub.f32 %v99, %v2262
    %2264 = vmatpush1.msra.mxu0 %v2263
    %v2265 = vand.u32 %v108, 4294901760
    %v2266 = vsub.f32 %v108, %v2265
    %2267 = vmatprep.subr.mxu0 %v2266
    %v2268 = vand.u32 %v107, 4294901760
    %v2269 = vsub.f32 %v107, %v2268
    %2270 = vmatpush1.msra.mxu0 %v2269
    %v2271 = vand.u32 %v116, 4294901760
    %v2272 = vsub.f32 %v116, %v2271
    %2273 = vmatprep.subr.mxu0 %v2272
    %v2274 = vand.u32 %v115, 4294901760
    %v2275 = vsub.f32 %v115, %v2274
    %2276 = vmatpush1.msra.mxu0 %v2275
    %v2277 = vand.u32 %v124, 4294901760
    %v2278 = vsub.f32 %v124, %v2277
    %2279 = vmatprep.subr.mxu0 %v2278
    %v2280 = vand.u32 %v123, 4294901760
    %v2281 = vsub.f32 %v123, %v2280
    %2282 = vmatpush1.msra.mxu0 %v2281
    %v2283 = vand.u32 %v132, 4294901760
    %v2284 = vsub.f32 %v132, %v2283
    %2285 = vmatprep.subr.mxu0 %v2284
    %v2286 = vand.u32 %v131, 4294901760
    %v2287 = vsub.f32 %v131, %v2286
    %2288 = vmatpush1.msra.mxu0 %v2287
    %v2289 = vand.u32 %v140, 4294901760
    %v2290 = vsub.f32 %v140, %v2289
    %2291 = vmatprep.subr.mxu0 %v2290
    %v2292 = vand.u32 %v139, 4294901760
    %v2293 = vsub.f32 %v139, %v2292
    %2294 = vmatpush1.msra.mxu0 %v2293
    %v2295 = vand.u32 %v148, 4294901760
    %v2296 = vsub.f32 %v148, %v2295
    %2297 = vmatprep.subr.mxu0 %v2296
    %v2298 = vand.u32 %v147, 4294901760
    %v2299 = vsub.f32 %v147, %v2298
    %2300 = vmatpush1.msra.mxu0 %v2299
    %v2301 = vand.u32 %v156, 4294901760
    %v2302 = vsub.f32 %v156, %v2301
    %2303 = vmatprep.subr.mxu0 %v2302
    %v2304 = vand.u32 %v155, 4294901760
    %v2305 = vsub.f32 %v155, %v2304
    %2306 = vmatpush1.msra.mxu0 %v2305
    %v2307 = vand.u32 %v164, 4294901760
    %v2308 = vsub.f32 %v164, %v2307
    %2309 = vmatprep.subr.mxu0 %v2308
    %v2310 = vand.u32 %v163, 4294901760
    %v2311 = vsub.f32 %v163, %v2310
    %2312 = vmatpush1.msra.mxu0 %v2311
    %2313 = vmatprep.subr.mxu0 0.0
    %2314 = vmatpush1.msra.mxu0 0.0
    %2315 = vmatprep.subr.mxu0 0.0
    %2316 = vmatpush1.msra.mxu0 0.0
    %2317 = vmatprep.subr.mxu0 0.0
    %2318 = vmatpush1.msra.mxu0 0.0
    %2319 = vmatprep.subr.mxu0 0.0
    %2320 = vmatpush1.msra.mxu0 0.0
    %2321 = vmatprep.subr.mxu0 0.0
    %2322 = vmatpush1.msra.mxu0 0.0
    %2323 = vmatprep.subr.mxu0 0.0
    %2324 = vmatpush1.msra.mxu0 0.0
    %2325 = vmatprep.subr.mxu0 0.0
    %2326 = vmatpush1.msra.mxu0 0.0
    %2327 = vmatprep.subr.mxu0 0.0
    %2328 = vmatpush1.msra.mxu0 0.0
    %2329 = vmatprep.subr.mxu0 0.0
    %2330 = vmatpush1.msra.mxu0 0.0
    %2331 = vmatprep.subr.mxu0 0.0
    %2332 = vmatpush1.msra.mxu0 0.0
    %2333 = vmatprep.subr.mxu0 0.0
    %2334 = vmatpush1.msra.mxu0 0.0
    %2335 = vmatprep.subr.mxu0 0.0
    %2336 = vmatpush1.msra.mxu0 0.0
    %2337 = vmatprep.subr.mxu0 0.0
    %2338 = vmatpush1.msra.mxu0 0.0
    %2339 = vmatprep.subr.mxu0 0.0
    %2340 = vmatpush1.msra.mxu0 0.0
    %2341 = vmatprep.subr.mxu0 0.0
    %2342 = vmatpush1.msra.mxu0 0.0
    %2343 = vmatprep.subr.mxu0 0.0
    %2344 = vmatpush1.msra.mxu0 0.0
    %2345 = vmatprep.mubr.f32.mxu0 0.0
    %v2346 = vand.u32 %v38, 4294901760
    %v2347 = vsub.f32 %v38, %v2346
    %2348 = vmatmul.mubr.f32.gmra.mrb[0].mxu0 %v2347
    %v2349 = vpop.f32.mrb[0].mxu0
    %v2350 = vadd.f32 %v2213, %v2349
    %v2351 = vpop.f32.mrb[0].mxu0
    %v2352 = vadd.f32 %v2215, %v2351
    %2353 = vdwg.mxu0
    %v2354 = vand.u32 %v44, 4294901760
    %2355 = vmatprep.subr.mxu0 %v2354
    %v2356 = vand.u32 %v43, 4294901760
    %2357 = vmatpush1.msra.mxu0 %v2356
    %v2358 = vand.u32 %v52, 4294901760
    %2359 = vmatprep.subr.mxu0 %v2358
    %v2360 = vand.u32 %v51, 4294901760
    %2361 = vmatpush1.msra.mxu0 %v2360
    %v2362 = vand.u32 %v60, 4294901760
    %2363 = vmatprep.subr.mxu0 %v2362
    %v2364 = vand.u32 %v59, 4294901760
    %2365 = vmatpush1.msra.mxu0 %v2364
    %v2366 = vand.u32 %v68, 4294901760
    %2367 = vmatprep.subr.mxu0 %v2366
    %v2368 = vand.u32 %v67, 4294901760
    %2369 = vmatpush1.msra.mxu0 %v2368
    %v2370 = vand.u32 %v76, 4294901760
    %2371 = vmatprep.subr.mxu0 %v2370
    %v2372 = vand.u32 %v75, 4294901760
    %2373 = vmatpush1.msra.mxu0 %v2372
    %v2374 = vand.u32 %v84, 4294901760
    %2375 = vmatprep.subr.mxu0 %v2374
    %v2376 = vand.u32 %v83, 4294901760
    %2377 = vmatpush1.msra.mxu0 %v2376
    %v2378 = vand.u32 %v92, 4294901760
    %2379 = vmatprep.subr.mxu0 %v2378
    %v2380 = vand.u32 %v91, 4294901760
    %2381 = vmatpush1.msra.mxu0 %v2380
    %v2382 = vand.u32 %v100, 4294901760
    %2383 = vmatprep.subr.mxu0 %v2382
    %v2384 = vand.u32 %v99, 4294901760
    %2385 = vmatpush1.msra.mxu0 %v2384
    %v2386 = vand.u32 %v108, 4294901760
    %2387 = vmatprep.subr.mxu0 %v2386
    %v2388 = vand.u32 %v107, 4294901760
    %2389 = vmatpush1.msra.mxu0 %v2388
    %v2390 = vand.u32 %v116, 4294901760
    %2391 = vmatprep.subr.mxu0 %v2390
    %v2392 = vand.u32 %v115, 4294901760
    %2393 = vmatpush1.msra.mxu0 %v2392
    %v2394 = vand.u32 %v124, 4294901760
    %2395 = vmatprep.subr.mxu0 %v2394
    %v2396 = vand.u32 %v123, 4294901760
    %2397 = vmatpush1.msra.mxu0 %v2396
    %v2398 = vand.u32 %v132, 4294901760
    %2399 = vmatprep.subr.mxu0 %v2398
    %v2400 = vand.u32 %v131, 4294901760
    %2401 = vmatpush1.msra.mxu0 %v2400
    %v2402 = vand.u32 %v140, 4294901760
    %2403 = vmatprep.subr.mxu0 %v2402
    %v2404 = vand.u32 %v139, 4294901760
    %2405 = vmatpush1.msra.mxu0 %v2404
    %v2406 = vand.u32 %v148, 4294901760
    %2407 = vmatprep.subr.mxu0 %v2406
    %v2408 = vand.u32 %v147, 4294901760
    %2409 = vmatpush1.msra.mxu0 %v2408
    %v2410 = vand.u32 %v156, 4294901760
    %2411 = vmatprep.subr.mxu0 %v2410
    %v2412 = vand.u32 %v155, 4294901760
    %2413 = vmatpush1.msra.mxu0 %v2412
    %v2414 = vand.u32 %v164, 4294901760
    %2415 = vmatprep.subr.mxu0 %v2414
    %v2416 = vand.u32 %v163, 4294901760
    %2417 = vmatpush1.msra.mxu0 %v2416
    %2418 = vmatprep.subr.mxu0 0.0
    %2419 = vmatpush1.msra.mxu0 0.0
    %2420 = vmatprep.subr.mxu0 0.0
    %2421 = vmatpush1.msra.mxu0 0.0
    %2422 = vmatprep.subr.mxu0 0.0
    %2423 = vmatpush1.msra.mxu0 0.0
    %2424 = vmatprep.subr.mxu0 0.0
    %2425 = vmatpush1.msra.mxu0 0.0
    %2426 = vmatprep.subr.mxu0 0.0
    %2427 = vmatpush1.msra.mxu0 0.0
    %2428 = vmatprep.subr.mxu0 0.0
    %2429 = vmatpush1.msra.mxu0 0.0
    %2430 = vmatprep.subr.mxu0 0.0
    %2431 = vmatpush1.msra.mxu0 0.0
    %2432 = vmatprep.subr.mxu0 0.0
    %2433 = vmatpush1.msra.mxu0 0.0
    %2434 = vmatprep.subr.mxu0 0.0
    %2435 = vmatpush1.msra.mxu0 0.0
    %2436 = vmatprep.subr.mxu0 0.0
    %2437 = vmatpush1.msra.mxu0 0.0
    %2438 = vmatprep.subr.mxu0 0.0
    %2439 = vmatpush1.msra.mxu0 0.0
    %2440 = vmatprep.subr.mxu0 0.0
    %2441 = vmatpush1.msra.mxu0 0.0
    %2442 = vmatprep.subr.mxu0 0.0
    %2443 = vmatpush1.msra.mxu0 0.0
    %2444 = vmatprep.subr.mxu0 0.0
    %2445 = vmatpush1.msra.mxu0 0.0
    %2446 = vmatprep.subr.mxu0 0.0
    %2447 = vmatpush1.msra.mxu0 0.0
    %2448 = vmatprep.subr.mxu0 0.0
    %2449 = vmatpush1.msra.mxu0 0.0
    %2450 = vmatprep.mubr.f32.mxu0 0.0
    %v2451 = vand.u32 %v38, 4294901760
    %v2452 = vsub.f32 %v38, %v2451
    %v2453 = vand.u32 %v2452, 4294901760
    %2454 = vmatmul.mubr.f32.gmra.mrb[0].mxu0 %v2453
    %v2455 = vpop.f32.mrb[0].mxu0
    %v2456 = vadd.f32 %v2350, %v2455
    %v2457 = vpop.f32.mrb[0].mxu0
    %v2458 = vadd.f32 %v2352, %v2457
    %2459 = vdwg.mxu0
    %v2460 = vand.u32 %v44, 4294901760
    %v2461 = vsub.f32 %v44, %v2460
    %v2462 = vand.u32 %v2461, 4294901760
    %2463 = vmatprep.subr.mxu0 %v2462
    %v2464 = vand.u32 %v43, 4294901760
    %v2465 = vsub.f32 %v43, %v2464
    %v2466 = vand.u32 %v2465, 4294901760
    %2467 = vmatpush1.msra.mxu0 %v2466
    %v2468 = vand.u32 %v52, 4294901760
    %v2469 = vsub.f32 %v52, %v2468
    %v2470 = vand.u32 %v2469, 4294901760
    %2471 = vmatprep.subr.mxu0 %v2470
    %v2472 = vand.u32 %v51, 4294901760
    %v2473 = vsub.f32 %v51, %v2472
    %v2474 = vand.u32 %v2473, 4294901760
    %2475 = vmatpush1.msra.mxu0 %v2474
    %v2476 = vand.u32 %v60, 4294901760
    %v2477 = vsub.f32 %v60, %v2476
    %v2478 = vand.u32 %v2477, 4294901760
    %2479 = vmatprep.subr.mxu0 %v2478
    %v2480 = vand.u32 %v59, 4294901760
    %v2481 = vsub.f32 %v59, %v2480
    %v2482 = vand.u32 %v2481, 4294901760
    %2483 = vmatpush1.msra.mxu0 %v2482
    %v2484 = vand.u32 %v68, 4294901760
    %v2485 = vsub.f32 %v68, %v2484
    %v2486 = vand.u32 %v2485, 4294901760
    %2487 = vmatprep.subr.mxu0 %v2486
    %v2488 = vand.u32 %v67, 4294901760
    %v2489 = vsub.f32 %v67, %v2488
    %v2490 = vand.u32 %v2489, 4294901760
    %2491 = vmatpush1.msra.mxu0 %v2490
    %v2492 = vand.u32 %v76, 4294901760
    %v2493 = vsub.f32 %v76, %v2492
    %v2494 = vand.u32 %v2493, 4294901760
    %2495 = vmatprep.subr.mxu0 %v2494
    %v2496 = vand.u32 %v75, 4294901760
    %v2497 = vsub.f32 %v75, %v2496
    %v2498 = vand.u32 %v2497, 4294901760
    %2499 = vmatpush1.msra.mxu0 %v2498
    %v2500 = vand.u32 %v84, 4294901760
    %v2501 = vsub.f32 %v84, %v2500
    %v2502 = vand.u32 %v2501, 4294901760
    %2503 = vmatprep.subr.mxu0 %v2502
    %v2504 = vand.u32 %v83, 4294901760
    %v2505 = vsub.f32 %v83, %v2504
    %v2506 = vand.u32 %v2505, 4294901760
    %2507 = vmatpush1.msra.mxu0 %v2506
    %v2508 = vand.u32 %v92, 4294901760
    %v2509 = vsub.f32 %v92, %v2508
    %v2510 = vand.u32 %v2509, 4294901760
    %2511 = vmatprep.subr.mxu0 %v2510
    %v2512 = vand.u32 %v91, 4294901760
    %v2513 = vsub.f32 %v91, %v2512
    %v2514 = vand.u32 %v2513, 4294901760
    %2515 = vmatpush1.msra.mxu0 %v2514
    %v2516 = vand.u32 %v100, 4294901760
    %v2517 = vsub.f32 %v100, %v2516
    %v2518 = vand.u32 %v2517, 4294901760
    %2519 = vmatprep.subr.mxu0 %v2518
    %v2520 = vand.u32 %v99, 4294901760
    %v2521 = vsub.f32 %v99, %v2520
    %v2522 = vand.u32 %v2521, 4294901760
    %2523 = vmatpush1.msra.mxu0 %v2522
    %v2524 = vand.u32 %v108, 4294901760
    %v2525 = vsub.f32 %v108, %v2524
    %v2526 = vand.u32 %v2525, 4294901760
    %2527 = vmatprep.subr.mxu0 %v2526
    %v2528 = vand.u32 %v107, 4294901760
    %v2529 = vsub.f32 %v107, %v2528
    %v2530 = vand.u32 %v2529, 4294901760
    %2531 = vmatpush1.msra.mxu0 %v2530
    %v2532 = vand.u32 %v116, 4294901760
    %v2533 = vsub.f32 %v116, %v2532
    %v2534 = vand.u32 %v2533, 4294901760
    %2535 = vmatprep.subr.mxu0 %v2534
    %v2536 = vand.u32 %v115, 4294901760
    %v2537 = vsub.f32 %v115, %v2536
    %v2538 = vand.u32 %v2537, 4294901760
    %2539 = vmatpush1.msra.mxu0 %v2538
    %v2540 = vand.u32 %v124, 4294901760
    %v2541 = vsub.f32 %v124, %v2540
    %v2542 = vand.u32 %v2541, 4294901760
    %2543 = vmatprep.subr.mxu0 %v2542
    %v2544 = vand.u32 %v123, 4294901760
    %v2545 = vsub.f32 %v123, %v2544
    %v2546 = vand.u32 %v2545, 4294901760
    %2547 = vmatpush1.msra.mxu0 %v2546
    %v2548 = vand.u32 %v132, 4294901760
    %v2549 = vsub.f32 %v132, %v2548
    %v2550 = vand.u32 %v2549, 4294901760
    %2551 = vmatprep.subr.mxu0 %v2550
    %v2552 = vand.u32 %v131, 4294901760
    %v2553 = vsub.f32 %v131, %v2552
    %v2554 = vand.u32 %v2553, 4294901760
    %2555 = vmatpush1.msra.mxu0 %v2554
    %v2556 = vand.u32 %v140, 4294901760
    %v2557 = vsub.f32 %v140, %v2556
    %v2558 = vand.u32 %v2557, 4294901760
    %2559 = vmatprep.subr.mxu0 %v2558
    %v2560 = vand.u32 %v139, 4294901760
    %v2561 = vsub.f32 %v139, %v2560
    %v2562 = vand.u32 %v2561, 4294901760
    %2563 = vmatpush1.msra.mxu0 %v2562
    %v2564 = vand.u32 %v148, 4294901760
    %v2565 = vsub.f32 %v148, %v2564
    %v2566 = vand.u32 %v2565, 4294901760
    %2567 = vmatprep.subr.mxu0 %v2566
    %v2568 = vand.u32 %v147, 4294901760
    %v2569 = vsub.f32 %v147, %v2568
    %v2570 = vand.u32 %v2569, 4294901760
    %2571 = vmatpush1.msra.mxu0 %v2570
    %v2572 = vand.u32 %v156, 4294901760
    %v2573 = vsub.f32 %v156, %v2572
    %v2574 = vand.u32 %v2573, 4294901760
    %2575 = vmatprep.subr.mxu0 %v2574
    %v2576 = vand.u32 %v155, 4294901760
    %v2577 = vsub.f32 %v155, %v2576
    %v2578 = vand.u32 %v2577, 4294901760
    %2579 = vmatpush1.msra.mxu0 %v2578
    %v2580 = vand.u32 %v164, 4294901760
    %v2581 = vsub.f32 %v164, %v2580
    %v2582 = vand.u32 %v2581, 4294901760
    %2583 = vmatprep.subr.mxu0 %v2582
    %v2584 = vand.u32 %v163, 4294901760
    %v2585 = vsub.f32 %v163, %v2584
    %v2586 = vand.u32 %v2585, 4294901760
    %2587 = vmatpush1.msra.mxu0 %v2586
    %2588 = vmatprep.subr.mxu0 0.0
    %2589 = vmatpush1.msra.mxu0 0.0
    %2590 = vmatprep.subr.mxu0 0.0
    %2591 = vmatpush1.msra.mxu0 0.0
    %2592 = vmatprep.subr.mxu0 0.0
    %2593 = vmatpush1.msra.mxu0 0.0
    %2594 = vmatprep.subr.mxu0 0.0
    %2595 = vmatpush1.msra.mxu0 0.0
    %2596 = vmatprep.subr.mxu0 0.0
    %2597 = vmatpush1.msra.mxu0 0.0
    %2598 = vmatprep.subr.mxu0 0.0
    %2599 = vmatpush1.msra.mxu0 0.0
    %2600 = vmatprep.subr.mxu0 0.0
    %2601 = vmatpush1.msra.mxu0 0.0
    %2602 = vmatprep.subr.mxu0 0.0
    %2603 = vmatpush1.msra.mxu0 0.0
    %2604 = vmatprep.subr.mxu0 0.0
    %2605 = vmatpush1.msra.mxu0 0.0
    %2606 = vmatprep.subr.mxu0 0.0
    %2607 = vmatpush1.msra.mxu0 0.0
    %2608 = vmatprep.subr.mxu0 0.0
    %2609 = vmatpush1.msra.mxu0 0.0
    %2610 = vmatprep.subr.mxu0 0.0
    %2611 = vmatpush1.msra.mxu0 0.0
    %2612 = vmatprep.subr.mxu0 0.0
    %2613 = vmatpush1.msra.mxu0 0.0
    %2614 = vmatprep.subr.mxu0 0.0
    %2615 = vmatpush1.msra.mxu0 0.0
    %2616 = vmatprep.subr.mxu0 0.0
    %2617 = vmatpush1.msra.mxu0 0.0
    %2618 = vmatprep.subr.mxu0 0.0
    %2619 = vmatpush1.msra.mxu0 0.0
    %2620 = vmatprep.mubr.f32.mxu0 0.0
    %v2621 = vand.u32 %v38, 4294901760
    %2622 = vmatmul.mubr.f32.gmra.mrb[0].mxu0 %v2621
    %v2623 = vpop.f32.mrb[0].mxu0
    %v2624 = vadd.f32 %v2456, %v2623
    %v2625 = vpop.f32.mrb[0].mxu0
    %v2626 = vadd.f32 %v2458, %v2625
    %2627 = vdwg.mxu0
    %v2628 = vand.u32 %v44, 4294901760
    %2629 = vmatprep.subr.mxu0 %v2628
    %v2630 = vand.u32 %v43, 4294901760
    %2631 = vmatpush1.msra.mxu0 %v2630
    %v2632 = vand.u32 %v52, 4294901760
    %2633 = vmatprep.subr.mxu0 %v2632
    %v2634 = vand.u32 %v51, 4294901760
    %2635 = vmatpush1.msra.mxu0 %v2634
    %v2636 = vand.u32 %v60, 4294901760
    %2637 = vmatprep.subr.mxu0 %v2636
    %v2638 = vand.u32 %v59, 4294901760
    %2639 = vmatpush1.msra.mxu0 %v2638
    %v2640 = vand.u32 %v68, 4294901760
    %2641 = vmatprep.subr.mxu0 %v2640
    %v2642 = vand.u32 %v67, 4294901760
    %2643 = vmatpush1.msra.mxu0 %v2642
    %v2644 = vand.u32 %v76, 4294901760
    %2645 = vmatprep.subr.mxu0 %v2644
    %v2646 = vand.u32 %v75, 4294901760
    %2647 = vmatpush1.msra.mxu0 %v2646
    %v2648 = vand.u32 %v84, 4294901760
    %2649 = vmatprep.subr.mxu0 %v2648
    %v2650 = vand.u32 %v83, 4294901760
    %2651 = vmatpush1.msra.mxu0 %v2650
    %v2652 = vand.u32 %v92, 4294901760
    %2653 = vmatprep.subr.mxu0 %v2652
    %v2654 = vand.u32 %v91, 4294901760
    %2655 = vmatpush1.msra.mxu0 %v2654
    %v2656 = vand.u32 %v100, 4294901760
    %2657 = vmatprep.subr.mxu0 %v2656
    %v2658 = vand.u32 %v99, 4294901760
    %2659 = vmatpush1.msra.mxu0 %v2658
    %v2660 = vand.u32 %v108, 4294901760
    %2661 = vmatprep.subr.mxu0 %v2660
    %v2662 = vand.u32 %v107, 4294901760
    %2663 = vmatpush1.msra.mxu0 %v2662
    %v2664 = vand.u32 %v116, 4294901760
    %2665 = vmatprep.subr.mxu0 %v2664
    %v2666 = vand.u32 %v115, 4294901760
    %2667 = vmatpush1.msra.mxu0 %v2666
    %v2668 = vand.u32 %v124, 4294901760
    %2669 = vmatprep.subr.mxu0 %v2668
    %v2670 = vand.u32 %v123, 4294901760
    %2671 = vmatpush1.msra.mxu0 %v2670
    %v2672 = vand.u32 %v132, 4294901760
    %2673 = vmatprep.subr.mxu0 %v2672
    %v2674 = vand.u32 %v131, 4294901760
    %2675 = vmatpush1.msra.mxu0 %v2674
    %v2676 = vand.u32 %v140, 4294901760
    %2677 = vmatprep.subr.mxu0 %v2676
    %v2678 = vand.u32 %v139, 4294901760
    %2679 = vmatpush1.msra.mxu0 %v2678
    %v2680 = vand.u32 %v148, 4294901760
    %2681 = vmatprep.subr.mxu0 %v2680
    %v2682 = vand.u32 %v147, 4294901760
    %2683 = vmatpush1.msra.mxu0 %v2682
    %v2684 = vand.u32 %v156, 4294901760
    %2685 = vmatprep.subr.mxu0 %v2684
    %v2686 = vand.u32 %v155, 4294901760
    %2687 = vmatpush1.msra.mxu0 %v2686
    %v2688 = vand.u32 %v164, 4294901760
    %2689 = vmatprep.subr.mxu0 %v2688
    %v2690 = vand.u32 %v163, 4294901760
    %2691 = vmatpush1.msra.mxu0 %v2690
    %2692 = vmatprep.subr.mxu0 0.0
    %2693 = vmatpush1.msra.mxu0 0.0
    %2694 = vmatprep.subr.mxu0 0.0
    %2695 = vmatpush1.msra.mxu0 0.0
    %2696 = vmatprep.subr.mxu0 0.0
    %2697 = vmatpush1.msra.mxu0 0.0
    %2698 = vmatprep.subr.mxu0 0.0
    %2699 = vmatpush1.msra.mxu0 0.0
    %2700 = vmatprep.subr.mxu0 0.0
    %2701 = vmatpush1.msra.mxu0 0.0
    %2702 = vmatprep.subr.mxu0 0.0
    %2703 = vmatpush1.msra.mxu0 0.0
    %2704 = vmatprep.subr.mxu0 0.0
    %2705 = vmatpush1.msra.mxu0 0.0
    %2706 = vmatprep.subr.mxu0 0.0
    %2707 = vmatpush1.msra.mxu0 0.0
    %2708 = vmatprep.subr.mxu0 0.0
    %2709 = vmatpush1.msra.mxu0 0.0
    %2710 = vmatprep.subr.mxu0 0.0
    %2711 = vmatpush1.msra.mxu0 0.0
    %2712 = vmatprep.subr.mxu0 0.0
    %2713 = vmatpush1.msra.mxu0 0.0
    %2714 = vmatprep.subr.mxu0 0.0
    %2715 = vmatpush1.msra.mxu0 0.0
    %2716 = vmatprep.subr.mxu0 0.0
    %2717 = vmatpush1.msra.mxu0 0.0
    %2718 = vmatprep.subr.mxu0 0.0
    %2719 = vmatpush1.msra.mxu0 0.0
    %2720 = vmatprep.subr.mxu0 0.0
    %2721 = vmatpush1.msra.mxu0 0.0
    %2722 = vmatprep.subr.mxu0 0.0
    %2723 = vmatpush1.msra.mxu0 0.0
    %2724 = vmatprep.mubr.f32.mxu0 0.0
    %v2725 = vand.u32 %v38, 4294901760
    %2726 = vmatmul.mubr.f32.gmra.mrb[0].mxu0 %v2725
    %v2727 = vpop.f32.mrb[0].mxu0
    %v2728 = vadd.f32 %v2624, %v2727
    %v2729 = vpop.f32.mrb[0].mxu0
    %v2730 = vadd.f32 %v2626, %v2729
    %2731 = vdwg.mxu0
    %v2732 = vand.u32 %v46, 4294901760
    %2733 = vmatprep.subr.mxu0 %v2732
    %v2734 = vand.u32 %v45, 4294901760
    %2735 = vmatpush1.msra.mxu0 %v2734
    %v2736 = vand.u32 %v54, 4294901760
    %2737 = vmatprep.subr.mxu0 %v2736
    %v2738 = vand.u32 %v53, 4294901760
    %2739 = vmatpush1.msra.mxu0 %v2738
    %v2740 = vand.u32 %v62, 4294901760
    %2741 = vmatprep.subr.mxu0 %v2740
    %v2742 = vand.u32 %v61, 4294901760
    %2743 = vmatpush1.msra.mxu0 %v2742
    %v2744 = vand.u32 %v70, 4294901760
    %2745 = vmatprep.subr.mxu0 %v2744
    %v2746 = vand.u32 %v69, 4294901760
    %2747 = vmatpush1.msra.mxu0 %v2746
    %v2748 = vand.u32 %v78, 4294901760
    %2749 = vmatprep.subr.mxu0 %v2748
    %v2750 = vand.u32 %v77, 4294901760
    %2751 = vmatpush1.msra.mxu0 %v2750
    %v2752 = vand.u32 %v86, 4294901760
    %2753 = vmatprep.subr.mxu0 %v2752
    %v2754 = vand.u32 %v85, 4294901760
    %2755 = vmatpush1.msra.mxu0 %v2754
    %v2756 = vand.u32 %v94, 4294901760
    %2757 = vmatprep.subr.mxu0 %v2756
    %v2758 = vand.u32 %v93, 4294901760
    %2759 = vmatpush1.msra.mxu0 %v2758
    %v2760 = vand.u32 %v102, 4294901760
    %2761 = vmatprep.subr.mxu0 %v2760
    %v2762 = vand.u32 %v101, 4294901760
    %2763 = vmatpush1.msra.mxu0 %v2762
    %v2764 = vand.u32 %v110, 4294901760
    %2765 = vmatprep.subr.mxu0 %v2764
    %v2766 = vand.u32 %v109, 4294901760
    %2767 = vmatpush1.msra.mxu0 %v2766
    %v2768 = vand.u32 %v118, 4294901760
    %2769 = vmatprep.subr.mxu0 %v2768
    %v2770 = vand.u32 %v117, 4294901760
    %2771 = vmatpush1.msra.mxu0 %v2770
    %v2772 = vand.u32 %v126, 4294901760
    %2773 = vmatprep.subr.mxu0 %v2772
    %v2774 = vand.u32 %v125, 4294901760
    %2775 = vmatpush1.msra.mxu0 %v2774
    %v2776 = vand.u32 %v134, 4294901760
    %2777 = vmatprep.subr.mxu0 %v2776
    %v2778 = vand.u32 %v133, 4294901760
    %2779 = vmatpush1.msra.mxu0 %v2778
    %v2780 = vand.u32 %v142, 4294901760
    %2781 = vmatprep.subr.mxu0 %v2780
    %v2782 = vand.u32 %v141, 4294901760
    %2783 = vmatpush1.msra.mxu0 %v2782
    %v2784 = vand.u32 %v150, 4294901760
    %2785 = vmatprep.subr.mxu0 %v2784
    %v2786 = vand.u32 %v149, 4294901760
    %2787 = vmatpush1.msra.mxu0 %v2786
    %v2788 = vand.u32 %v158, 4294901760
    %2789 = vmatprep.subr.mxu0 %v2788
    %v2790 = vand.u32 %v157, 4294901760
    %2791 = vmatpush1.msra.mxu0 %v2790
    %v2792 = vand.u32 %v166, 4294901760
    %2793 = vmatprep.subr.mxu0 %v2792
    %v2794 = vand.u32 %v165, 4294901760
    %2795 = vmatpush1.msra.mxu0 %v2794
    %2796 = vmatprep.subr.mxu0 0.0
    %2797 = vmatpush1.msra.mxu0 0.0
    %2798 = vmatprep.subr.mxu0 0.0
    %2799 = vmatpush1.msra.mxu0 0.0
    %2800 = vmatprep.subr.mxu0 0.0
    %2801 = vmatpush1.msra.mxu0 0.0
    %2802 = vmatprep.subr.mxu0 0.0
    %2803 = vmatpush1.msra.mxu0 0.0
    %2804 = vmatprep.subr.mxu0 0.0
    %2805 = vmatpush1.msra.mxu0 0.0
    %2806 = vmatprep.subr.mxu0 0.0
    %2807 = vmatpush1.msra.mxu0 0.0
    %2808 = vmatprep.subr.mxu0 0.0
    %2809 = vmatpush1.msra.mxu0 0.0
    %2810 = vmatprep.subr.mxu0 0.0
    %2811 = vmatpush1.msra.mxu0 0.0
    %2812 = vmatprep.subr.mxu0 0.0
    %2813 = vmatpush1.msra.mxu0 0.0
    %2814 = vmatprep.subr.mxu0 0.0
    %2815 = vmatpush1.msra.mxu0 0.0
    %2816 = vmatprep.subr.mxu0 0.0
    %2817 = vmatpush1.msra.mxu0 0.0
    %2818 = vmatprep.subr.mxu0 0.0
    %2819 = vmatpush1.msra.mxu0 0.0
    %2820 = vmatprep.subr.mxu0 0.0
    %2821 = vmatpush1.msra.mxu0 0.0
    %2822 = vmatprep.subr.mxu0 0.0
    %2823 = vmatpush1.msra.mxu0 0.0
    %2824 = vmatprep.subr.mxu0 0.0
    %2825 = vmatpush1.msra.mxu0 0.0
    %2826 = vmatprep.subr.mxu0 0.0
    %2827 = vmatpush1.msra.mxu0 0.0
    %2828 = vmatprep.mubr.f32.mxu0 0.0
    %v2829 = vand.u32 %v38, 4294901760
    %v2830 = vsub.f32 %v38, %v2829
    %v2831 = vand.u32 %v2830, 4294901760
    %v2832 = vsub.f32 %v2830, %v2831
    %v2833 = vand.u32 %v2832, 4294901760
    %2834 = vmatmul.mubr.f32.gmra.mrb[0].mxu0 %v2833
    %v2835 = vpop.f32.mrb[0].mxu0
    %v2836 = vadd.f32 0.0, %v2835
    %v2837 = vpop.f32.mrb[0].mxu0
    %v2838 = vadd.f32 0.0, %v2837
    %2839 = vdwg.mxu0
    %v2840 = vand.u32 %v46, 4294901760
    %v2841 = vsub.f32 %v46, %v2840
    %v2842 = vand.u32 %v2841, 4294901760
    %v2843 = vsub.f32 %v2841, %v2842
    %v2844 = vand.u32 %v2843, 4294901760
    %2845 = vmatprep.subr.mxu0 %v2844
    %v2846 = vand.u32 %v45, 4294901760
    %v2847 = vsub.f32 %v45, %v2846
    %v2848 = vand.u32 %v2847, 4294901760
    %v2849 = vsub.f32 %v2847, %v2848
    %v2850 = vand.u32 %v2849, 4294901760
    %2851 = vmatpush1.msra.mxu0 %v2850
    %v2852 = vand.u32 %v54, 4294901760
    %v2853 = vsub.f32 %v54, %v2852
    %v2854 = vand.u32 %v2853, 4294901760
    %v2855 = vsub.f32 %v2853, %v2854
    %v2856 = vand.u32 %v2855, 4294901760
    %2857 = vmatprep.subr.mxu0 %v2856
    %v2858 = vand.u32 %v53, 4294901760
    %v2859 = vsub.f32 %v53, %v2858
    %v2860 = vand.u32 %v2859, 4294901760
    %v2861 = vsub.f32 %v2859, %v2860
    %v2862 = vand.u32 %v2861, 4294901760
    %2863 = vmatpush1.msra.mxu0 %v2862
    %v2864 = vand.u32 %v62, 4294901760
    %v2865 = vsub.f32 %v62, %v2864
    %v2866 = vand.u32 %v2865, 4294901760
    %v2867 = vsub.f32 %v2865, %v2866
    %v2868 = vand.u32 %v2867, 4294901760
    %2869 = vmatprep.subr.mxu0 %v2868
    %v2870 = vand.u32 %v61, 4294901760
    %v2871 = vsub.f32 %v61, %v2870
    %v2872 = vand.u32 %v2871, 4294901760
    %v2873 = vsub.f32 %v2871, %v2872
    %v2874 = vand.u32 %v2873, 4294901760
    %2875 = vmatpush1.msra.mxu0 %v2874
    %v2876 = vand.u32 %v70, 4294901760
    %v2877 = vsub.f32 %v70, %v2876
    %v2878 = vand.u32 %v2877, 4294901760
    %v2879 = vsub.f32 %v2877, %v2878
    %v2880 = vand.u32 %v2879, 4294901760
    %2881 = vmatprep.subr.mxu0 %v2880
    %v2882 = vand.u32 %v69, 4294901760
    %v2883 = vsub.f32 %v69, %v2882
    %v2884 = vand.u32 %v2883, 4294901760
    %v2885 = vsub.f32 %v2883, %v2884
    %v2886 = vand.u32 %v2885, 4294901760
    %2887 = vmatpush1.msra.mxu0 %v2886
    %v2888 = vand.u32 %v78, 4294901760
    %v2889 = vsub.f32 %v78, %v2888
    %v2890 = vand.u32 %v2889, 4294901760
    %v2891 = vsub.f32 %v2889, %v2890
    %v2892 = vand.u32 %v2891, 4294901760
    %2893 = vmatprep.subr.mxu0 %v2892
    %v2894 = vand.u32 %v77, 4294901760
    %v2895 = vsub.f32 %v77, %v2894
    %v2896 = vand.u32 %v2895, 4294901760
    %v2897 = vsub.f32 %v2895, %v2896
    %v2898 = vand.u32 %v2897, 4294901760
    %2899 = vmatpush1.msra.mxu0 %v2898
    %v2900 = vand.u32 %v86, 4294901760
    %v2901 = vsub.f32 %v86, %v2900
    %v2902 = vand.u32 %v2901, 4294901760
    %v2903 = vsub.f32 %v2901, %v2902
    %v2904 = vand.u32 %v2903, 4294901760
    %2905 = vmatprep.subr.mxu0 %v2904
    %v2906 = vand.u32 %v85, 4294901760
    %v2907 = vsub.f32 %v85, %v2906
    %v2908 = vand.u32 %v2907, 4294901760
    %v2909 = vsub.f32 %v2907, %v2908
    %v2910 = vand.u32 %v2909, 4294901760
    %2911 = vmatpush1.msra.mxu0 %v2910
    %v2912 = vand.u32 %v94, 4294901760
    %v2913 = vsub.f32 %v94, %v2912
    %v2914 = vand.u32 %v2913, 4294901760
    %v2915 = vsub.f32 %v2913, %v2914
    %v2916 = vand.u32 %v2915, 4294901760
    %2917 = vmatprep.subr.mxu0 %v2916
    %v2918 = vand.u32 %v93, 4294901760
    %v2919 = vsub.f32 %v93, %v2918
    %v2920 = vand.u32 %v2919, 4294901760
    %v2921 = vsub.f32 %v2919, %v2920
    %v2922 = vand.u32 %v2921, 4294901760
    %2923 = vmatpush1.msra.mxu0 %v2922
    %v2924 = vand.u32 %v102, 4294901760
    %v2925 = vsub.f32 %v102, %v2924
    %v2926 = vand.u32 %v2925, 4294901760
    %v2927 = vsub.f32 %v2925, %v2926
    %v2928 = vand.u32 %v2927, 4294901760
    %2929 = vmatprep.subr.mxu0 %v2928
    %v2930 = vand.u32 %v101, 4294901760
    %v2931 = vsub.f32 %v101, %v2930
    %v2932 = vand.u32 %v2931, 4294901760
    %v2933 = vsub.f32 %v2931, %v2932
    %v2934 = vand.u32 %v2933, 4294901760
    %2935 = vmatpush1.msra.mxu0 %v2934
    %v2936 = vand.u32 %v110, 4294901760
    %v2937 = vsub.f32 %v110, %v2936
    %v2938 = vand.u32 %v2937, 4294901760
    %v2939 = vsub.f32 %v2937, %v2938
    %v2940 = vand.u32 %v2939, 4294901760
    %2941 = vmatprep.subr.mxu0 %v2940
    %v2942 = vand.u32 %v109, 4294901760
    %v2943 = vsub.f32 %v109, %v2942
    %v2944 = vand.u32 %v2943, 4294901760
    %v2945 = vsub.f32 %v2943, %v2944
    %v2946 = vand.u32 %v2945, 4294901760
    %2947 = vmatpush1.msra.mxu0 %v2946
    %v2948 = vand.u32 %v118, 4294901760
    %v2949 = vsub.f32 %v118, %v2948
    %v2950 = vand.u32 %v2949, 4294901760
    %v2951 = vsub.f32 %v2949, %v2950
    %v2952 = vand.u32 %v2951, 4294901760
    %2953 = vmatprep.subr.mxu0 %v2952
    %v2954 = vand.u32 %v117, 4294901760
    %v2955 = vsub.f32 %v117, %v2954
    %v2956 = vand.u32 %v2955, 4294901760
    %v2957 = vsub.f32 %v2955, %v2956
    %v2958 = vand.u32 %v2957, 4294901760
    %2959 = vmatpush1.msra.mxu0 %v2958
    %v2960 = vand.u32 %v126, 4294901760
    %v2961 = vsub.f32 %v126, %v2960
    %v2962 = vand.u32 %v2961, 4294901760
    %v2963 = vsub.f32 %v2961, %v2962
    %v2964 = vand.u32 %v2963, 4294901760
    %2965 = vmatprep.subr.mxu0 %v2964
    %v2966 = vand.u32 %v125, 4294901760
    %v2967 = vsub.f32 %v125, %v2966
    %v2968 = vand.u32 %v2967, 4294901760
    %v2969 = vsub.f32 %v2967, %v2968
    %v2970 = vand.u32 %v2969, 4294901760
    %2971 = vmatpush1.msra.mxu0 %v2970
    %v2972 = vand.u32 %v134, 4294901760
    %v2973 = vsub.f32 %v134, %v2972
    %v2974 = vand.u32 %v2973, 4294901760
    %v2975 = vsub.f32 %v2973, %v2974
    %v2976 = vand.u32 %v2975, 4294901760
    %2977 = vmatprep.subr.mxu0 %v2976
    %v2978 = vand.u32 %v133, 4294901760
    %v2979 = vsub.f32 %v133, %v2978
    %v2980 = vand.u32 %v2979, 4294901760
    %v2981 = vsub.f32 %v2979, %v2980
    %v2982 = vand.u32 %v2981, 4294901760
    %2983 = vmatpush1.msra.mxu0 %v2982
    %v2984 = vand.u32 %v142, 4294901760
    %v2985 = vsub.f32 %v142, %v2984
    %v2986 = vand.u32 %v2985, 4294901760
    %v2987 = vsub.f32 %v2985, %v2986
    %v2988 = vand.u32 %v2987, 4294901760
    %2989 = vmatprep.subr.mxu0 %v2988
    %v2990 = vand.u32 %v141, 4294901760
    %v2991 = vsub.f32 %v141, %v2990
    %v2992 = vand.u32 %v2991, 4294901760
    %v2993 = vsub.f32 %v2991, %v2992
    %v2994 = vand.u32 %v2993, 4294901760
    %2995 = vmatpush1.msra.mxu0 %v2994
    %v2996 = vand.u32 %v150, 4294901760
    %v2997 = vsub.f32 %v150, %v2996
    %v2998 = vand.u32 %v2997, 4294901760
    %v2999 = vsub.f32 %v2997, %v2998
    %v3000 = vand.u32 %v2999, 4294901760
    %3001 = vmatprep.subr.mxu0 %v3000
    %v3002 = vand.u32 %v149, 4294901760
    %v3003 = vsub.f32 %v149, %v3002
    %v3004 = vand.u32 %v3003, 4294901760
    %v3005 = vsub.f32 %v3003, %v3004
    %v3006 = vand.u32 %v3005, 4294901760
    %3007 = vmatpush1.msra.mxu0 %v3006
    %v3008 = vand.u32 %v158, 4294901760
    %v3009 = vsub.f32 %v158, %v3008
    %v3010 = vand.u32 %v3009, 4294901760
    %v3011 = vsub.f32 %v3009, %v3010
    %v3012 = vand.u32 %v3011, 4294901760
    %3013 = vmatprep.subr.mxu0 %v3012
    %v3014 = vand.u32 %v157, 4294901760
    %v3015 = vsub.f32 %v157, %v3014
    %v3016 = vand.u32 %v3015, 4294901760
    %v3017 = vsub.f32 %v3015, %v3016
    %v3018 = vand.u32 %v3017, 4294901760
    %3019 = vmatpush1.msra.mxu0 %v3018
    %v3020 = vand.u32 %v166, 4294901760
    %v3021 = vsub.f32 %v166, %v3020
    %v3022 = vand.u32 %v3021, 4294901760
    %v3023 = vsub.f32 %v3021, %v3022
    %v3024 = vand.u32 %v3023, 4294901760
    %3025 = vmatprep.subr.mxu0 %v3024
    %v3026 = vand.u32 %v165, 4294901760
    %v3027 = vsub.f32 %v165, %v3026
    %v3028 = vand.u32 %v3027, 4294901760
    %v3029 = vsub.f32 %v3027, %v3028
    %v3030 = vand.u32 %v3029, 4294901760
    %3031 = vmatpush1.msra.mxu0 %v3030
    %3032 = vmatprep.subr.mxu0 0.0
    %3033 = vmatpush1.msra.mxu0 0.0
    %3034 = vmatprep.subr.mxu0 0.0
    %3035 = vmatpush1.msra.mxu0 0.0
    %3036 = vmatprep.subr.mxu0 0.0
    %3037 = vmatpush1.msra.mxu0 0.0
    %3038 = vmatprep.subr.mxu0 0.0
    %3039 = vmatpush1.msra.mxu0 0.0
    %3040 = vmatprep.subr.mxu0 0.0
    %3041 = vmatpush1.msra.mxu0 0.0
    %3042 = vmatprep.subr.mxu0 0.0
    %3043 = vmatpush1.msra.mxu0 0.0
    %3044 = vmatprep.subr.mxu0 0.0
    %3045 = vmatpush1.msra.mxu0 0.0
    %3046 = vmatprep.subr.mxu0 0.0
    %3047 = vmatpush1.msra.mxu0 0.0
    %3048 = vmatprep.subr.mxu0 0.0
    %3049 = vmatpush1.msra.mxu0 0.0
    %3050 = vmatprep.subr.mxu0 0.0
    %3051 = vmatpush1.msra.mxu0 0.0
    %3052 = vmatprep.subr.mxu0 0.0
    %3053 = vmatpush1.msra.mxu0 0.0
    %3054 = vmatprep.subr.mxu0 0.0
    %3055 = vmatpush1.msra.mxu0 0.0
    %3056 = vmatprep.subr.mxu0 0.0
    %3057 = vmatpush1.msra.mxu0 0.0
    %3058 = vmatprep.subr.mxu0 0.0
    %3059 = vmatpush1.msra.mxu0 0.0
    %3060 = vmatprep.subr.mxu0 0.0
    %3061 = vmatpush1.msra.mxu0 0.0
    %3062 = vmatprep.subr.mxu0 0.0
    %3063 = vmatpush1.msra.mxu0 0.0
    %3064 = vmatprep.mubr.f32.mxu0 0.0
    %v3065 = vand.u32 %v38, 4294901760
    %3066 = vmatmul.mubr.f32.gmra.mrb[0].mxu0 %v3065
    %v3067 = vpop.f32.mrb[0].mxu0
    %v3068 = vadd.f32 %v2836, %v3067
    %v3069 = vpop.f32.mrb[0].mxu0
    %v3070 = vadd.f32 %v2838, %v3069
    %3071 = vdwg.mxu0
    %v3072 = vand.u32 %v46, 4294901760
    %v3073 = vsub.f32 %v46, %v3072
    %3074 = vmatprep.subr.mxu0 %v3073
    %v3075 = vand.u32 %v45, 4294901760
    %v3076 = vsub.f32 %v45, %v3075
    %3077 = vmatpush1.msra.mxu0 %v3076
    %v3078 = vand.u32 %v54, 4294901760
    %v3079 = vsub.f32 %v54, %v3078
    %3080 = vmatprep.subr.mxu0 %v3079
    %v3081 = vand.u32 %v53, 4294901760
    %v3082 = vsub.f32 %v53, %v3081
    %3083 = vmatpush1.msra.mxu0 %v3082
    %v3084 = vand.u32 %v62, 4294901760
    %v3085 = vsub.f32 %v62, %v3084
    %3086 = vmatprep.subr.mxu0 %v3085
    %v3087 = vand.u32 %v61, 4294901760
    %v3088 = vsub.f32 %v61, %v3087
    %3089 = vmatpush1.msra.mxu0 %v3088
    %v3090 = vand.u32 %v70, 4294901760
    %v3091 = vsub.f32 %v70, %v3090
    %3092 = vmatprep.subr.mxu0 %v3091
    %v3093 = vand.u32 %v69, 4294901760
    %v3094 = vsub.f32 %v69, %v3093
    %3095 = vmatpush1.msra.mxu0 %v3094
    %v3096 = vand.u32 %v78, 4294901760
    %v3097 = vsub.f32 %v78, %v3096
    %3098 = vmatprep.subr.mxu0 %v3097
    %v3099 = vand.u32 %v77, 4294901760
    %v3100 = vsub.f32 %v77, %v3099
    %3101 = vmatpush1.msra.mxu0 %v3100
    %v3102 = vand.u32 %v86, 4294901760
    %v3103 = vsub.f32 %v86, %v3102
    %3104 = vmatprep.subr.mxu0 %v3103
    %v3105 = vand.u32 %v85, 4294901760
    %v3106 = vsub.f32 %v85, %v3105
    %3107 = vmatpush1.msra.mxu0 %v3106
    %v3108 = vand.u32 %v94, 4294901760
    %v3109 = vsub.f32 %v94, %v3108
    %3110 = vmatprep.subr.mxu0 %v3109
    %v3111 = vand.u32 %v93, 4294901760
    %v3112 = vsub.f32 %v93, %v3111
    %3113 = vmatpush1.msra.mxu0 %v3112
    %v3114 = vand.u32 %v102, 4294901760
    %v3115 = vsub.f32 %v102, %v3114
    %3116 = vmatprep.subr.mxu0 %v3115
    %v3117 = vand.u32 %v101, 4294901760
    %v3118 = vsub.f32 %v101, %v3117
    %3119 = vmatpush1.msra.mxu0 %v3118
    %v3120 = vand.u32 %v110, 4294901760
    %v3121 = vsub.f32 %v110, %v3120
    %3122 = vmatprep.subr.mxu0 %v3121
    %v3123 = vand.u32 %v109, 4294901760
    %v3124 = vsub.f32 %v109, %v3123
    %3125 = vmatpush1.msra.mxu0 %v3124
    %v3126 = vand.u32 %v118, 4294901760
    %v3127 = vsub.f32 %v118, %v3126
    %3128 = vmatprep.subr.mxu0 %v3127
    %v3129 = vand.u32 %v117, 4294901760
    %v3130 = vsub.f32 %v117, %v3129
    %3131 = vmatpush1.msra.mxu0 %v3130
    %v3132 = vand.u32 %v126, 4294901760
    %v3133 = vsub.f32 %v126, %v3132
    %3134 = vmatprep.subr.mxu0 %v3133
    %v3135 = vand.u32 %v125, 4294901760
    %v3136 = vsub.f32 %v125, %v3135
    %3137 = vmatpush1.msra.mxu0 %v3136
    %v3138 = vand.u32 %v134, 4294901760
    %v3139 = vsub.f32 %v134, %v3138
    %3140 = vmatprep.subr.mxu0 %v3139
    %v3141 = vand.u32 %v133, 4294901760
    %v3142 = vsub.f32 %v133, %v3141
    %3143 = vmatpush1.msra.mxu0 %v3142
    %v3144 = vand.u32 %v142, 4294901760
    %v3145 = vsub.f32 %v142, %v3144
    %3146 = vmatprep.subr.mxu0 %v3145
    %v3147 = vand.u32 %v141, 4294901760
    %v3148 = vsub.f32 %v141, %v3147
    %3149 = vmatpush1.msra.mxu0 %v3148
    %v3150 = vand.u32 %v150, 4294901760
    %v3151 = vsub.f32 %v150, %v3150
    %3152 = vmatprep.subr.mxu0 %v3151
    %v3153 = vand.u32 %v149, 4294901760
    %v3154 = vsub.f32 %v149, %v3153
    %3155 = vmatpush1.msra.mxu0 %v3154
    %v3156 = vand.u32 %v158, 4294901760
    %v3157 = vsub.f32 %v158, %v3156
    %3158 = vmatprep.subr.mxu0 %v3157
    %v3159 = vand.u32 %v157, 4294901760
    %v3160 = vsub.f32 %v157, %v3159
    %3161 = vmatpush1.msra.mxu0 %v3160
    %v3162 = vand.u32 %v166, 4294901760
    %v3163 = vsub.f32 %v166, %v3162
    %3164 = vmatprep.subr.mxu0 %v3163
    %v3165 = vand.u32 %v165, 4294901760
    %v3166 = vsub.f32 %v165, %v3165
    %3167 = vmatpush1.msra.mxu0 %v3166
    %3168 = vmatprep.subr.mxu0 0.0
    %3169 = vmatpush1.msra.mxu0 0.0
    %3170 = vmatprep.subr.mxu0 0.0
    %3171 = vmatpush1.msra.mxu0 0.0
    %3172 = vmatprep.subr.mxu0 0.0
    %3173 = vmatpush1.msra.mxu0 0.0
    %3174 = vmatprep.subr.mxu0 0.0
    %3175 = vmatpush1.msra.mxu0 0.0
    %3176 = vmatprep.subr.mxu0 0.0
    %3177 = vmatpush1.msra.mxu0 0.0
    %3178 = vmatprep.subr.mxu0 0.0
    %3179 = vmatpush1.msra.mxu0 0.0
    %3180 = vmatprep.subr.mxu0 0.0
    %3181 = vmatpush1.msra.mxu0 0.0
    %3182 = vmatprep.subr.mxu0 0.0
    %3183 = vmatpush1.msra.mxu0 0.0
    %3184 = vmatprep.subr.mxu0 0.0
    %3185 = vmatpush1.msra.mxu0 0.0
    %3186 = vmatprep.subr.mxu0 0.0
    %3187 = vmatpush1.msra.mxu0 0.0
    %3188 = vmatprep.subr.mxu0 0.0
    %3189 = vmatpush1.msra.mxu0 0.0
    %3190 = vmatprep.subr.mxu0 0.0
    %3191 = vmatpush1.msra.mxu0 0.0
    %3192 = vmatprep.subr.mxu0 0.0
    %3193 = vmatpush1.msra.mxu0 0.0
    %3194 = vmatprep.subr.mxu0 0.0
    %3195 = vmatpush1.msra.mxu0 0.0
    %3196 = vmatprep.subr.mxu0 0.0
    %3197 = vmatpush1.msra.mxu0 0.0
    %3198 = vmatprep.subr.mxu0 0.0
    %3199 = vmatpush1.msra.mxu0 0.0
    %3200 = vmatprep.mubr.f32.mxu0 0.0
    %v3201 = vand.u32 %v38, 4294901760
    %v3202 = vsub.f32 %v38, %v3201
    %3203 = vmatmul.mubr.f32.gmra.mrb[0].mxu0 %v3202
    %v3204 = vpop.f32.mrb[0].mxu0
    %v3205 = vadd.f32 %v3068, %v3204
    %v3206 = vpop.f32.mrb[0].mxu0
    %v3207 = vadd.f32 %v3070, %v3206
    %3208 = vdwg.mxu0
    %v3209 = vand.u32 %v46, 4294901760
    %3210 = vmatprep.subr.mxu0 %v3209
    %v3211 = vand.u32 %v45, 4294901760
    %3212 = vmatpush1.msra.mxu0 %v3211
    %v3213 = vand.u32 %v54, 4294901760
    %3214 = vmatprep.subr.mxu0 %v3213
    %v3215 = vand.u32 %v53, 4294901760
    %3216 = vmatpush1.msra.mxu0 %v3215
    %v3217 = vand.u32 %v62, 4294901760
    %3218 = vmatprep.subr.mxu0 %v3217
    %v3219 = vand.u32 %v61, 4294901760
    %3220 = vmatpush1.msra.mxu0 %v3219
    %v3221 = vand.u32 %v70, 4294901760
    %3222 = vmatprep.subr.mxu0 %v3221
    %v3223 = vand.u32 %v69, 4294901760
    %3224 = vmatpush1.msra.mxu0 %v3223
    %v3225 = vand.u32 %v78, 4294901760
    %3226 = vmatprep.subr.mxu0 %v3225
    %v3227 = vand.u32 %v77, 4294901760
    %3228 = vmatpush1.msra.mxu0 %v3227
    %v3229 = vand.u32 %v86, 4294901760
    %3230 = vmatprep.subr.mxu0 %v3229
    %v3231 = vand.u32 %v85, 4294901760
    %3232 = vmatpush1.msra.mxu0 %v3231
    %v3233 = vand.u32 %v94, 4294901760
    %3234 = vmatprep.subr.mxu0 %v3233
    %v3235 = vand.u32 %v93, 4294901760
    %3236 = vmatpush1.msra.mxu0 %v3235
    %v3237 = vand.u32 %v102, 4294901760
    %3238 = vmatprep.subr.mxu0 %v3237
    %v3239 = vand.u32 %v101, 4294901760
    %3240 = vmatpush1.msra.mxu0 %v3239
    %v3241 = vand.u32 %v110, 4294901760
    %3242 = vmatprep.subr.mxu0 %v3241
    %v3243 = vand.u32 %v109, 4294901760
    %3244 = vmatpush1.msra.mxu0 %v3243
    %v3245 = vand.u32 %v118, 4294901760
    %3246 = vmatprep.subr.mxu0 %v3245
    %v3247 = vand.u32 %v117, 4294901760
    %3248 = vmatpush1.msra.mxu0 %v3247
    %v3249 = vand.u32 %v126, 4294901760
    %3250 = vmatprep.subr.mxu0 %v3249
    %v3251 = vand.u32 %v125, 4294901760
    %3252 = vmatpush1.msra.mxu0 %v3251
    %v3253 = vand.u32 %v134, 4294901760
    %3254 = vmatprep.subr.mxu0 %v3253
    %v3255 = vand.u32 %v133, 4294901760
    %3256 = vmatpush1.msra.mxu0 %v3255
    %v3257 = vand.u32 %v142, 4294901760
    %3258 = vmatprep.subr.mxu0 %v3257
    %v3259 = vand.u32 %v141, 4294901760
    %3260 = vmatpush1.msra.mxu0 %v3259
    %v3261 = vand.u32 %v150, 4294901760
    %3262 = vmatprep.subr.mxu0 %v3261
    %v3263 = vand.u32 %v149, 4294901760
    %3264 = vmatpush1.msra.mxu0 %v3263
    %v3265 = vand.u32 %v158, 4294901760
    %3266 = vmatprep.subr.mxu0 %v3265
    %v3267 = vand.u32 %v157, 4294901760
    %3268 = vmatpush1.msra.mxu0 %v3267
    %v3269 = vand.u32 %v166, 4294901760
    %3270 = vmatprep.subr.mxu0 %v3269
    %v3271 = vand.u32 %v165, 4294901760
    %3272 = vmatpush1.msra.mxu0 %v3271
    %3273 = vmatprep.subr.mxu0 0.0
    %3274 = vmatpush1.msra.mxu0 0.0
    %3275 = vmatprep.subr.mxu0 0.0
    %3276 = vmatpush1.msra.mxu0 0.0
    %3277 = vmatprep.subr.mxu0 0.0
    %3278 = vmatpush1.msra.mxu0 0.0
    %3279 = vmatprep.subr.mxu0 0.0
    %3280 = vmatpush1.msra.mxu0 0.0
    %3281 = vmatprep.subr.mxu0 0.0
    %3282 = vmatpush1.msra.mxu0 0.0
    %3283 = vmatprep.subr.mxu0 0.0
    %3284 = vmatpush1.msra.mxu0 0.0
    %3285 = vmatprep.subr.mxu0 0.0
    %3286 = vmatpush1.msra.mxu0 0.0
    %3287 = vmatprep.subr.mxu0 0.0
    %3288 = vmatpush1.msra.mxu0 0.0
    %3289 = vmatprep.subr.mxu0 0.0
    %3290 = vmatpush1.msra.mxu0 0.0
    %3291 = vmatprep.subr.mxu0 0.0
    %3292 = vmatpush1.msra.mxu0 0.0
    %3293 = vmatprep.subr.mxu0 0.0
    %3294 = vmatpush1.msra.mxu0 0.0
    %3295 = vmatprep.subr.mxu0 0.0
    %3296 = vmatpush1.msra.mxu0 0.0
    %3297 = vmatprep.subr.mxu0 0.0
    %3298 = vmatpush1.msra.mxu0 0.0
    %3299 = vmatprep.subr.mxu0 0.0
    %3300 = vmatpush1.msra.mxu0 0.0
    %3301 = vmatprep.subr.mxu0 0.0
    %3302 = vmatpush1.msra.mxu0 0.0
    %3303 = vmatprep.subr.mxu0 0.0
    %3304 = vmatpush1.msra.mxu0 0.0
    %3305 = vmatprep.mubr.f32.mxu0 0.0
    %v3306 = vand.u32 %v38, 4294901760
    %v3307 = vsub.f32 %v38, %v3306
    %v3308 = vand.u32 %v3307, 4294901760
    %3309 = vmatmul.mubr.f32.gmra.mrb[0].mxu0 %v3308
    %v3310 = vpop.f32.mrb[0].mxu0
    %v3311 = vadd.f32 %v3205, %v3310
    %v3312 = vpop.f32.mrb[0].mxu0
    %v3313 = vadd.f32 %v3207, %v3312
    %3314 = vdwg.mxu0
    %v3315 = vand.u32 %v46, 4294901760
    %v3316 = vsub.f32 %v46, %v3315
    %v3317 = vand.u32 %v3316, 4294901760
    %3318 = vmatprep.subr.mxu0 %v3317
    %v3319 = vand.u32 %v45, 4294901760
    %v3320 = vsub.f32 %v45, %v3319
    %v3321 = vand.u32 %v3320, 4294901760
    %3322 = vmatpush1.msra.mxu0 %v3321
    %v3323 = vand.u32 %v54, 4294901760
    %v3324 = vsub.f32 %v54, %v3323
    %v3325 = vand.u32 %v3324, 4294901760
    %3326 = vmatprep.subr.mxu0 %v3325
    %v3327 = vand.u32 %v53, 4294901760
    %v3328 = vsub.f32 %v53, %v3327
    %v3329 = vand.u32 %v3328, 4294901760
    %3330 = vmatpush1.msra.mxu0 %v3329
    %v3331 = vand.u32 %v62, 4294901760
    %v3332 = vsub.f32 %v62, %v3331
    %v3333 = vand.u32 %v3332, 4294901760
    %3334 = vmatprep.subr.mxu0 %v3333
    %v3335 = vand.u32 %v61, 4294901760
    %v3336 = vsub.f32 %v61, %v3335
    %v3337 = vand.u32 %v3336, 4294901760
    %3338 = vmatpush1.msra.mxu0 %v3337
    %v3339 = vand.u32 %v70, 4294901760
    %v3340 = vsub.f32 %v70, %v3339
    %v3341 = vand.u32 %v3340, 4294901760
    %3342 = vmatprep.subr.mxu0 %v3341
    %v3343 = vand.u32 %v69, 4294901760
    %v3344 = vsub.f32 %v69, %v3343
    %v3345 = vand.u32 %v3344, 4294901760
    %3346 = vmatpush1.msra.mxu0 %v3345
    %v3347 = vand.u32 %v78, 4294901760
    %v3348 = vsub.f32 %v78, %v3347
    %v3349 = vand.u32 %v3348, 4294901760
    %3350 = vmatprep.subr.mxu0 %v3349
    %v3351 = vand.u32 %v77, 4294901760
    %v3352 = vsub.f32 %v77, %v3351
    %v3353 = vand.u32 %v3352, 4294901760
    %3354 = vmatpush1.msra.mxu0 %v3353
    %v3355 = vand.u32 %v86, 4294901760
    %v3356 = vsub.f32 %v86, %v3355
    %v3357 = vand.u32 %v3356, 4294901760
    %3358 = vmatprep.subr.mxu0 %v3357
    %v3359 = vand.u32 %v85, 4294901760
    %v3360 = vsub.f32 %v85, %v3359
    %v3361 = vand.u32 %v3360, 4294901760
    %3362 = vmatpush1.msra.mxu0 %v3361
    %v3363 = vand.u32 %v94, 4294901760
    %v3364 = vsub.f32 %v94, %v3363
    %v3365 = vand.u32 %v3364, 4294901760
    %3366 = vmatprep.subr.mxu0 %v3365
    %v3367 = vand.u32 %v93, 4294901760
    %v3368 = vsub.f32 %v93, %v3367
    %v3369 = vand.u32 %v3368, 4294901760
    %3370 = vmatpush1.msra.mxu0 %v3369
    %v3371 = vand.u32 %v102, 4294901760
    %v3372 = vsub.f32 %v102, %v3371
    %v3373 = vand.u32 %v3372, 4294901760
    %3374 = vmatprep.subr.mxu0 %v3373
    %v3375 = vand.u32 %v101, 4294901760
    %v3376 = vsub.f32 %v101, %v3375
    %v3377 = vand.u32 %v3376, 4294901760
    %3378 = vmatpush1.msra.mxu0 %v3377
    %v3379 = vand.u32 %v110, 4294901760
    %v3380 = vsub.f32 %v110, %v3379
    %v3381 = vand.u32 %v3380, 4294901760
    %3382 = vmatprep.subr.mxu0 %v3381
    %v3383 = vand.u32 %v109, 4294901760
    %v3384 = vsub.f32 %v109, %v3383
    %v3385 = vand.u32 %v3384, 4294901760
    %3386 = vmatpush1.msra.mxu0 %v3385
    %v3387 = vand.u32 %v118, 4294901760
    %v3388 = vsub.f32 %v118, %v3387
    %v3389 = vand.u32 %v3388, 4294901760
    %3390 = vmatprep.subr.mxu0 %v3389
    %v3391 = vand.u32 %v117, 4294901760
    %v3392 = vsub.f32 %v117, %v3391
    %v3393 = vand.u32 %v3392, 4294901760
    %3394 = vmatpush1.msra.mxu0 %v3393
    %v3395 = vand.u32 %v126, 4294901760
    %v3396 = vsub.f32 %v126, %v3395
    %v3397 = vand.u32 %v3396, 4294901760
    %3398 = vmatprep.subr.mxu0 %v3397
    %v3399 = vand.u32 %v125, 4294901760
    %v3400 = vsub.f32 %v125, %v3399
    %v3401 = vand.u32 %v3400, 4294901760
    %3402 = vmatpush1.msra.mxu0 %v3401
    %v3403 = vand.u32 %v134, 4294901760
    %v3404 = vsub.f32 %v134, %v3403
    %v3405 = vand.u32 %v3404, 4294901760
    %3406 = vmatprep.subr.mxu0 %v3405
    %v3407 = vand.u32 %v133, 4294901760
    %v3408 = vsub.f32 %v133, %v3407
    %v3409 = vand.u32 %v3408, 4294901760
    %3410 = vmatpush1.msra.mxu0 %v3409
    %v3411 = vand.u32 %v142, 4294901760
    %v3412 = vsub.f32 %v142, %v3411
    %v3413 = vand.u32 %v3412, 4294901760
    %3414 = vmatprep.subr.mxu0 %v3413
    %v3415 = vand.u32 %v141, 4294901760
    %v3416 = vsub.f32 %v141, %v3415
    %v3417 = vand.u32 %v3416, 4294901760
    %3418 = vmatpush1.msra.mxu0 %v3417
    %v3419 = vand.u32 %v150, 4294901760
    %v3420 = vsub.f32 %v150, %v3419
    %v3421 = vand.u32 %v3420, 4294901760
    %3422 = vmatprep.subr.mxu0 %v3421
    %v3423 = vand.u32 %v149, 4294901760
    %v3424 = vsub.f32 %v149, %v3423
    %v3425 = vand.u32 %v3424, 4294901760
    %3426 = vmatpush1.msra.mxu0 %v3425
    %v3427 = vand.u32 %v158, 4294901760
    %v3428 = vsub.f32 %v158, %v3427
    %v3429 = vand.u32 %v3428, 4294901760
    %3430 = vmatprep.subr.mxu0 %v3429
    %v3431 = vand.u32 %v157, 4294901760
    %v3432 = vsub.f32 %v157, %v3431
    %v3433 = vand.u32 %v3432, 4294901760
    %3434 = vmatpush1.msra.mxu0 %v3433
    %v3435 = vand.u32 %v166, 4294901760
    %v3436 = vsub.f32 %v166, %v3435
    %v3437 = vand.u32 %v3436, 4294901760
    %3438 = vmatprep.subr.mxu0 %v3437
    %v3439 = vand.u32 %v165, 4294901760
    %v3440 = vsub.f32 %v165, %v3439
    %v3441 = vand.u32 %v3440, 4294901760
    %3442 = vmatpush1.msra.mxu0 %v3441
    %3443 = vmatprep.subr.mxu0 0.0
    %3444 = vmatpush1.msra.mxu0 0.0
    %3445 = vmatprep.subr.mxu0 0.0
    %3446 = vmatpush1.msra.mxu0 0.0
    %3447 = vmatprep.subr.mxu0 0.0
    %3448 = vmatpush1.msra.mxu0 0.0
    %3449 = vmatprep.subr.mxu0 0.0
    %3450 = vmatpush1.msra.mxu0 0.0
    %3451 = vmatprep.subr.mxu0 0.0
    %3452 = vmatpush1.msra.mxu0 0.0
    %3453 = vmatprep.subr.mxu0 0.0
    %3454 = vmatpush1.msra.mxu0 0.0
    %3455 = vmatprep.subr.mxu0 0.0
    %3456 = vmatpush1.msra.mxu0 0.0
    %3457 = vmatprep.subr.mxu0 0.0
    %3458 = vmatpush1.msra.mxu0 0.0
    %3459 = vmatprep.subr.mxu0 0.0
    %3460 = vmatpush1.msra.mxu0 0.0
    %3461 = vmatprep.subr.mxu0 0.0
    %3462 = vmatpush1.msra.mxu0 0.0
    %3463 = vmatprep.subr.mxu0 0.0
    %3464 = vmatpush1.msra.mxu0 0.0
    %3465 = vmatprep.subr.mxu0 0.0
    %3466 = vmatpush1.msra.mxu0 0.0
    %3467 = vmatprep.subr.mxu0 0.0
    %3468 = vmatpush1.msra.mxu0 0.0
    %3469 = vmatprep.subr.mxu0 0.0
    %3470 = vmatpush1.msra.mxu0 0.0
    %3471 = vmatprep.subr.mxu0 0.0
    %3472 = vmatpush1.msra.mxu0 0.0
    %3473 = vmatprep.subr.mxu0 0.0
    %3474 = vmatpush1.msra.mxu0 0.0
    %3475 = vmatprep.mubr.f32.mxu0 0.0
    %v3476 = vand.u32 %v38, 4294901760
    %3477 = vmatmul.mubr.f32.gmra.mrb[0].mxu0 %v3476
    %v3478 = vpop.f32.mrb[0].mxu0
    %v3479 = vadd.f32 %v3311, %v3478
    %v3480 = vpop.f32.mrb[0].mxu0
    %v3481 = vadd.f32 %v3313, %v3480
    %3482 = vdwg.mxu0
    %v3483 = vand.u32 %v46, 4294901760
    %3484 = vmatprep.subr.mxu0 %v3483
    %v3485 = vand.u32 %v45, 4294901760
    %3486 = vmatpush1.msra.mxu0 %v3485
    %v3487 = vand.u32 %v54, 4294901760
    %3488 = vmatprep.subr.mxu0 %v3487
    %v3489 = vand.u32 %v53, 4294901760
    %3490 = vmatpush1.msra.mxu0 %v3489
    %v3491 = vand.u32 %v62, 4294901760
    %3492 = vmatprep.subr.mxu0 %v3491
    %v3493 = vand.u32 %v61, 4294901760
    %3494 = vmatpush1.msra.mxu0 %v3493
    %v3495 = vand.u32 %v70, 4294901760
    %3496 = vmatprep.subr.mxu0 %v3495
    %v3497 = vand.u32 %v69, 4294901760
    %3498 = vmatpush1.msra.mxu0 %v3497
    %v3499 = vand.u32 %v78, 4294901760
    %3500 = vmatprep.subr.mxu0 %v3499
    %v3501 = vand.u32 %v77, 4294901760
    %3502 = vmatpush1.msra.mxu0 %v3501
    %v3503 = vand.u32 %v86, 4294901760
    %3504 = vmatprep.subr.mxu0 %v3503
    %v3505 = vand.u32 %v85, 4294901760
    %3506 = vmatpush1.msra.mxu0 %v3505
    %v3507 = vand.u32 %v94, 4294901760
    %3508 = vmatprep.subr.mxu0 %v3507
    %v3509 = vand.u32 %v93, 4294901760
    %3510 = vmatpush1.msra.mxu0 %v3509
    %v3511 = vand.u32 %v102, 4294901760
    %3512 = vmatprep.subr.mxu0 %v3511
    %v3513 = vand.u32 %v101, 4294901760
    %3514 = vmatpush1.msra.mxu0 %v3513
    %v3515 = vand.u32 %v110, 4294901760
    %3516 = vmatprep.subr.mxu0 %v3515
    %v3517 = vand.u32 %v109, 4294901760
    %3518 = vmatpush1.msra.mxu0 %v3517
    %v3519 = vand.u32 %v118, 4294901760
    %3520 = vmatprep.subr.mxu0 %v3519
    %v3521 = vand.u32 %v117, 4294901760
    %3522 = vmatpush1.msra.mxu0 %v3521
    %v3523 = vand.u32 %v126, 4294901760
    %3524 = vmatprep.subr.mxu0 %v3523
    %v3525 = vand.u32 %v125, 4294901760
    %3526 = vmatpush1.msra.mxu0 %v3525
    %v3527 = vand.u32 %v134, 4294901760
    %3528 = vmatprep.subr.mxu0 %v3527
    %v3529 = vand.u32 %v133, 4294901760
    %3530 = vmatpush1.msra.mxu0 %v3529
    %v3531 = vand.u32 %v142, 4294901760
    %3532 = vmatprep.subr.mxu0 %v3531
    %v3533 = vand.u32 %v141, 4294901760
    %3534 = vmatpush1.msra.mxu0 %v3533
    %v3535 = vand.u32 %v150, 4294901760
    %3536 = vmatprep.subr.mxu0 %v3535
    %v3537 = vand.u32 %v149, 4294901760
    %3538 = vmatpush1.msra.mxu0 %v3537
    %v3539 = vand.u32 %v158, 4294901760
    %3540 = vmatprep.subr.mxu0 %v3539
    %v3541 = vand.u32 %v157, 4294901760
    %3542 = vmatpush1.msra.mxu0 %v3541
    %v3543 = vand.u32 %v166, 4294901760
    %3544 = vmatprep.subr.mxu0 %v3543
    %v3545 = vand.u32 %v165, 4294901760
    %3546 = vmatpush1.msra.mxu0 %v3545
    %3547 = vmatprep.subr.mxu0 0.0
    %3548 = vmatpush1.msra.mxu0 0.0
    %3549 = vmatprep.subr.mxu0 0.0
    %3550 = vmatpush1.msra.mxu0 0.0
    %3551 = vmatprep.subr.mxu0 0.0
    %3552 = vmatpush1.msra.mxu0 0.0
    %3553 = vmatprep.subr.mxu0 0.0
    %3554 = vmatpush1.msra.mxu0 0.0
    %3555 = vmatprep.subr.mxu0 0.0
    %3556 = vmatpush1.msra.mxu0 0.0
    %3557 = vmatprep.subr.mxu0 0.0
    %3558 = vmatpush1.msra.mxu0 0.0
    %3559 = vmatprep.subr.mxu0 0.0
    %3560 = vmatpush1.msra.mxu0 0.0
    %3561 = vmatprep.subr.mxu0 0.0
    %3562 = vmatpush1.msra.mxu0 0.0
    %3563 = vmatprep.subr.mxu0 0.0
    %3564 = vmatpush1.msra.mxu0 0.0
    %3565 = vmatprep.subr.mxu0 0.0
    %3566 = vmatpush1.msra.mxu0 0.0
    %3567 = vmatprep.subr.mxu0 0.0
    %3568 = vmatpush1.msra.mxu0 0.0
    %3569 = vmatprep.subr.mxu0 0.0
    %3570 = vmatpush1.msra.mxu0 0.0
    %3571 = vmatprep.subr.mxu0 0.0
    %3572 = vmatpush1.msra.mxu0 0.0
    %3573 = vmatprep.subr.mxu0 0.0
    %3574 = vmatpush1.msra.mxu0 0.0
    %3575 = vmatprep.subr.mxu0 0.0
    %3576 = vmatpush1.msra.mxu0 0.0
    %3577 = vmatprep.subr.mxu0 0.0
    %3578 = vmatpush1.msra.mxu0 0.0
    %3579 = vmatprep.mubr.f32.mxu0 0.0
    %v3580 = vand.u32 %v38, 4294901760
    %3581 = vmatmul.mubr.f32.gmra.mrb[0].mxu0 %v3580
    %v3582 = vpop.f32.mrb[0].mxu0
    %v3583 = vadd.f32 %v3479, %v3582
    %v3584 = vpop.f32.mrb[0].mxu0
    %v3585 = vadd.f32 %v3481, %v3584
    %3586 = vdwg.mxu0
    %v3595 = vcombine.low %v1018, %v1020
    %v3596 = vcombine.low %v1873, %v1875
    %v3597 = vcombine.low %v2728, %v2730
    %v3598 = vcombine.low %v3583, %v3585
    %v3600 = vunpack.c.l.s4 1966171168
    %v3601 = vunpack.c.0.s8 %v3600
    %v3602 = vlaneseq
    %v3603 = vshrl.u32 %v3602, 7
    %v3604 = vsub.s32 %v3601, %v3603
    %v3605 = vrot.slane %v3595, %v3604
    %v3607 = vunpack.c.l.s4 1966171168
    %v3608 = vunpack.c.0.s8 %v3607
    %v3609 = vlaneseq
    %v3610 = vshrl.u32 %v3609, 7
    %v3611 = vsub.s32 %v3608, %v3610
    %v3612 = vrot.slane %v3596, %v3611
    %v3614 = vunpack.c.l.s4 1966171168
    %v3615 = vunpack.c.0.s8 %v3614
    %v3616 = vlaneseq
    %v3617 = vshrl.u32 %v3616, 7
    %v3618 = vsub.s32 %v3615, %v3617
    %v3619 = vrot.slane %v3597, %v3618
    %v3621 = vunpack.c.l.s4 1966171168
    %v3622 = vunpack.c.0.s8 %v3621
    %v3623 = vlaneseq
    %v3624 = vshrl.u32 %v3623, 7
    %v3625 = vsub.s32 %v3622, %v3624
    %v3626 = vrot.slane %v3598, %v3625
    %v3627 = vcombine.low %v3605, %v3612
    %v3628 = vcombine.low %v3619, %v3626
    %v3630 = vunpack.c.l.s4 1966171168
    %v3631 = vunpack.c.0.s8 %v3630
    %v3632 = vlaneseq
    %v3633 = vshrl.u32 %v3632, 7
    %v3634 = vsub.s32 %v3631, %v3633
    %v3635 = vrot.slane %v3627, %v3634
    %v3637 = vunpack.c.l.s4 1966171168
    %v3638 = vunpack.c.0.s8 %v3637
    %v3639 = vlaneseq
    %v3640 = vshrl.u32 %v3639, 7
    %v3641 = vsub.s32 %v3638, %v3640
    %v3642 = vrot.slane %v3628, %v3641
    %v3643 = vcombine.low %v3635, %v3642
    %3645 = vst [vmem:[#allocation7] sm:$0xff] %v3643
    // Predicated region
    $region18: #{tpu_custom_call.1} parent=1 // pred_check
      _
    $region19: #{tpu_custom_call.1} parent=1 // pred_check_branch
      %3647 = sbr.rel (0) target = $region21
    $region20: #{tpu_custom_call.1} parent=1 // pred_region
      %s3649 = ssub.s32 128, 128
      %3650 = vsyncadd [#allocation4], %s3649
      %s3652 = sshll.u32 [#allocation7], 4
      %s3653 = int_to_ptr.vmem [resolvable:$true] %s3652
      %3655 = dma.vmem_to_hbm [thread:$0]  %s3653, 128, %s2, [#allocation4]
    $region21: #{tpu_custom_call.1} parent=1 // pred_fallthru
      _
    // Predicated region
    $region22: #{tpu_custom_call.1} parent=1 // pred_check
      _
    $region23: #{tpu_custom_call.1} parent=1 // pred_check_branch
      %3657 = sbr.rel (0) target = $region25
    $region24: #{tpu_custom_call.1} parent=1 // pred_region
      %3658 = dma.done [#allocation4], 128
    $region25: #{tpu_custom_call.1} parent=1 // pred_fallthru
      _
    %3659 = vsyncpa [#allocation3], 1
    %3660 = vsyncpa [#allocation6], 1
    %3661 = vsyncpa [#allocation4], 1

</llo_original>
